<compile_context>
chip_gen: v7x
topology: tpu7x:2x2x1
jax: 0.10.0
libtpu: 0.0.40
codegen_flags: <defaults>
</compile_context>

<pallas_src>
import functools
import math

import jax
import jax.numpy as jnp
from jax.experimental import pallas as pl
from jax.experimental.pallas import tpu as pltpu


def _vmem_limit_bytes():
    """Generation-aware scoped-VMEM limit (v7x has only 64 MiB physical)."""
    try:
        kind = jax.devices()[0].device_kind.lower()
    except Exception:
        kind = ""
    if "v5" in kind or "v6" in kind:
        return 64 * 1024 * 1024          # 128 MiB physical on v5e / v6e
    return 48 * 1024 * 1024              # conservative default, fits v7x


# --------------------------- in-kernel helpers ---------------------------

def _layernorm(x, g, b, eps=1e-5):
    mean = jnp.mean(x, axis=-1, keepdims=True)
    var = jnp.mean((x - mean) ** 2, axis=-1, keepdims=True)
    return (x - mean) * jax.lax.rsqrt(var + eps) * g + b


# -------- fused feat_encoder + positional encoding + transformer ----------

def _osm_transformer_kernel(x_ref, feat_w_ref, feat_b_ref, pe_ref,
                            in_w_ref, in_b_ref, out_w_ref, out_b_ref,
                            ff1_w_ref, ff1_b_ref, ff2_w_ref, ff2_b_ref,
                            ln1_g_ref, ln1_b_ref, ln2_g_ref, ln2_b_ref,
                            o_ref, *, n_head, batch_block, seq_len):
    Bb, S = batch_block, seq_len
    M = Bb * S                                   # rows fed to every MXU matmul
    D = feat_w_ref.shape[1]
    L = in_w_ref.shape[0]
    Dh = D // n_head
    scale = 1.0 / math.sqrt(Dh)

    # --- feat_encoder + positional encoding (dropout = identity) ---
    x = x_ref[...]                                           # (M, F) f32
    h = jnp.dot(x, feat_w_ref[...], preferred_element_type=jnp.float32)
    h = h + feat_b_ref[...]                                  # (M, D)
    h = (h.reshape(Bb, S, D) + pe_ref[...][None]).reshape(M, D)

    # causal additive mask generated in-kernel (allowed when col <= row)
    row = jax.lax.broadcasted_iota(jnp.int32, (S, S), 0)
    col = jax.lax.broadcasted_iota(jnp.int32, (S, S), 1)
    mask_bias = jnp.where(col <= row, 0.0, -1e30).astype(jnp.float32)

    # --- TransformerEncoder layers (norm_first=False, relu FFN) ---
    for l in range(L):
        # QKV projection: one big (M, D) x (D, 3D) bf16 MXU matmul
        qkv = jnp.dot(h.astype(jnp.bfloat16), in_w_ref[l],
                      preferred_element_type=jnp.float32) + in_b_ref[l]
        q = (qkv[:, :D] * scale).reshape(Bb, S, D).astype(jnp.bfloat16)
        k = qkv[:, D:2 * D].reshape(Bb, S, D).astype(jnp.bfloat16)
        v = qkv[:, 2 * D:].reshape(Bb, S, D).astype(jnp.bfloat16)

        out_w = out_w_ref[l]                                 # (D, D) bf16
        attn_out = jnp.zeros((M, D), jnp.float32) + out_b_ref[l]
        for hh in range(n_head):                             # static, small H
            sl = slice(hh * Dh, (hh + 1) * Dh)
            qh, kh, vh = q[:, :, sl], k[:, :, sl], v[:, :, sl]   # (Bb, S, Dh)
            s = jnp.einsum('bqd,bkd->bqk', qh, kh,
                           preferred_element_type=jnp.float32)   # (Bb, S, S)
            s = s + mask_bias[None]
            s = s - jnp.max(s, axis=-1, keepdims=True)
            p = jnp.exp(s)
            p = p * pl.reciprocal(jnp.sum(p, axis=-1, keepdims=True),
                                  approx=True)
            oh = jnp.einsum('bqk,bkd->bqd', p.astype(jnp.bfloat16), vh,
                            preferred_element_type=jnp.float32)  # (Bb, S, Dh)
            # per-head output-projection accumulation (no lane-axis concat)
            attn_out = attn_out + jnp.dot(
                oh.reshape(M, Dh).astype(jnp.bfloat16), out_w[sl, :],
                preferred_element_type=jnp.float32)

        # residual + LayerNorm 1
        h1 = _layernorm(h + attn_out, ln1_g_ref[l], ln1_b_ref[l])

        # FFN (relu)
        ff = jnp.dot(h1.astype(jnp.bfloat16), ff1_w_ref[l],
                     preferred_element_type=jnp.float32) + ff1_b_ref[l]
        ff = jnp.maximum(ff, 0.0)
        ff2 = jnp.dot(ff.astype(jnp.bfloat16), ff2_w_ref[l],
                      preferred_element_type=jnp.float32) + ff2_b_ref[l]

        # residual + LayerNorm 2
        h = _layernorm(h1 + ff2, ln2_g_ref[l], ln2_b_ref[l])

    o_ref[...] = h.astype(o_ref.dtype)


def _pick_batch_block(batch, seq, target_rows=256, max_rows=2048):
    """Largest-needed divisor of `batch` such that Bb*S reaches ~target_rows."""
    best = 1
    for bb in range(1, batch + 1):
        if batch % bb == 0 and bb * seq <= max_rows:
            best = bb
            if bb * seq >= target_rows:
                break
    return best


def osm_transformer(x_flat, pe_s, params, n_head, batch_block, seq_len):
    """x_flat: (B*S, F).  Returns (B*S, D) float32."""
    BS, F = x_flat.shape
    D = params["feat_w"].shape[1]
    L = params["in_w"].shape[0]
    Fd = params["ff1_w"].shape[2]
    Bb, S = batch_block, seq_len
    M = Bb * S
    nb = BS // M

    const2 = lambda i: (0, 0)
    const3 = lambda i: (0, 0, 0)
    kernel = functools.partial(_osm_transformer_kernel, n_head=n_head,
                               batch_block=Bb, seq_len=S)
    # TODO(synk): with pipeline_mode=pl.Buffered(1) on the constant-index weight
    # BlockSpecs the resident weights would not be double-buffered; omitted here
    # for maximum compile compatibility.
    return pl.pallas_call(
        kernel,
        out_shape=jax.ShapeDtypeStruct((BS, D), jnp.float32),
        grid_spec=pltpu.PrefetchScalarGridSpec(
            num_scalar_prefetch=0, grid=(nb,),
            in_specs=[
                pl.BlockSpec((M, F), lambda i: (i, 0)),       # activations
                pl.BlockSpec((F, D), const2),                 # feat_w
                pl.BlockSpec((1, D), const2),                 # feat_b
                pl.BlockSpec((S, D), const2),                 # pe
                pl.BlockSpec((L, D, 3 * D), const3),          # in_w  (bf16)
                pl.BlockSpec((L, 1, 3 * D), const3),          # in_b
                pl.BlockSpec((L, D, D), const3),              # out_w (bf16)
                pl.BlockSpec((L, 1, D), const3),              # out_b
                pl.BlockSpec((L, D, Fd), const3),             # ff1_w (bf16)
                pl.BlockSpec((L, 1, Fd), const3),             # ff1_b
                pl.BlockSpec((L, Fd, D), const3),             # ff2_w (bf16)
                pl.BlockSpec((L, 1, D), const3),              # ff2_b
                pl.BlockSpec((L, 1, D), const3),              # ln1_g
                pl.BlockSpec((L, 1, D), const3),              # ln1_b
                pl.BlockSpec((L, 1, D), const3),              # ln2_g
                pl.BlockSpec((L, 1, D), const3),              # ln2_b
            ],
            out_specs=pl.BlockSpec((M, D), lambda i: (i, 0))),
        compiler_params=pltpu.CompilerParams(
            dimension_semantics=("parallel",),
            vmem_limit_bytes=_vmem_limit_bytes()),
    )(x_flat, params["feat_w"], params["feat_b"], pe_s,
      params["in_w"], params["in_b"], params["out_w"], params["out_b"],
      params["ff1_w"], params["ff1_b"], params["ff2_w"], params["ff2_b"],
      params["ln1_g"], params["ln1_b"], params["ln2_g"], params["ln2_b"])


# --------------------------- reduce FC kernels ---------------------------

def _reduce_fc_kernel(x_ref, w_ref, b_ref, o_ref, acc_ref, *, activation, n_k):
    """Tiled y = act(x @ w + b): grid (N, K); K is the reduction axis."""
    k = pl.program_id(1)

    @pl.when(k == 0)
    def _():  # fold bias into accumulator init
        acc_ref[...] = jnp.zeros_like(acc_ref) + b_ref[...].astype(jnp.float32)

    acc_ref[...] += jnp.dot(x_ref[...].astype(jnp.bfloat16), w_ref[...],
                            preferred_element_type=jnp.float32)

    @pl.when(k == n_k - 1)
    def _():
        y = acc_ref[...]
        if activation == "leaky_relu":
            y = jnp.where(y >= 0.0, y, 0.01 * y)
        elif activation == "relu":
            y = jnp.maximum(y, 0.0)
        o_ref[...] = y.astype(o_ref.dtype)


def _pick_tile(dim, pref, prefer_even_steps=False):
    """Largest multiple of 128 that divides dim and is <= pref (full dim if unaligned)."""
    pref = min(pref, dim)
    if dim % 128 != 0:
        return dim                      # small / unaligned dim: take it whole
    cands = [t for t in range(128, pref + 1, 128) if dim % t == 0]
    if not cands:
        return 128
    if prefer_even_steps:               # even step count -> both v7x TensorCores
        even = [t for t in cands if (dim // t) % 2 == 0]
        if even:
            return max(even)
    return max(cands)


def reduce_fc(x, w, b, activation="leaky_relu", tk=2048, tn=1024):
    """x: (M, K) f32, w: (K, N) bf16 (weight-streaming bound), b: (N,) f32."""
    M, K = x.shape
    _, N = w.shape
    tk = _pick_tile(K, tk)
    tn = _pick_tile(N, tn, prefer_even_steps=True)
    n_k = K // tk
    cost = pl.CostEstimate(flops=2 * M * K * N, transcendentals=0,
                           bytes_accessed=x.size * 4 + w.size * 2 + M * N * 4)
    return pl.pallas_call(
        functools.partial(_reduce_fc_kernel, activation=activation, n_k=n_k),
        out_shape=jax.ShapeDtypeStruct((M, N), jnp.float32),
        grid_spec=pltpu.PrefetchScalarGridSpec(
            num_scalar_prefetch=0, grid=(N // tn, n_k),
            in_specs=[pl.BlockSpec((M, tk), lambda n, k: (0, k)),
                      pl.BlockSpec((tk, tn), lambda n, k: (k, n)),
                      pl.BlockSpec((1, tn), lambda n, k: (0, n))],
            out_specs=pl.BlockSpec((M, tn), lambda n, k: (0, n)),
            scratch_shapes=[pltpu.VMEM((M, tn), jnp.float32)]),
        compiler_params=pltpu.CompilerParams(
            dimension_semantics=("parallel", "arbitrary"),
            vmem_limit_bytes=_vmem_limit_bytes()),
        cost_estimate=cost,
    )(x, w, b.reshape(1, N))


# --------------------------- plain-JAX glue ---------------------------

def make_positional_encoding(d_model, max_len=1000):
    position = jnp.arange(max_len, dtype=jnp.float32)[:, None]
    div_term = jnp.exp(jnp.arange(0, d_model, 2, dtype=jnp.float32)
                       * (-math.log(10000.0) / d_model))
    pe = jnp.zeros((max_len, d_model), dtype=jnp.float32)
    pe = pe.at[:, 0::2].set(jnp.sin(position * div_term))
    pe = pe.at[:, 1::2].set(jnp.cos(position * div_term))
    return pe                                            # (max_len, d_model)


def init_params(key, traj_dim, d_model, n_head, num_layers, dim_ff, seq_len,
                red_mid, red_out):
    keys = iter(jax.random.split(key, 16))

    def w(shape):
        return (0.02 * jax.random.normal(next(keys), shape)).astype(jnp.float32)

    L, D, Fd = num_layers, d_model, dim_ff
    params = {
        "pe": make_positional_encoding(D, max_len=1000),
        "feat_w": w((traj_dim, D)),
        "feat_b": w((D,)).reshape(1, D),
        # transformer layer weights stacked along a leading L axis, stored bf16
        "in_w": w((L, D, 3 * D)).astype(jnp.bfloat16),
        "in_b": w((L, 1, 3 * D)),
        "out_w": w((L, D, D)).astype(jnp.bfloat16),
        "out_b": w((L, 1, D)),
        "ff1_w": w((L, D, Fd)).astype(jnp.bfloat16),
        "ff1_b": w((L, 1, Fd)),
        "ff2_w": w((L, Fd, D)).astype(jnp.bfloat16),
        "ff2_b": w((L, 1, D)),
        "ln1_g": jnp.ones((L, 1, D), jnp.float32),
        "ln1_b": jnp.zeros((L, 1, D), jnp.float32),
        "ln2_g": jnp.ones((L, 1, D), jnp.float32),
        "ln2_b": jnp.zeros((L, 1, D), jnp.float32),
    }
    red_in = seq_len * d_model            # original: 40 * 256 = 10240
    # reduce-FC weights stored bf16 (weight-streaming / HBM-bandwidth bound)
    params["red1_w"] = w((red_in, red_mid)).astype(jnp.bfloat16)
    params["red1_b"] = w((red_mid,))
    params["red2_w"] = w((red_mid, red_out)).astype(jnp.bfloat16)
    params["red2_b"] = w((red_out,))
    return params


def osm_encoder_forward(params, osm_traj, n_head):
    S, B, F = osm_traj.shape
    D = params["feat_w"].shape[1]

    Bb = _pick_batch_block(B, S)
    x_flat = osm_traj.transpose(1, 0, 2).reshape(B * S, F)   # (B*S, F) glue
    h_flat = osm_transformer(x_flat, params["pe"][:S, :], params,
                             n_head, Bb, S)                  # (B*S, D)
    h = h_flat.reshape(B, S, D)

    # h.view(h.size(1), -1): raw row-major reshape of the (S, B, D) buffer to
    # (B, S*D), exactly as torch .view does (it interleaves seq/batch elements).
    h2 = h.transpose(1, 0, 2).reshape(B, S * D)
    h3 = reduce_fc(h2, params["red1_w"], params["red1_b"])
    h4 = reduce_fc(h3, params["red2_w"], params["red2_b"])
    return h4


# ------------------------------- main ---------------------------------

if __name__ == "__main__":
    # Scaled-down shapes (original: S=40, d_model=256, dim_ff=2048, 10240/5120/1024).
    S, B = 8, 2
    traj_dim, d_model, n_head, num_layers, dim_ff = 4, 128, 4, 2, 256
    red_mid, red_out = 512, 256

    key = jax.random.PRNGKey(0)
    pkey, xkey = jax.random.split(key)
    params = init_params(pkey, traj_dim, d_model, n_head, num_layers, dim_ff,
                         S, red_mid, red_out)
    osm_traj = jax.random.normal(xkey, (S, B, traj_dim), dtype=jnp.float32)

    out = osm_encoder_forward(params, osm_traj, n_head)
    jax.block_until_ready(out)
    assert out.shape == (B, red_out)
    assert bool(jnp.all(jnp.isfinite(out)))
    # TODO(synk): dropout layers are identity here (inference semantics); training-mode
    # dropout masks are not reproduced.
    print("KERNEL_OK")
</pallas_src>

<mosaic_0001>
module attributes {stable_mosaic.version = 11 : i64} {
  func.func @_osm_transformer_kernel(%arg0: i32, %arg1: memref<16x4xf32, #tpu.memory_space<vmem>>, %arg2: memref<4x128xf32, #tpu.memory_space<vmem>>, %arg3: memref<1x128xf32, #tpu.memory_space<vmem>>, %arg4: memref<8x128xf32, #tpu.memory_space<vmem>>, %arg5: memref<2x128x384xbf16, #tpu.memory_space<vmem>>, %arg6: memref<2x1x384xf32, #tpu.memory_space<vmem>>, %arg7: memref<2x128x128xbf16, #tpu.memory_space<vmem>>, %arg8: memref<2x1x128xf32, #tpu.memory_space<vmem>>, %arg9: memref<2x128x256xbf16, #tpu.memory_space<vmem>>, %arg10: memref<2x1x256xf32, #tpu.memory_space<vmem>>, %arg11: memref<2x256x128xbf16, #tpu.memory_space<vmem>>, %arg12: memref<2x1x128xf32, #tpu.memory_space<vmem>>, %arg13: memref<2x1x128xf32, #tpu.memory_space<vmem>>, %arg14: memref<2x1x128xf32, #tpu.memory_space<vmem>>, %arg15: memref<2x1x128xf32, #tpu.memory_space<vmem>>, %arg16: memref<2x1x128xf32, #tpu.memory_space<vmem>>, %arg17: memref<16x128xf32, #tpu.memory_space<vmem>>) attributes {dimension_semantics = [#tpu.dimension_semantics<parallel>], iteration_bounds = array<i64: 1>, scalar_prefetch = 0 : i64, scratch_operands = 0 : i64, tpu.core_type = #tpu.core_type<tc>, window_params = [{transform_indices = @transform_0, window_bounds = array<i64: 16, 4>}, {pipeline_mode = #tpu.pipeline_mode<synchronous>, transform_indices = @transform_1, window_bounds = array<i64: 4, 128>}, {pipeline_mode = #tpu.pipeline_mode<synchronous>, transform_indices = @transform_2, window_bounds = array<i64: 1, 128>}, {pipeline_mode = #tpu.pipeline_mode<synchronous>, transform_indices = @transform_3, window_bounds = array<i64: 8, 128>}, {pipeline_mode = #tpu.pipeline_mode<synchronous>, transform_indices = @transform_4, window_bounds = array<i64: 2, 128, 384>}, {pipeline_mode = #tpu.pipeline_mode<synchronous>, transform_indices = @transform_5, window_bounds = array<i64: 2, 1, 384>}, {pipeline_mode = #tpu.pipeline_mode<synchronous>, transform_indices = @transform_6, window_bounds = array<i64: 2, 128, 128>}, {pipeline_mode = #tpu.pipeline_mode<synchronous>, transform_indices = @transform_7, window_bounds = array<i64: 2, 1, 128>}, {pipeline_mode = #tpu.pipeline_mode<synchronous>, transform_indices = @transform_8, window_bounds = array<i64: 2, 128, 256>}, {pipeline_mode = #tpu.pipeline_mode<synchronous>, transform_indices = @transform_9, window_bounds = array<i64: 2, 1, 256>}, {pipeline_mode = #tpu.pipeline_mode<synchronous>, transform_indices = @transform_10, window_bounds = array<i64: 2, 256, 128>}, {pipeline_mode = #tpu.pipeline_mode<synchronous>, transform_indices = @transform_11, window_bounds = array<i64: 2, 1, 128>}, {pipeline_mode = #tpu.pipeline_mode<synchronous>, transform_indices = @transform_12, window_bounds = array<i64: 2, 1, 128>}, {pipeline_mode = #tpu.pipeline_mode<synchronous>, transform_indices = @transform_13, window_bounds = array<i64: 2, 1, 128>}, {pipeline_mode = #tpu.pipeline_mode<synchronous>, transform_indices = @transform_14, window_bounds = array<i64: 2, 1, 128>}, {pipeline_mode = #tpu.pipeline_mode<synchronous>, transform_indices = @transform_15, window_bounds = array<i64: 2, 1, 128>}, {transform_indices = @transform_16, window_bounds = array<i64: 16, 128>}]} {
    %c0 = arith.constant 0 : index
    %c0_0 = arith.constant 0 : index
    %0 = vector.load %arg1[%c0, %c0_0] : memref<16x4xf32, #tpu.memory_space<vmem>>, vector<16x4xf32>
    %c0_1 = arith.constant 0 : index
    %c0_2 = arith.constant 0 : index
    %1 = vector.load %arg2[%c0_1, %c0_2] : memref<4x128xf32, #tpu.memory_space<vmem>>, vector<4x128xf32>
    %cst = arith.constant dense<0.000000e+00> : vector<16x128xf32>
    %2 = tpu.matmul %0, %1, %cst {dimension_numbers = #tpu.dot_dimension_numbers<[1], [0], [0], [1], [0, 0, 1, 1], [], []>} : vector<16x4xf32>, vector<4x128xf32>, vector<16x128xf32> -> vector<16x128xf32>
    %c0_3 = arith.constant 0 : index
    %c0_4 = arith.constant 0 : index
    %3 = vector.load %arg3[%c0_3, %c0_4] : memref<1x128xf32, #tpu.memory_space<vmem>>, vector<1x128xf32>
    %4 = vector.broadcast %3 : vector<1x128xf32> to vector<16x128xf32>
    %5 = arith.addf %2, %4 : vector<16x128xf32>
    %6 = vector.shape_cast %5 : vector<16x128xf32> to vector<2x8x128xf32>
    %c0_5 = arith.constant 0 : index
    %c0_6 = arith.constant 0 : index
    %7 = vector.load %arg4[%c0_5, %c0_6] : memref<8x128xf32, #tpu.memory_space<vmem>>, vector<8x128xf32>
    %8 = vector.shape_cast %7 : vector<8x128xf32> to vector<1x8x128xf32>
    %9 = vector.broadcast %8 : vector<1x8x128xf32> to vector<2x8x128xf32>
    %10 = arith.addf %6, %9 : vector<2x8x128xf32>
    %11 = vector.shape_cast %10 : vector<2x8x128xf32> to vector<16x128xf32>
    %12 = tpu.iota {dimensions = array<i32: 0>} : vector<8x8xi32>
    %13 = tpu.iota {dimensions = array<i32: 1>} : vector<8x8xi32>
    %14 = arith.cmpi sle, %13, %12 : vector<8x8xi32>
    %cst_7 = arith.constant 0.000000e+00 : f32
    %cst_8 = arith.constant -1.000000e+30 : f32
    %15 = vector.broadcast %cst_7 : f32 to vector<8x8xf32>
    %16 = vector.broadcast %cst_8 : f32 to vector<8x8xf32>
    %17 = arith.select %14, %15, %16 : vector<8x8xi1>, vector<8x8xf32>
    %18 = arith.truncf %11 : vector<16x128xf32> to vector<16x128xbf16>
    %c0_9 = arith.constant 0 : index
    %c0_10 = arith.constant 0 : index
    %c0_11 = arith.constant 0 : index
    %19 = vector.load %arg5[%c0_9, %c0_10, %c0_11] : memref<2x128x384xbf16, #tpu.memory_space<vmem>>, vector<1x128x384xbf16>
    %20 = vector.shape_cast %19 : vector<1x128x384xbf16> to vector<128x384xbf16>
    %cst_12 = arith.constant dense<0.000000e+00> : vector<16x384xf32>
    %21 = tpu.matmul %18, %20, %cst_12 {dimension_numbers = #tpu.dot_dimension_numbers<[1], [0], [0], [1], [0, 0, 1, 1], [], []>} : vector<16x128xbf16>, vector<128x384xbf16>, vector<16x384xf32> -> vector<16x384xf32>
    %c0_13 = arith.constant 0 : index
    %c0_14 = arith.constant 0 : index
    %c0_15 = arith.constant 0 : index
    %22 = vector.load %arg6[%c0_13, %c0_14, %c0_15] : memref<2x1x384xf32, #tpu.memory_space<vmem>>, vector<1x1x384xf32>
    %23 = vector.shape_cast %22 : vector<1x1x384xf32> to vector<1x384xf32>
    %24 = vector.broadcast %23 : vector<1x384xf32> to vector<16x384xf32>
    %25 = arith.addf %21, %24 : vector<16x384xf32>
    %26 = vector.extract_strided_slice %25 {offsets = [0, 0], sizes = [16, 128], strides = [1, 1]} : vector<16x384xf32> to vector<16x128xf32>
    %cst_16 = arith.constant 0.176776692 : f32
    %27 = vector.broadcast %cst_16 : f32 to vector<16x128xf32>
    %28 = arith.mulf %26, %27 : vector<16x128xf32>
    %29 = vector.shape_cast %28 : vector<16x128xf32> to vector<2x8x128xf32>
    %30 = arith.truncf %29 : vector<2x8x128xf32> to vector<2x8x128xbf16>
    %31 = vector.extract_strided_slice %25 {offsets = [0, 128], sizes = [16, 128], strides = [1, 1]} : vector<16x384xf32> to vector<16x128xf32>
    %32 = vector.shape_cast %31 : vector<16x128xf32> to vector<2x8x128xf32>
    %33 = arith.truncf %32 : vector<2x8x128xf32> to vector<2x8x128xbf16>
    %34 = vector.extract_strided_slice %25 {offsets = [0, 256], sizes = [16, 128], strides = [1, 1]} : vector<16x384xf32> to vector<16x128xf32>
    %35 = vector.shape_cast %34 : vector<16x128xf32> to vector<2x8x128xf32>
    %36 = arith.truncf %35 : vector<2x8x128xf32> to vector<2x8x128xbf16>
    %c0_17 = arith.constant 0 : index
    %c0_18 = arith.constant 0 : index
    %c0_19 = arith.constant 0 : index
    %37 = vector.load %arg7[%c0_17, %c0_18, %c0_19] : memref<2x128x128xbf16, #tpu.memory_space<vmem>>, vector<1x128x128xbf16>
    %38 = vector.shape_cast %37 : vector<1x128x128xbf16> to vector<128x128xbf16>
    %cst_20 = arith.constant 0.000000e+00 : f32
    %39 = vector.broadcast %cst_20 : f32 to vector<16x128xf32>
    %c0_21 = arith.constant 0 : index
    %c0_22 = arith.constant 0 : index
    %c0_23 = arith.constant 0 : index
    %40 = vector.load %arg8[%c0_21, %c0_22, %c0_23] : memref<2x1x128xf32, #tpu.memory_space<vmem>>, vector<1x1x128xf32>
    %41 = vector.shape_cast %40 : vector<1x1x128xf32> to vector<1x128xf32>
    %42 = vector.broadcast %41 : vector<1x128xf32> to vector<16x128xf32>
    %43 = arith.addf %39, %42 : vector<16x128xf32>
    %44 = vector.extract_strided_slice %30 {offsets = [0, 0, 0], sizes = [2, 8, 32], strides = [1, 1, 1]} : vector<2x8x128xbf16> to vector<2x8x32xbf16>
    %45 = vector.extract_strided_slice %33 {offsets = [0, 0, 0], sizes = [2, 8, 32], strides = [1, 1, 1]} : vector<2x8x128xbf16> to vector<2x8x32xbf16>
    %46 = vector.extract_strided_slice %36 {offsets = [0, 0, 0], sizes = [2, 8, 32], strides = [1, 1, 1]} : vector<2x8x128xbf16> to vector<2x8x32xbf16>
    "tpu.trace_start"() <{level = 10 : i32, message = "bqd,bkd->bqk"}> : () -> ()
    %cst_24 = arith.constant dense<0.000000e+00> : vector<2x8x8xf32>
    %47 = tpu.matmul %44, %45, %cst_24 {dimension_numbers = #tpu.dot_dimension_numbers<[2], [2], [1], [1], [0, 0, 0, 1, 1, 1], [0], [0]>} : vector<2x8x32xbf16>, vector<2x8x32xbf16>, vector<2x8x8xf32> -> vector<2x8x8xf32>
    "tpu.trace_stop"() : () -> ()
    %48 = vector.shape_cast %17 : vector<8x8xf32> to vector<1x8x8xf32>
    %49 = vector.broadcast %48 : vector<1x8x8xf32> to vector<2x8x8xf32>
    %50 = arith.addf %47, %49 : vector<2x8x8xf32>
    %cst_25 = arith.constant dense<0xFF800000> : vector<2x8xf32>
    %51 = vector.multi_reduction <maximumf>, %50, %cst_25 [2] : vector<2x8x8xf32> to vector<2x8xf32>
    %52 = vector.shape_cast %51 : vector<2x8xf32> to vector<2x8x1xf32>
    %53 = vector.broadcast %52 : vector<2x8x1xf32> to vector<2x8x8xf32>
    %54 = arith.subf %50, %53 : vector<2x8x8xf32>
    %55 = math.exp %54 : vector<2x8x8xf32>
    %cst_26 = arith.constant dense<0.000000e+00> : vector<2x8xf32>
    %56 = vector.multi_reduction <add>, %55, %cst_26 [2] : vector<2x8x8xf32> to vector<2x8xf32>
    %57 = vector.shape_cast %56 : vector<2x8xf32> to vector<2x8x1xf32>
    %58 = tpu.reciprocal %57 {approx = true} : vector<2x8x1xf32> -> vector<2x8x1xf32>
    %59 = vector.broadcast %58 : vector<2x8x1xf32> to vector<2x8x8xf32>
    %60 = arith.mulf %55, %59 : vector<2x8x8xf32>
    %61 = arith.truncf %60 : vector<2x8x8xf32> to vector<2x8x8xbf16>
    "tpu.trace_start"() <{level = 10 : i32, message = "bqk,bkd->bqd"}> : () -> ()
    %cst_27 = arith.constant dense<0.000000e+00> : vector<2x8x32xf32>
    %62 = tpu.matmul %61, %46, %cst_27 {dimension_numbers = #tpu.dot_dimension_numbers<[2], [1], [1], [2], [0, 0, 0, 1, 1, 2], [0], [0]>} : vector<2x8x8xbf16>, vector<2x8x32xbf16>, vector<2x8x32xf32> -> vector<2x8x32xf32>
    "tpu.trace_stop"() : () -> ()
    %63 = vector.shape_cast %62 : vector<2x8x32xf32> to vector<16x32xf32>
    %64 = arith.truncf %63 : vector<16x32xf32> to vector<16x32xbf16>
    %65 = vector.extract_strided_slice %38 {offsets = [0, 0], sizes = [32, 128], strides = [1, 1]} : vector<128x128xbf16> to vector<32x128xbf16>
    %cst_28 = arith.constant dense<0.000000e+00> : vector<16x128xf32>
    %66 = tpu.matmul %64, %65, %cst_28 {dimension_numbers = #tpu.dot_dimension_numbers<[1], [0], [0], [1], [0, 0, 1, 1], [], []>} : vector<16x32xbf16>, vector<32x128xbf16>, vector<16x128xf32> -> vector<16x128xf32>
    %67 = arith.addf %43, %66 : vector<16x128xf32>
    %68 = vector.extract_strided_slice %30 {offsets = [0, 0, 32], sizes = [2, 8, 32], strides = [1, 1, 1]} : vector<2x8x128xbf16> to vector<2x8x32xbf16>
    %69 = vector.extract_strided_slice %33 {offsets = [0, 0, 32], sizes = [2, 8, 32], strides = [1, 1, 1]} : vector<2x8x128xbf16> to vector<2x8x32xbf16>
    %70 = vector.extract_strided_slice %36 {offsets = [0, 0, 32], sizes = [2, 8, 32], strides = [1, 1, 1]} : vector<2x8x128xbf16> to vector<2x8x32xbf16>
    "tpu.trace_start"() <{level = 10 : i32, message = "bqd,bkd->bqk"}> : () -> ()
    %cst_29 = arith.constant dense<0.000000e+00> : vector<2x8x8xf32>
    %71 = tpu.matmul %68, %69, %cst_29 {dimension_numbers = #tpu.dot_dimension_numbers<[2], [2], [1], [1], [0, 0, 0, 1, 1, 1], [0], [0]>} : vector<2x8x32xbf16>, vector<2x8x32xbf16>, vector<2x8x8xf32> -> vector<2x8x8xf32>
    "tpu.trace_stop"() : () -> ()
    %72 = vector.shape_cast %17 : vector<8x8xf32> to vector<1x8x8xf32>
    %73 = vector.broadcast %72 : vector<1x8x8xf32> to vector<2x8x8xf32>
    %74 = arith.addf %71, %73 : vector<2x8x8xf32>
    %cst_30 = arith.constant dense<0xFF800000> : vector<2x8xf32>
    %75 = vector.multi_reduction <maximumf>, %74, %cst_30 [2] : vector<2x8x8xf32> to vector<2x8xf32>
    %76 = vector.shape_cast %75 : vector<2x8xf32> to vector<2x8x1xf32>
    %77 = vector.broadcast %76 : vector<2x8x1xf32> to vector<2x8x8xf32>
    %78 = arith.subf %74, %77 : vector<2x8x8xf32>
    %79 = math.exp %78 : vector<2x8x8xf32>
    %cst_31 = arith.constant dense<0.000000e+00> : vector<2x8xf32>
    %80 = vector.multi_reduction <add>, %79, %cst_31 [2] : vector<2x8x8xf32> to vector<2x8xf32>
    %81 = vector.shape_cast %80 : vector<2x8xf32> to vector<2x8x1xf32>
    %82 = tpu.reciprocal %81 {approx = true} : vector<2x8x1xf32> -> vector<2x8x1xf32>
    %83 = vector.broadcast %82 : vector<2x8x1xf32> to vector<2x8x8xf32>
    %84 = arith.mulf %79, %83 : vector<2x8x8xf32>
    %85 = arith.truncf %84 : vector<2x8x8xf32> to vector<2x8x8xbf16>
    "tpu.trace_start"() <{level = 10 : i32, message = "bqk,bkd->bqd"}> : () -> ()
    %cst_32 = arith.constant dense<0.000000e+00> : vector<2x8x32xf32>
    %86 = tpu.matmul %85, %70, %cst_32 {dimension_numbers = #tpu.dot_dimension_numbers<[2], [1], [1], [2], [0, 0, 0, 1, 1, 2], [0], [0]>} : vector<2x8x8xbf16>, vector<2x8x32xbf16>, vector<2x8x32xf32> -> vector<2x8x32xf32>
    "tpu.trace_stop"() : () -> ()
    %87 = vector.shape_cast %86 : vector<2x8x32xf32> to vector<16x32xf32>
    %88 = arith.truncf %87 : vector<16x32xf32> to vector<16x32xbf16>
    %89 = vector.extract_strided_slice %38 {offsets = [32, 0], sizes = [32, 128], strides = [1, 1]} : vector<128x128xbf16> to vector<32x128xbf16>
    %cst_33 = arith.constant dense<0.000000e+00> : vector<16x128xf32>
    %90 = tpu.matmul %88, %89, %cst_33 {dimension_numbers = #tpu.dot_dimension_numbers<[1], [0], [0], [1], [0, 0, 1, 1], [], []>} : vector<16x32xbf16>, vector<32x128xbf16>, vector<16x128xf32> -> vector<16x128xf32>
    %91 = arith.addf %67, %90 : vector<16x128xf32>
    %92 = vector.extract_strided_slice %30 {offsets = [0, 0, 64], sizes = [2, 8, 32], strides = [1, 1, 1]} : vector<2x8x128xbf16> to vector<2x8x32xbf16>
    %93 = vector.extract_strided_slice %33 {offsets = [0, 0, 64], sizes = [2, 8, 32], strides = [1, 1, 1]} : vector<2x8x128xbf16> to vector<2x8x32xbf16>
    %94 = vector.extract_strided_slice %36 {offsets = [0, 0, 64], sizes = [2, 8, 32], strides = [1, 1, 1]} : vector<2x8x128xbf16> to vector<2x8x32xbf16>
    "tpu.trace_start"() <{level = 10 : i32, message = "bqd,bkd->bqk"}> : () -> ()
    %cst_34 = arith.constant dense<0.000000e+00> : vector<2x8x8xf32>
    %95 = tpu.matmul %92, %93, %cst_34 {dimension_numbers = #tpu.dot_dimension_numbers<[2], [2], [1], [1], [0, 0, 0, 1, 1, 1], [0], [0]>} : vector<2x8x32xbf16>, vector<2x8x32xbf16>, vector<2x8x8xf32> -> vector<2x8x8xf32>
    "tpu.trace_stop"() : () -> ()
    %96 = vector.shape_cast %17 : vector<8x8xf32> to vector<1x8x8xf32>
    %97 = vector.broadcast %96 : vector<1x8x8xf32> to vector<2x8x8xf32>
    %98 = arith.addf %95, %97 : vector<2x8x8xf32>
    %cst_35 = arith.constant dense<0xFF800000> : vector<2x8xf32>
    %99 = vector.multi_reduction <maximumf>, %98, %cst_35 [2] : vector<2x8x8xf32> to vector<2x8xf32>
    %100 = vector.shape_cast %99 : vector<2x8xf32> to vector<2x8x1xf32>
    %101 = vector.broadcast %100 : vector<2x8x1xf32> to vector<2x8x8xf32>
    %102 = arith.subf %98, %101 : vector<2x8x8xf32>
    %103 = math.exp %102 : vector<2x8x8xf32>
    %cst_36 = arith.constant dense<0.000000e+00> : vector<2x8xf32>
    %104 = vector.multi_reduction <add>, %103, %cst_36 [2] : vector<2x8x8xf32> to vector<2x8xf32>
    %105 = vector.shape_cast %104 : vector<2x8xf32> to vector<2x8x1xf32>
    %106 = tpu.reciprocal %105 {approx = true} : vector<2x8x1xf32> -> vector<2x8x1xf32>
    %107 = vector.broadcast %106 : vector<2x8x1xf32> to vector<2x8x8xf32>
    %108 = arith.mulf %103, %107 : vector<2x8x8xf32>
    %109 = arith.truncf %108 : vector<2x8x8xf32> to vector<2x8x8xbf16>
    "tpu.trace_start"() <{level = 10 : i32, message = "bqk,bkd->bqd"}> : () -> ()
    %cst_37 = arith.constant dense<0.000000e+00> : vector<2x8x32xf32>
    %110 = tpu.matmul %109, %94, %cst_37 {dimension_numbers = #tpu.dot_dimension_numbers<[2], [1], [1], [2], [0, 0, 0, 1, 1, 2], [0], [0]>} : vector<2x8x8xbf16>, vector<2x8x32xbf16>, vector<2x8x32xf32> -> vector<2x8x32xf32>
    "tpu.trace_stop"() : () -> ()
    %111 = vector.shape_cast %110 : vector<2x8x32xf32> to vector<16x32xf32>
    %112 = arith.truncf %111 : vector<16x32xf32> to vector<16x32xbf16>
    %113 = vector.extract_strided_slice %38 {offsets = [64, 0], sizes = [32, 128], strides = [1, 1]} : vector<128x128xbf16> to vector<32x128xbf16>
    %cst_38 = arith.constant dense<0.000000e+00> : vector<16x128xf32>
    %114 = tpu.matmul %112, %113, %cst_38 {dimension_numbers = #tpu.dot_dimension_numbers<[1], [0], [0], [1], [0, 0, 1, 1], [], []>} : vector<16x32xbf16>, vector<32x128xbf16>, vector<16x128xf32> -> vector<16x128xf32>
    %115 = arith.addf %91, %114 : vector<16x128xf32>
    %116 = vector.extract_strided_slice %30 {offsets = [0, 0, 96], sizes = [2, 8, 32], strides = [1, 1, 1]} : vector<2x8x128xbf16> to vector<2x8x32xbf16>
    %117 = vector.extract_strided_slice %33 {offsets = [0, 0, 96], sizes = [2, 8, 32], strides = [1, 1, 1]} : vector<2x8x128xbf16> to vector<2x8x32xbf16>
    %118 = vector.extract_strided_slice %36 {offsets = [0, 0, 96], sizes = [2, 8, 32], strides = [1, 1, 1]} : vector<2x8x128xbf16> to vector<2x8x32xbf16>
    "tpu.trace_start"() <{level = 10 : i32, message = "bqd,bkd->bqk"}> : () -> ()
    %cst_39 = arith.constant dense<0.000000e+00> : vector<2x8x8xf32>
    %119 = tpu.matmul %116, %117, %cst_39 {dimension_numbers = #tpu.dot_dimension_numbers<[2], [2], [1], [1], [0, 0, 0, 1, 1, 1], [0], [0]>} : vector<2x8x32xbf16>, vector<2x8x32xbf16>, vector<2x8x8xf32> -> vector<2x8x8xf32>
    "tpu.trace_stop"() : () -> ()
    %120 = vector.shape_cast %17 : vector<8x8xf32> to vector<1x8x8xf32>
    %121 = vector.broadcast %120 : vector<1x8x8xf32> to vector<2x8x8xf32>
    %122 = arith.addf %119, %121 : vector<2x8x8xf32>
    %cst_40 = arith.constant dense<0xFF800000> : vector<2x8xf32>
    %123 = vector.multi_reduction <maximumf>, %122, %cst_40 [2] : vector<2x8x8xf32> to vector<2x8xf32>
    %124 = vector.shape_cast %123 : vector<2x8xf32> to vector<2x8x1xf32>
    %125 = vector.broadcast %124 : vector<2x8x1xf32> to vector<2x8x8xf32>
    %126 = arith.subf %122, %125 : vector<2x8x8xf32>
    %127 = math.exp %126 : vector<2x8x8xf32>
    %cst_41 = arith.constant dense<0.000000e+00> : vector<2x8xf32>
    %128 = vector.multi_reduction <add>, %127, %cst_41 [2] : vector<2x8x8xf32> to vector<2x8xf32>
    %129 = vector.shape_cast %128 : vector<2x8xf32> to vector<2x8x1xf32>
    %130 = tpu.reciprocal %129 {approx = true} : vector<2x8x1xf32> -> vector<2x8x1xf32>
    %131 = vector.broadcast %130 : vector<2x8x1xf32> to vector<2x8x8xf32>
    %132 = arith.mulf %127, %131 : vector<2x8x8xf32>
    %133 = arith.truncf %132 : vector<2x8x8xf32> to vector<2x8x8xbf16>
    "tpu.trace_start"() <{level = 10 : i32, message = "bqk,bkd->bqd"}> : () -> ()
    %cst_42 = arith.constant dense<0.000000e+00> : vector<2x8x32xf32>
    %134 = tpu.matmul %133, %118, %cst_42 {dimension_numbers = #tpu.dot_dimension_numbers<[2], [1], [1], [2], [0, 0, 0, 1, 1, 2], [0], [0]>} : vector<2x8x8xbf16>, vector<2x8x32xbf16>, vector<2x8x32xf32> -> vector<2x8x32xf32>
    "tpu.trace_stop"() : () -> ()
    %135 = vector.shape_cast %134 : vector<2x8x32xf32> to vector<16x32xf32>
    %136 = arith.truncf %135 : vector<16x32xf32> to vector<16x32xbf16>
    %137 = vector.extract_strided_slice %38 {offsets = [96, 0], sizes = [32, 128], strides = [1, 1]} : vector<128x128xbf16> to vector<32x128xbf16>
    %cst_43 = arith.constant dense<0.000000e+00> : vector<16x128xf32>
    %138 = tpu.matmul %136, %137, %cst_43 {dimension_numbers = #tpu.dot_dimension_numbers<[1], [0], [0], [1], [0, 0, 1, 1], [], []>} : vector<16x32xbf16>, vector<32x128xbf16>, vector<16x128xf32> -> vector<16x128xf32>
    %139 = arith.addf %115, %138 : vector<16x128xf32>
    %140 = arith.addf %11, %139 : vector<16x128xf32>
    %c0_44 = arith.constant 0 : index
    %c0_45 = arith.constant 0 : index
    %c0_46 = arith.constant 0 : index
    %141 = vector.load %arg13[%c0_44, %c0_45, %c0_46] : memref<2x1x128xf32, #tpu.memory_space<vmem>>, vector<1x1x128xf32>
    %142 = vector.shape_cast %141 : vector<1x1x128xf32> to vector<1x128xf32>
    %c0_47 = arith.constant 0 : index
    %c0_48 = arith.constant 0 : index
    %c0_49 = arith.constant 0 : index
    %143 = vector.load %arg14[%c0_47, %c0_48, %c0_49] : memref<2x1x128xf32, #tpu.memory_space<vmem>>, vector<1x1x128xf32>
    %144 = vector.shape_cast %143 : vector<1x1x128xf32> to vector<1x128xf32>
    %cst_50 = arith.constant dense<0.000000e+00> : vector<16xf32>
    %145 = vector.multi_reduction <add>, %140, %cst_50 [1] : vector<16x128xf32> to vector<16xf32>
    %146 = vector.shape_cast %145 : vector<16xf32> to vector<16x1xf32>
    %cst_51 = arith.constant 1.280000e+02 : f32
    %147 = vector.broadcast %cst_51 : f32 to vector<16x1xf32>
    %148 = arith.divf %146, %147 : vector<16x1xf32>
    %149 = vector.broadcast %148 : vector<16x1xf32> to vector<16x128xf32>
    %150 = arith.subf %140, %149 : vector<16x128xf32>
    %151 = arith.mulf %150, %150 : vector<16x128xf32>
    %cst_52 = arith.constant dense<0.000000e+00> : vector<16xf32>
    %152 = vector.multi_reduction <add>, %151, %cst_52 [1] : vector<16x128xf32> to vector<16xf32>
    %153 = vector.shape_cast %152 : vector<16xf32> to vector<16x1xf32>
    %cst_53 = arith.constant 1.280000e+02 : f32
    %154 = vector.broadcast %cst_53 : f32 to vector<16x1xf32>
    %155 = arith.divf %153, %154 : vector<16x1xf32>
    %156 = vector.broadcast %148 : vector<16x1xf32> to vector<16x128xf32>
    %157 = arith.subf %140, %156 : vector<16x128xf32>
    %cst_54 = arith.constant 9.99999974E-6 : f32
    %158 = vector.broadcast %cst_54 : f32 to vector<16x1xf32>
    %159 = arith.addf %155, %158 : vector<16x1xf32>
    %160 = math.rsqrt %159 : vector<16x1xf32>
    %161 = vector.broadcast %160 : vector<16x1xf32> to vector<16x128xf32>
    %162 = arith.mulf %157, %161 : vector<16x128xf32>
    %163 = vector.broadcast %142 : vector<1x128xf32> to vector<16x128xf32>
    %164 = arith.mulf %162, %163 : vector<16x128xf32>
    %165 = vector.broadcast %144 : vector<1x128xf32> to vector<16x128xf32>
    %166 = arith.addf %164, %165 : vector<16x128xf32>
    %167 = arith.truncf %166 : vector<16x128xf32> to vector<16x128xbf16>
    %c0_55 = arith.constant 0 : index
    %c0_56 = arith.constant 0 : index
    %c0_57 = arith.constant 0 : index
    %168 = vector.load %arg9[%c0_55, %c0_56, %c0_57] : memref<2x128x256xbf16, #tpu.memory_space<vmem>>, vector<1x128x256xbf16>
    %169 = vector.shape_cast %168 : vector<1x128x256xbf16> to vector<128x256xbf16>
    %cst_58 = arith.constant dense<0.000000e+00> : vector<16x256xf32>
    %170 = tpu.matmul %167, %169, %cst_58 {dimension_numbers = #tpu.dot_dimension_numbers<[1], [0], [0], [1], [0, 0, 1, 1], [], []>} : vector<16x128xbf16>, vector<128x256xbf16>, vector<16x256xf32> -> vector<16x256xf32>
    %c0_59 = arith.constant 0 : index
    %c0_60 = arith.constant 0 : index
    %c0_61 = arith.constant 0 : index
    %171 = vector.load %arg10[%c0_59, %c0_60, %c0_61] : memref<2x1x256xf32, #tpu.memory_space<vmem>>, vector<1x1x256xf32>
    %172 = vector.shape_cast %171 : vector<1x1x256xf32> to vector<1x256xf32>
    %173 = vector.broadcast %172 : vector<1x256xf32> to vector<16x256xf32>
    %174 = arith.addf %170, %173 : vector<16x256xf32>
    %cst_62 = arith.constant 0.000000e+00 : f32
    %175 = vector.broadcast %cst_62 : f32 to vector<16x256xf32>
    %176 = arith.maximumf %174, %175 : vector<16x256xf32>
    %177 = arith.truncf %176 : vector<16x256xf32> to vector<16x256xbf16>
    %c0_63 = arith.constant 0 : index
    %c0_64 = arith.constant 0 : index
    %c0_65 = arith.constant 0 : index
    %178 = vector.load %arg11[%c0_63, %c0_64, %c0_65] : memref<2x256x128xbf16, #tpu.memory_space<vmem>>, vector<1x256x128xbf16>
    %179 = vector.shape_cast %178 : vector<1x256x128xbf16> to vector<256x128xbf16>
    %cst_66 = arith.constant dense<0.000000e+00> : vector<16x128xf32>
    %180 = tpu.matmul %177, %179, %cst_66 {dimension_numbers = #tpu.dot_dimension_numbers<[1], [0], [0], [1], [0, 0, 1, 1], [], []>} : vector<16x256xbf16>, vector<256x128xbf16>, vector<16x128xf32> -> vector<16x128xf32>
    %c0_67 = arith.constant 0 : index
    %c0_68 = arith.constant 0 : index
    %c0_69 = arith.constant 0 : index
    %181 = vector.load %arg12[%c0_67, %c0_68, %c0_69] : memref<2x1x128xf32, #tpu.memory_space<vmem>>, vector<1x1x128xf32>
    %182 = vector.shape_cast %181 : vector<1x1x128xf32> to vector<1x128xf32>
    %183 = vector.broadcast %182 : vector<1x128xf32> to vector<16x128xf32>
    %184 = arith.addf %180, %183 : vector<16x128xf32>
    %185 = arith.addf %166, %184 : vector<16x128xf32>
    %c0_70 = arith.constant 0 : index
    %c0_71 = arith.constant 0 : index
    %c0_72 = arith.constant 0 : index
    %186 = vector.load %arg15[%c0_70, %c0_71, %c0_72] : memref<2x1x128xf32, #tpu.memory_space<vmem>>, vector<1x1x128xf32>
    %187 = vector.shape_cast %186 : vector<1x1x128xf32> to vector<1x128xf32>
    %c0_73 = arith.constant 0 : index
    %c0_74 = arith.constant 0 : index
    %c0_75 = arith.constant 0 : index
    %188 = vector.load %arg16[%c0_73, %c0_74, %c0_75] : memref<2x1x128xf32, #tpu.memory_space<vmem>>, vector<1x1x128xf32>
    %189 = vector.shape_cast %188 : vector<1x1x128xf32> to vector<1x128xf32>
    %cst_76 = arith.constant dense<0.000000e+00> : vector<16xf32>
    %190 = vector.multi_reduction <add>, %185, %cst_76 [1] : vector<16x128xf32> to vector<16xf32>
    %191 = vector.shape_cast %190 : vector<16xf32> to vector<16x1xf32>
    %cst_77 = arith.constant 1.280000e+02 : f32
    %192 = vector.broadcast %cst_77 : f32 to vector<16x1xf32>
    %193 = arith.divf %191, %192 : vector<16x1xf32>
    %194 = vector.broadcast %193 : vector<16x1xf32> to vector<16x128xf32>
    %195 = arith.subf %185, %194 : vector<16x128xf32>
    %196 = arith.mulf %195, %195 : vector<16x128xf32>
    %cst_78 = arith.constant dense<0.000000e+00> : vector<16xf32>
    %197 = vector.multi_reduction <add>, %196, %cst_78 [1] : vector<16x128xf32> to vector<16xf32>
    %198 = vector.shape_cast %197 : vector<16xf32> to vector<16x1xf32>
    %cst_79 = arith.constant 1.280000e+02 : f32
    %199 = vector.broadcast %cst_79 : f32 to vector<16x1xf32>
    %200 = arith.divf %198, %199 : vector<16x1xf32>
    %201 = vector.broadcast %193 : vector<16x1xf32> to vector<16x128xf32>
    %202 = arith.subf %185, %201 : vector<16x128xf32>
    %cst_80 = arith.constant 9.99999974E-6 : f32
    %203 = vector.broadcast %cst_80 : f32 to vector<16x1xf32>
    %204 = arith.addf %200, %203 : vector<16x1xf32>
    %205 = math.rsqrt %204 : vector<16x1xf32>
    %206 = vector.broadcast %205 : vector<16x1xf32> to vector<16x128xf32>
    %207 = arith.mulf %202, %206 : vector<16x128xf32>
    %208 = vector.broadcast %187 : vector<1x128xf32> to vector<16x128xf32>
    %209 = arith.mulf %207, %208 : vector<16x128xf32>
    %210 = vector.broadcast %189 : vector<1x128xf32> to vector<16x128xf32>
    %211 = arith.addf %209, %210 : vector<16x128xf32>
    %212 = arith.truncf %211 : vector<16x128xf32> to vector<16x128xbf16>
    %c1 = arith.constant 1 : index
    %c0_81 = arith.constant 0 : index
    %c0_82 = arith.constant 0 : index
    %213 = vector.load %arg5[%c1, %c0_81, %c0_82] : memref<2x128x384xbf16, #tpu.memory_space<vmem>>, vector<1x128x384xbf16>
    %214 = vector.shape_cast %213 : vector<1x128x384xbf16> to vector<128x384xbf16>
    %cst_83 = arith.constant dense<0.000000e+00> : vector<16x384xf32>
    %215 = tpu.matmul %212, %214, %cst_83 {dimension_numbers = #tpu.dot_dimension_numbers<[1], [0], [0], [1], [0, 0, 1, 1], [], []>} : vector<16x128xbf16>, vector<128x384xbf16>, vector<16x384xf32> -> vector<16x384xf32>
    %c1_84 = arith.constant 1 : index
    %c0_85 = arith.constant 0 : index
    %c0_86 = arith.constant 0 : index
    %216 = vector.load %arg6[%c1_84, %c0_85, %c0_86] : memref<2x1x384xf32, #tpu.memory_space<vmem>>, vector<1x1x384xf32>
    %217 = vector.shape_cast %216 : vector<1x1x384xf32> to vector<1x384xf32>
    %218 = vector.broadcast %217 : vector<1x384xf32> to vector<16x384xf32>
    %219 = arith.addf %215, %218 : vector<16x384xf32>
    %220 = vector.extract_strided_slice %219 {offsets = [0, 0], sizes = [16, 128], strides = [1, 1]} : vector<16x384xf32> to vector<16x128xf32>
    %cst_87 = arith.constant 0.176776692 : f32
    %221 = vector.broadcast %cst_87 : f32 to vector<16x128xf32>
    %222 = arith.mulf %220, %221 : vector<16x128xf32>
    %223 = vector.shape_cast %222 : vector<16x128xf32> to vector<2x8x128xf32>
    %224 = arith.truncf %223 : vector<2x8x128xf32> to vector<2x8x128xbf16>
    %225 = vector.extract_strided_slice %219 {offsets = [0, 128], sizes = [16, 128], strides = [1, 1]} : vector<16x384xf32> to vector<16x128xf32>
    %226 = vector.shape_cast %225 : vector<16x128xf32> to vector<2x8x128xf32>
    %227 = arith.truncf %226 : vector<2x8x128xf32> to vector<2x8x128xbf16>
    %228 = vector.extract_strided_slice %219 {offsets = [0, 256], sizes = [16, 128], strides = [1, 1]} : vector<16x384xf32> to vector<16x128xf32>
    %229 = vector.shape_cast %228 : vector<16x128xf32> to vector<2x8x128xf32>
    %230 = arith.truncf %229 : vector<2x8x128xf32> to vector<2x8x128xbf16>
    %c1_88 = arith.constant 1 : index
    %c0_89 = arith.constant 0 : index
    %c0_90 = arith.constant 0 : index
    %231 = vector.load %arg7[%c1_88, %c0_89, %c0_90] : memref<2x128x128xbf16, #tpu.memory_space<vmem>>, vector<1x128x128xbf16>
    %232 = vector.shape_cast %231 : vector<1x128x128xbf16> to vector<128x128xbf16>
    %cst_91 = arith.constant 0.000000e+00 : f32
    %233 = vector.broadcast %cst_91 : f32 to vector<16x128xf32>
    %c1_92 = arith.constant 1 : index
    %c0_93 = arith.constant 0 : index
    %c0_94 = arith.constant 0 : index
    %234 = vector.load %arg8[%c1_92, %c0_93, %c0_94] : memref<2x1x128xf32, #tpu.memory_space<vmem>>, vector<1x1x128xf32>
    %235 = vector.shape_cast %234 : vector<1x1x128xf32> to vector<1x128xf32>
    %236 = vector.broadcast %235 : vector<1x128xf32> to vector<16x128xf32>
    %237 = arith.addf %233, %236 : vector<16x128xf32>
    %238 = vector.extract_strided_slice %224 {offsets = [0, 0, 0], sizes = [2, 8, 32], strides = [1, 1, 1]} : vector<2x8x128xbf16> to vector<2x8x32xbf16>
    %239 = vector.extract_strided_slice %227 {offsets = [0, 0, 0], sizes = [2, 8, 32], strides = [1, 1, 1]} : vector<2x8x128xbf16> to vector<2x8x32xbf16>
    %240 = vector.extract_strided_slice %230 {offsets = [0, 0, 0], sizes = [2, 8, 32], strides = [1, 1, 1]} : vector<2x8x128xbf16> to vector<2x8x32xbf16>
    "tpu.trace_start"() <{level = 10 : i32, message = "bqd,bkd->bqk"}> : () -> ()
    %cst_95 = arith.constant dense<0.000000e+00> : vector<2x8x8xf32>
    %241 = tpu.matmul %238, %239, %cst_95 {dimension_numbers = #tpu.dot_dimension_numbers<[2], [2], [1], [1], [0, 0, 0, 1, 1, 1], [0], [0]>} : vector<2x8x32xbf16>, vector<2x8x32xbf16>, vector<2x8x8xf32> -> vector<2x8x8xf32>
    "tpu.trace_stop"() : () -> ()
    %242 = vector.shape_cast %17 : vector<8x8xf32> to vector<1x8x8xf32>
    %243 = vector.broadcast %242 : vector<1x8x8xf32> to vector<2x8x8xf32>
    %244 = arith.addf %241, %243 : vector<2x8x8xf32>
    %cst_96 = arith.constant dense<0xFF800000> : vector<2x8xf32>
    %245 = vector.multi_reduction <maximumf>, %244, %cst_96 [2] : vector<2x8x8xf32> to vector<2x8xf32>
    %246 = vector.shape_cast %245 : vector<2x8xf32> to vector<2x8x1xf32>
    %247 = vector.broadcast %246 : vector<2x8x1xf32> to vector<2x8x8xf32>
    %248 = arith.subf %244, %247 : vector<2x8x8xf32>
    %249 = math.exp %248 : vector<2x8x8xf32>
    %cst_97 = arith.constant dense<0.000000e+00> : vector<2x8xf32>
    %250 = vector.multi_reduction <add>, %249, %cst_97 [2] : vector<2x8x8xf32> to vector<2x8xf32>
    %251 = vector.shape_cast %250 : vector<2x8xf32> to vector<2x8x1xf32>
    %252 = tpu.reciprocal %251 {approx = true} : vector<2x8x1xf32> -> vector<2x8x1xf32>
    %253 = vector.broadcast %252 : vector<2x8x1xf32> to vector<2x8x8xf32>
    %254 = arith.mulf %249, %253 : vector<2x8x8xf32>
    %255 = arith.truncf %254 : vector<2x8x8xf32> to vector<2x8x8xbf16>
    "tpu.trace_start"() <{level = 10 : i32, message = "bqk,bkd->bqd"}> : () -> ()
    %cst_98 = arith.constant dense<0.000000e+00> : vector<2x8x32xf32>
    %256 = tpu.matmul %255, %240, %cst_98 {dimension_numbers = #tpu.dot_dimension_numbers<[2], [1], [1], [2], [0, 0, 0, 1, 1, 2], [0], [0]>} : vector<2x8x8xbf16>, vector<2x8x32xbf16>, vector<2x8x32xf32> -> vector<2x8x32xf32>
    "tpu.trace_stop"() : () -> ()
    %257 = vector.shape_cast %256 : vector<2x8x32xf32> to vector<16x32xf32>
    %258 = arith.truncf %257 : vector<16x32xf32> to vector<16x32xbf16>
    %259 = vector.extract_strided_slice %232 {offsets = [0, 0], sizes = [32, 128], strides = [1, 1]} : vector<128x128xbf16> to vector<32x128xbf16>
    %cst_99 = arith.constant dense<0.000000e+00> : vector<16x128xf32>
    %260 = tpu.matmul %258, %259, %cst_99 {dimension_numbers = #tpu.dot_dimension_numbers<[1], [0], [0], [1], [0, 0, 1, 1], [], []>} : vector<16x32xbf16>, vector<32x128xbf16>, vector<16x128xf32> -> vector<16x128xf32>
    %261 = arith.addf %237, %260 : vector<16x128xf32>
    %262 = vector.extract_strided_slice %224 {offsets = [0, 0, 32], sizes = [2, 8, 32], strides = [1, 1, 1]} : vector<2x8x128xbf16> to vector<2x8x32xbf16>
    %263 = vector.extract_strided_slice %227 {offsets = [0, 0, 32], sizes = [2, 8, 32], strides = [1, 1, 1]} : vector<2x8x128xbf16> to vector<2x8x32xbf16>
    %264 = vector.extract_strided_slice %230 {offsets = [0, 0, 32], sizes = [2, 8, 32], strides = [1, 1, 1]} : vector<2x8x128xbf16> to vector<2x8x32xbf16>
    "tpu.trace_start"() <{level = 10 : i32, message = "bqd,bkd->bqk"}> : () -> ()
    %cst_100 = arith.constant dense<0.000000e+00> : vector<2x8x8xf32>
    %265 = tpu.matmul %262, %263, %cst_100 {dimension_numbers = #tpu.dot_dimension_numbers<[2], [2], [1], [1], [0, 0, 0, 1, 1, 1], [0], [0]>} : vector<2x8x32xbf16>, vector<2x8x32xbf16>, vector<2x8x8xf32> -> vector<2x8x8xf32>
    "tpu.trace_stop"() : () -> ()
    %266 = vector.shape_cast %17 : vector<8x8xf32> to vector<1x8x8xf32>
    %267 = vector.broadcast %266 : vector<1x8x8xf32> to vector<2x8x8xf32>
    %268 = arith.addf %265, %267 : vector<2x8x8xf32>
    %cst_101 = arith.constant dense<0xFF800000> : vector<2x8xf32>
    %269 = vector.multi_reduction <maximumf>, %268, %cst_101 [2] : vector<2x8x8xf32> to vector<2x8xf32>
    %270 = vector.shape_cast %269 : vector<2x8xf32> to vector<2x8x1xf32>
    %271 = vector.broadcast %270 : vector<2x8x1xf32> to vector<2x8x8xf32>
    %272 = arith.subf %268, %271 : vector<2x8x8xf32>
    %273 = math.exp %272 : vector<2x8x8xf32>
    %cst_102 = arith.constant dense<0.000000e+00> : vector<2x8xf32>
    %274 = vector.multi_reduction <add>, %273, %cst_102 [2] : vector<2x8x8xf32> to vector<2x8xf32>
    %275 = vector.shape_cast %274 : vector<2x8xf32> to vector<2x8x1xf32>
    %276 = tpu.reciprocal %275 {approx = true} : vector<2x8x1xf32> -> vector<2x8x1xf32>
    %277 = vector.broadcast %276 : vector<2x8x1xf32> to vector<2x8x8xf32>
    %278 = arith.mulf %273, %277 : vector<2x8x8xf32>
    %279 = arith.truncf %278 : vector<2x8x8xf32> to vector<2x8x8xbf16>
    "tpu.trace_start"() <{level = 10 : i32, message = "bqk,bkd->bqd"}> : () -> ()
    %cst_103 = arith.constant dense<0.000000e+00> : vector<2x8x32xf32>
    %280 = tpu.matmul %279, %264, %cst_103 {dimension_numbers = #tpu.dot_dimension_numbers<[2], [1], [1], [2], [0, 0, 0, 1, 1, 2], [0], [0]>} : vector<2x8x8xbf16>, vector<2x8x32xbf16>, vector<2x8x32xf32> -> vector<2x8x32xf32>
    "tpu.trace_stop"() : () -> ()
    %281 = vector.shape_cast %280 : vector<2x8x32xf32> to vector<16x32xf32>
    %282 = arith.truncf %281 : vector<16x32xf32> to vector<16x32xbf16>
    %283 = vector.extract_strided_slice %232 {offsets = [32, 0], sizes = [32, 128], strides = [1, 1]} : vector<128x128xbf16> to vector<32x128xbf16>
    %cst_104 = arith.constant dense<0.000000e+00> : vector<16x128xf32>
    %284 = tpu.matmul %282, %283, %cst_104 {dimension_numbers = #tpu.dot_dimension_numbers<[1], [0], [0], [1], [0, 0, 1, 1], [], []>} : vector<16x32xbf16>, vector<32x128xbf16>, vector<16x128xf32> -> vector<16x128xf32>
    %285 = arith.addf %261, %284 : vector<16x128xf32>
    %286 = vector.extract_strided_slice %224 {offsets = [0, 0, 64], sizes = [2, 8, 32], strides = [1, 1, 1]} : vector<2x8x128xbf16> to vector<2x8x32xbf16>
    %287 = vector.extract_strided_slice %227 {offsets = [0, 0, 64], sizes = [2, 8, 32], strides = [1, 1, 1]} : vector<2x8x128xbf16> to vector<2x8x32xbf16>
    %288 = vector.extract_strided_slice %230 {offsets = [0, 0, 64], sizes = [2, 8, 32], strides = [1, 1, 1]} : vector<2x8x128xbf16> to vector<2x8x32xbf16>
    "tpu.trace_start"() <{level = 10 : i32, message = "bqd,bkd->bqk"}> : () -> ()
    %cst_105 = arith.constant dense<0.000000e+00> : vector<2x8x8xf32>
    %289 = tpu.matmul %286, %287, %cst_105 {dimension_numbers = #tpu.dot_dimension_numbers<[2], [2], [1], [1], [0, 0, 0, 1, 1, 1], [0], [0]>} : vector<2x8x32xbf16>, vector<2x8x32xbf16>, vector<2x8x8xf32> -> vector<2x8x8xf32>
    "tpu.trace_stop"() : () -> ()
    %290 = vector.shape_cast %17 : vector<8x8xf32> to vector<1x8x8xf32>
    %291 = vector.broadcast %290 : vector<1x8x8xf32> to vector<2x8x8xf32>
    %292 = arith.addf %289, %291 : vector<2x8x8xf32>
    %cst_106 = arith.constant dense<0xFF800000> : vector<2x8xf32>
    %293 = vector.multi_reduction <maximumf>, %292, %cst_106 [2] : vector<2x8x8xf32> to vector<2x8xf32>
    %294 = vector.shape_cast %293 : vector<2x8xf32> to vector<2x8x1xf32>
    %295 = vector.broadcast %294 : vector<2x8x1xf32> to vector<2x8x8xf32>
    %296 = arith.subf %292, %295 : vector<2x8x8xf32>
    %297 = math.exp %296 : vector<2x8x8xf32>
    %cst_107 = arith.constant dense<0.000000e+00> : vector<2x8xf32>
    %298 = vector.multi_reduction <add>, %297, %cst_107 [2] : vector<2x8x8xf32> to vector<2x8xf32>
    %299 = vector.shape_cast %298 : vector<2x8xf32> to vector<2x8x1xf32>
    %300 = tpu.reciprocal %299 {approx = true} : vector<2x8x1xf32> -> vector<2x8x1xf32>
    %301 = vector.broadcast %300 : vector<2x8x1xf32> to vector<2x8x8xf32>
    %302 = arith.mulf %297, %301 : vector<2x8x8xf32>
    %303 = arith.truncf %302 : vector<2x8x8xf32> to vector<2x8x8xbf16>
    "tpu.trace_start"() <{level = 10 : i32, message = "bqk,bkd->bqd"}> : () -> ()
    %cst_108 = arith.constant dense<0.000000e+00> : vector<2x8x32xf32>
    %304 = tpu.matmul %303, %288, %cst_108 {dimension_numbers = #tpu.dot_dimension_numbers<[2], [1], [1], [2], [0, 0, 0, 1, 1, 2], [0], [0]>} : vector<2x8x8xbf16>, vector<2x8x32xbf16>, vector<2x8x32xf32> -> vector<2x8x32xf32>
    "tpu.trace_stop"() : () -> ()
    %305 = vector.shape_cast %304 : vector<2x8x32xf32> to vector<16x32xf32>
    %306 = arith.truncf %305 : vector<16x32xf32> to vector<16x32xbf16>
    %307 = vector.extract_strided_slice %232 {offsets = [64, 0], sizes = [32, 128], strides = [1, 1]} : vector<128x128xbf16> to vector<32x128xbf16>
    %cst_109 = arith.constant dense<0.000000e+00> : vector<16x128xf32>
    %308 = tpu.matmul %306, %307, %cst_109 {dimension_numbers = #tpu.dot_dimension_numbers<[1], [0], [0], [1], [0, 0, 1, 1], [], []>} : vector<16x32xbf16>, vector<32x128xbf16>, vector<16x128xf32> -> vector<16x128xf32>
    %309 = arith.addf %285, %308 : vector<16x128xf32>
    %310 = vector.extract_strided_slice %224 {offsets = [0, 0, 96], sizes = [2, 8, 32], strides = [1, 1, 1]} : vector<2x8x128xbf16> to vector<2x8x32xbf16>
    %311 = vector.extract_strided_slice %227 {offsets = [0, 0, 96], sizes = [2, 8, 32], strides = [1, 1, 1]} : vector<2x8x128xbf16> to vector<2x8x32xbf16>
    %312 = vector.extract_strided_slice %230 {offsets = [0, 0, 96], sizes = [2, 8, 32], strides = [1, 1, 1]} : vector<2x8x128xbf16> to vector<2x8x32xbf16>
    "tpu.trace_start"() <{level = 10 : i32, message = "bqd,bkd->bqk"}> : () -> ()
    %cst_110 = arith.constant dense<0.000000e+00> : vector<2x8x8xf32>
    %313 = tpu.matmul %310, %311, %cst_110 {dimension_numbers = #tpu.dot_dimension_numbers<[2], [2], [1], [1], [0, 0, 0, 1, 1, 1], [0], [0]>} : vector<2x8x32xbf16>, vector<2x8x32xbf16>, vector<2x8x8xf32> -> vector<2x8x8xf32>
    "tpu.trace_stop"() : () -> ()
    %314 = vector.shape_cast %17 : vector<8x8xf32> to vector<1x8x8xf32>
    %315 = vector.broadcast %314 : vector<1x8x8xf32> to vector<2x8x8xf32>
    %316 = arith.addf %313, %315 : vector<2x8x8xf32>
    %cst_111 = arith.constant dense<0xFF800000> : vector<2x8xf32>
    %317 = vector.multi_reduction <maximumf>, %316, %cst_111 [2] : vector<2x8x8xf32> to vector<2x8xf32>
    %318 = vector.shape_cast %317 : vector<2x8xf32> to vector<2x8x1xf32>
    %319 = vector.broadcast %318 : vector<2x8x1xf32> to vector<2x8x8xf32>
    %320 = arith.subf %316, %319 : vector<2x8x8xf32>
    %321 = math.exp %320 : vector<2x8x8xf32>
    %cst_112 = arith.constant dense<0.000000e+00> : vector<2x8xf32>
    %322 = vector.multi_reduction <add>, %321, %cst_112 [2] : vector<2x8x8xf32> to vector<2x8xf32>
    %323 = vector.shape_cast %322 : vector<2x8xf32> to vector<2x8x1xf32>
    %324 = tpu.reciprocal %323 {approx = true} : vector<2x8x1xf32> -> vector<2x8x1xf32>
    %325 = vector.broadcast %324 : vector<2x8x1xf32> to vector<2x8x8xf32>
    %326 = arith.mulf %321, %325 : vector<2x8x8xf32>
    %327 = arith.truncf %326 : vector<2x8x8xf32> to vector<2x8x8xbf16>
    "tpu.trace_start"() <{level = 10 : i32, message = "bqk,bkd->bqd"}> : () -> ()
    %cst_113 = arith.constant dense<0.000000e+00> : vector<2x8x32xf32>
    %328 = tpu.matmul %327, %312, %cst_113 {dimension_numbers = #tpu.dot_dimension_numbers<[2], [1], [1], [2], [0, 0, 0, 1, 1, 2], [0], [0]>} : vector<2x8x8xbf16>, vector<2x8x32xbf16>, vector<2x8x32xf32> -> vector<2x8x32xf32>
    "tpu.trace_stop"() : () -> ()
    %329 = vector.shape_cast %328 : vector<2x8x32xf32> to vector<16x32xf32>
    %330 = arith.truncf %329 : vector<16x32xf32> to vector<16x32xbf16>
    %331 = vector.extract_strided_slice %232 {offsets = [96, 0], sizes = [32, 128], strides = [1, 1]} : vector<128x128xbf16> to vector<32x128xbf16>
    %cst_114 = arith.constant dense<0.000000e+00> : vector<16x128xf32>
    %332 = tpu.matmul %330, %331, %cst_114 {dimension_numbers = #tpu.dot_dimension_numbers<[1], [0], [0], [1], [0, 0, 1, 1], [], []>} : vector<16x32xbf16>, vector<32x128xbf16>, vector<16x128xf32> -> vector<16x128xf32>
    %333 = arith.addf %309, %332 : vector<16x128xf32>
    %334 = arith.addf %211, %333 : vector<16x128xf32>
    %c1_115 = arith.constant 1 : index
    %c0_116 = arith.constant 0 : index
    %c0_117 = arith.constant 0 : index
    %335 = vector.load %arg13[%c1_115, %c0_116, %c0_117] : memref<2x1x128xf32, #tpu.memory_space<vmem>>, vector<1x1x128xf32>
    %336 = vector.shape_cast %335 : vector<1x1x128xf32> to vector<1x128xf32>
    %c1_118 = arith.constant 1 : index
    %c0_119 = arith.constant 0 : index
    %c0_120 = arith.constant 0 : index
    %337 = vector.load %arg14[%c1_118, %c0_119, %c0_120] : memref<2x1x128xf32, #tpu.memory_space<vmem>>, vector<1x1x128xf32>
    %338 = vector.shape_cast %337 : vector<1x1x128xf32> to vector<1x128xf32>
    %cst_121 = arith.constant dense<0.000000e+00> : vector<16xf32>
    %339 = vector.multi_reduction <add>, %334, %cst_121 [1] : vector<16x128xf32> to vector<16xf32>
    %340 = vector.shape_cast %339 : vector<16xf32> to vector<16x1xf32>
    %cst_122 = arith.constant 1.280000e+02 : f32
    %341 = vector.broadcast %cst_122 : f32 to vector<16x1xf32>
    %342 = arith.divf %340, %341 : vector<16x1xf32>
    %343 = vector.broadcast %342 : vector<16x1xf32> to vector<16x128xf32>
    %344 = arith.subf %334, %343 : vector<16x128xf32>
    %345 = arith.mulf %344, %344 : vector<16x128xf32>
    %cst_123 = arith.constant dense<0.000000e+00> : vector<16xf32>
    %346 = vector.multi_reduction <add>, %345, %cst_123 [1] : vector<16x128xf32> to vector<16xf32>
    %347 = vector.shape_cast %346 : vector<16xf32> to vector<16x1xf32>
    %cst_124 = arith.constant 1.280000e+02 : f32
    %348 = vector.broadcast %cst_124 : f32 to vector<16x1xf32>
    %349 = arith.divf %347, %348 : vector<16x1xf32>
    %350 = vector.broadcast %342 : vector<16x1xf32> to vector<16x128xf32>
    %351 = arith.subf %334, %350 : vector<16x128xf32>
    %cst_125 = arith.constant 9.99999974E-6 : f32
    %352 = vector.broadcast %cst_125 : f32 to vector<16x1xf32>
    %353 = arith.addf %349, %352 : vector<16x1xf32>
    %354 = math.rsqrt %353 : vector<16x1xf32>
    %355 = vector.broadcast %354 : vector<16x1xf32> to vector<16x128xf32>
    %356 = arith.mulf %351, %355 : vector<16x128xf32>
    %357 = vector.broadcast %336 : vector<1x128xf32> to vector<16x128xf32>
    %358 = arith.mulf %356, %357 : vector<16x128xf32>
    %359 = vector.broadcast %338 : vector<1x128xf32> to vector<16x128xf32>
    %360 = arith.addf %358, %359 : vector<16x128xf32>
    %361 = arith.truncf %360 : vector<16x128xf32> to vector<16x128xbf16>
    %c1_126 = arith.constant 1 : index
    %c0_127 = arith.constant 0 : index
    %c0_128 = arith.constant 0 : index
    %362 = vector.load %arg9[%c1_126, %c0_127, %c0_128] : memref<2x128x256xbf16, #tpu.memory_space<vmem>>, vector<1x128x256xbf16>
    %363 = vector.shape_cast %362 : vector<1x128x256xbf16> to vector<128x256xbf16>
    %cst_129 = arith.constant dense<0.000000e+00> : vector<16x256xf32>
    %364 = tpu.matmul %361, %363, %cst_129 {dimension_numbers = #tpu.dot_dimension_numbers<[1], [0], [0], [1], [0, 0, 1, 1], [], []>} : vector<16x128xbf16>, vector<128x256xbf16>, vector<16x256xf32> -> vector<16x256xf32>
    %c1_130 = arith.constant 1 : index
    %c0_131 = arith.constant 0 : index
    %c0_132 = arith.constant 0 : index
    %365 = vector.load %arg10[%c1_130, %c0_131, %c0_132] : memref<2x1x256xf32, #tpu.memory_space<vmem>>, vector<1x1x256xf32>
    %366 = vector.shape_cast %365 : vector<1x1x256xf32> to vector<1x256xf32>
    %367 = vector.broadcast %366 : vector<1x256xf32> to vector<16x256xf32>
    %368 = arith.addf %364, %367 : vector<16x256xf32>
    %cst_133 = arith.constant 0.000000e+00 : f32
    %369 = vector.broadcast %cst_133 : f32 to vector<16x256xf32>
    %370 = arith.maximumf %368, %369 : vector<16x256xf32>
    %371 = arith.truncf %370 : vector<16x256xf32> to vector<16x256xbf16>
    %c1_134 = arith.constant 1 : index
    %c0_135 = arith.constant 0 : index
    %c0_136 = arith.constant 0 : index
    %372 = vector.load %arg11[%c1_134, %c0_135, %c0_136] : memref<2x256x128xbf16, #tpu.memory_space<vmem>>, vector<1x256x128xbf16>
    %373 = vector.shape_cast %372 : vector<1x256x128xbf16> to vector<256x128xbf16>
    %cst_137 = arith.constant dense<0.000000e+00> : vector<16x128xf32>
    %374 = tpu.matmul %371, %373, %cst_137 {dimension_numbers = #tpu.dot_dimension_numbers<[1], [0], [0], [1], [0, 0, 1, 1], [], []>} : vector<16x256xbf16>, vector<256x128xbf16>, vector<16x128xf32> -> vector<16x128xf32>
    %c1_138 = arith.constant 1 : index
    %c0_139 = arith.constant 0 : index
    %c0_140 = arith.constant 0 : index
    %375 = vector.load %arg12[%c1_138, %c0_139, %c0_140] : memref<2x1x128xf32, #tpu.memory_space<vmem>>, vector<1x1x128xf32>
    %376 = vector.shape_cast %375 : vector<1x1x128xf32> to vector<1x128xf32>
    %377 = vector.broadcast %376 : vector<1x128xf32> to vector<16x128xf32>
    %378 = arith.addf %374, %377 : vector<16x128xf32>
    %379 = arith.addf %360, %378 : vector<16x128xf32>
    %c1_141 = arith.constant 1 : index
    %c0_142 = arith.constant 0 : index
    %c0_143 = arith.constant 0 : index
    %380 = vector.load %arg15[%c1_141, %c0_142, %c0_143] : memref<2x1x128xf32, #tpu.memory_space<vmem>>, vector<1x1x128xf32>
    %381 = vector.shape_cast %380 : vector<1x1x128xf32> to vector<1x128xf32>
    %c1_144 = arith.constant 1 : index
    %c0_145 = arith.constant 0 : index
    %c0_146 = arith.constant 0 : index
    %382 = vector.load %arg16[%c1_144, %c0_145, %c0_146] : memref<2x1x128xf32, #tpu.memory_space<vmem>>, vector<1x1x128xf32>
    %383 = vector.shape_cast %382 : vector<1x1x128xf32> to vector<1x128xf32>
    %cst_147 = arith.constant dense<0.000000e+00> : vector<16xf32>
    %384 = vector.multi_reduction <add>, %379, %cst_147 [1] : vector<16x128xf32> to vector<16xf32>
    %385 = vector.shape_cast %384 : vector<16xf32> to vector<16x1xf32>
    %cst_148 = arith.constant 1.280000e+02 : f32
    %386 = vector.broadcast %cst_148 : f32 to vector<16x1xf32>
    %387 = arith.divf %385, %386 : vector<16x1xf32>
    %388 = vector.broadcast %387 : vector<16x1xf32> to vector<16x128xf32>
    %389 = arith.subf %379, %388 : vector<16x128xf32>
    %390 = arith.mulf %389, %389 : vector<16x128xf32>
    %cst_149 = arith.constant dense<0.000000e+00> : vector<16xf32>
    %391 = vector.multi_reduction <add>, %390, %cst_149 [1] : vector<16x128xf32> to vector<16xf32>
    %392 = vector.shape_cast %391 : vector<16xf32> to vector<16x1xf32>
    %cst_150 = arith.constant 1.280000e+02 : f32
    %393 = vector.broadcast %cst_150 : f32 to vector<16x1xf32>
    %394 = arith.divf %392, %393 : vector<16x1xf32>
    %395 = vector.broadcast %387 : vector<16x1xf32> to vector<16x128xf32>
    %396 = arith.subf %379, %395 : vector<16x128xf32>
    %cst_151 = arith.constant 9.99999974E-6 : f32
    %397 = vector.broadcast %cst_151 : f32 to vector<16x1xf32>
    %398 = arith.addf %394, %397 : vector<16x1xf32>
    %399 = math.rsqrt %398 : vector<16x1xf32>
    %400 = vector.broadcast %399 : vector<16x1xf32> to vector<16x128xf32>
    %401 = arith.mulf %396, %400 : vector<16x128xf32>
    %402 = vector.broadcast %381 : vector<1x128xf32> to vector<16x128xf32>
    %403 = arith.mulf %401, %402 : vector<16x128xf32>
    %404 = vector.broadcast %383 : vector<1x128xf32> to vector<16x128xf32>
    %405 = arith.addf %403, %404 : vector<16x128xf32>
    %c0_152 = arith.constant 0 : index
    %c0_153 = arith.constant 0 : index
    %406 = vector.load %arg17[%c0_152, %c0_153] : memref<16x128xf32, #tpu.memory_space<vmem>>, vector<16x128xf32>
    tpu.vector_store %arg17[%c0_152, %c0_153], %405 {strides = array<i32>} : memref<16x128xf32, #tpu.memory_space<vmem>>, vector<16x128xf32>,
    return
  }
  func.func @transform_0(%arg0: i32) -> (i32, i32) {
    %c0_i32 = arith.constant 0 : i32
    %c0_i32_0 = arith.constant 0 : i32
    return %arg0, %c0_i32 : i32, i32
  }
  func.func @transform_1(%arg0: i32) -> (i32, i32) {
    %c0_i32 = arith.constant 0 : i32
    %c0_i32_0 = arith.constant 0 : i32
    %c0_i32_1 = arith.constant 0 : i32
    return %c0_i32, %c0_i32_0 : i32, i32
  }
  func.func @transform_2(%arg0: i32) -> (i32, i32) {
    %c0_i32 = arith.constant 0 : i32
    %c0_i32_0 = arith.constant 0 : i32
    %c0_i32_1 = arith.constant 0 : i32
    return %c0_i32, %c0_i32_0 : i32, i32
  }
  func.func @transform_3(%arg0: i32) -> (i32, i32) {
    %c0_i32 = arith.constant 0 : i32
    %c0_i32_0 = arith.constant 0 : i32
    %c0_i32_1 = arith.constant 0 : i32
    return %c0_i32, %c0_i32_0 : i32, i32
  }
  func.func @transform_4(%arg0: i32) -> (i32, i32, i32) {
    %c0_i32 = arith.constant 0 : i32
    %c0_i32_0 = arith.constant 0 : i32
    %c0_i32_1 = arith.constant 0 : i32
    %c0_i32_2 = arith.constant 0 : i32
    return %c0_i32, %c0_i32_0, %c0_i32_1 : i32, i32, i32
  }
  func.func @transform_5(%arg0: i32) -> (i32, i32, i32) {
    %c0_i32 = arith.constant 0 : i32
    %c0_i32_0 = arith.constant 0 : i32
    %c0_i32_1 = arith.constant 0 : i32
    %c0_i32_2 = arith.constant 0 : i32
    return %c0_i32, %c0_i32_0, %c0_i32_1 : i32, i32, i32
  }
  func.func @transform_6(%arg0: i32) -> (i32, i32, i32) {
    %c0_i32 = arith.constant 0 : i32
    %c0_i32_0 = arith.constant 0 : i32
    %c0_i32_1 = arith.constant 0 : i32
    %c0_i32_2 = arith.constant 0 : i32
    return %c0_i32, %c0_i32_0, %c0_i32_1 : i32, i32, i32
  }
  func.func @transform_7(%arg0: i32) -> (i32, i32, i32) {
    %c0_i32 = arith.constant 0 : i32
    %c0_i32_0 = arith.constant 0 : i32
    %c0_i32_1 = arith.constant 0 : i32
    %c0_i32_2 = arith.constant 0 : i32
    return %c0_i32, %c0_i32_0, %c0_i32_1 : i32, i32, i32
  }
  func.func @transform_8(%arg0: i32) -> (i32, i32, i32) {
    %c0_i32 = arith.constant 0 : i32
    %c0_i32_0 = arith.constant 0 : i32
    %c0_i32_1 = arith.constant 0 : i32
    %c0_i32_2 = arith.constant 0 : i32
    return %c0_i32, %c0_i32_0, %c0_i32_1 : i32, i32, i32
  }
  func.func @transform_9(%arg0: i32) -> (i32, i32, i32) {
    %c0_i32 = arith.constant 0 : i32
    %c0_i32_0 = arith.constant 0 : i32
    %c0_i32_1 = arith.constant 0 : i32
    %c0_i32_2 = arith.constant 0 : i32
    return %c0_i32, %c0_i32_0, %c0_i32_1 : i32, i32, i32
  }
  func.func @transform_10(%arg0: i32) -> (i32, i32, i32) {
    %c0_i32 = arith.constant 0 : i32
    %c0_i32_0 = arith.constant 0 : i32
    %c0_i32_1 = arith.constant 0 : i32
    %c0_i32_2 = arith.constant 0 : i32
    return %c0_i32, %c0_i32_0, %c0_i32_1 : i32, i32, i32
  }
  func.func @transform_11(%arg0: i32) -> (i32, i32, i32) {
    %c0_i32 = arith.constant 0 : i32
    %c0_i32_0 = arith.constant 0 : i32
    %c0_i32_1 = arith.constant 0 : i32
    %c0_i32_2 = arith.constant 0 : i32
    return %c0_i32, %c0_i32_0, %c0_i32_1 : i32, i32, i32
  }
  func.func @transform_12(%arg0: i32) -> (i32, i32, i32) {
    %c0_i32 = arith.constant 0 : i32
    %c0_i32_0 = arith.constant 0 : i32
    %c0_i32_1 = arith.constant 0 : i32
    %c0_i32_2 = arith.constant 0 : i32
    return %c0_i32, %c0_i32_0, %c0_i32_1 : i32, i32, i32
  }
  func.func @transform_13(%arg0: i32) -> (i32, i32, i32) {
    %c0_i32 = arith.constant 0 : i32
    %c0_i32_0 = arith.constant 0 : i32
    %c0_i32_1 = arith.constant 0 : i32
    %c0_i32_2 = arith.constant 0 : i32
    return %c0_i32, %c0_i32_0, %c0_i32_1 : i32, i32, i32
  }
  func.func @transform_14(%arg0: i32) -> (i32, i32, i32) {
    %c0_i32 = arith.constant 0 : i32
    %c0_i32_0 = arith.constant 0 : i32
    %c0_i32_1 = arith.constant 0 : i32
    %c0_i32_2 = arith.constant 0 : i32
    return %c0_i32, %c0_i32_0, %c0_i32_1 : i32, i32, i32
  }
  func.func @transform_15(%arg0: i32) -> (i32, i32, i32) {
    %c0_i32 = arith.constant 0 : i32
    %c0_i32_0 = arith.constant 0 : i32
    %c0_i32_1 = arith.constant 0 : i32
    %c0_i32_2 = arith.constant 0 : i32
    return %c0_i32, %c0_i32_0, %c0_i32_1 : i32, i32, i32
  }
  func.func @transform_16(%arg0: i32) -> (i32, i32) {
    %c0_i32 = arith.constant 0 : i32
    %c0_i32_0 = arith.constant 0 : i32
    return %arg0, %c0_i32 : i32, i32
  }
}

</mosaic_0001>

<llo_original>
// kernel: tpu_custom_call.1
$region0: #{tpu_custom_call.1}
  #allocation0 [shape = 'u32[]', space=smem, size = 0x4, offset = 0x4, fixed_abs, tag = 'smem constant byte address 0x4 - core index']
  #allocation1 [shape = 'u32[144,128]{1,0:T(1,128)}', space=vmem, size = 0x12000, scoped, tag = 'internal scratch']
  %s0 = inlined_call_operand.vmem [shape: f32[16,4], index: 0, kind: input, shape index: {}]
  %s1 = inlined_call_operand.vmem [shape: f32[4,128], index: 1, kind: input, shape index: {}]
  %s2 = inlined_call_operand.vmem [shape: f32[1,128], index: 2, kind: input, shape index: {}]
  %s3 = inlined_call_operand.vmem [shape: f32[8,128], index: 3, kind: input, shape index: {}]
  %s4 = inlined_call_operand.hbm [shape: bf16[2,128,384], index: 4, kind: input, shape index: {}]
  %s5 = inlined_call_operand.vmem [shape: f32[2,1,384], index: 5, kind: input, shape index: {}]
  %s6 = inlined_call_operand.hbm [shape: bf16[2,128,128], index: 6, kind: input, shape index: {}]
  %s7 = inlined_call_operand.vmem [shape: f32[2,1,128], index: 7, kind: input, shape index: {}]
  %s8 = inlined_call_operand.hbm [shape: bf16[2,128,256], index: 8, kind: input, shape index: {}]
  %s9 = inlined_call_operand.vmem [shape: f32[2,1,256], index: 9, kind: input, shape index: {}]
  %s10 = inlined_call_operand.hbm [shape: bf16[2,256,128], index: 10, kind: input, shape index: {}]
  %s11 = inlined_call_operand.vmem [shape: f32[2,1,128], index: 11, kind: input, shape index: {}]
  %s12 = inlined_call_operand.vmem [shape: f32[2,1,128], index: 12, kind: input, shape index: {}]
  %s13 = inlined_call_operand.vmem [shape: f32[2,1,128], index: 13, kind: input, shape index: {}]
  %s14 = inlined_call_operand.vmem [shape: f32[2,1,128], index: 14, kind: input, shape index: {}]
  %s15 = inlined_call_operand.vmem [shape: f32[2,1,128], index: 15, kind: input, shape index: {}]
  %s16 = inlined_call_operand.hbm [shape: f32[16,128], index: 16, kind: output, shape index: {}]
  %s17 = sld [smem:[#allocation0]]
  $region90: #{tpu_custom_call.1} parent=0
    _
  %s19 = ssub.s32 1, %s17
  %s20 = scalar_select 0, %s19, %s17
  $region1: #{tpu_custom_call.1} parent=0
    #allocation2 [shape = 'u8[196608]{0}', space=vmem, size = 0x30000, scoped, tag = 'input window, operand 4, single buffered']
    #allocation3 [shape = 's32[1]{0}', space=sflag, size = 0x4, scoped, tag = 'scoped memory for tpu_custom_call.1']
    #allocation4 [shape = 's32[1]{0}', space=sflag, size = 0x4, scoped, tag = 'scoped memory for tpu_custom_call.1']
    #allocation5 [shape = 'u8[65536]{0}', space=vmem, size = 0x10000, scoped, tag = 'input window, operand 6, single buffered']
    #allocation6 [shape = 's32[1]{0}', space=sflag, size = 0x4, scoped, tag = 'scoped memory for tpu_custom_call.1']
    #allocation7 [shape = 'u8[131072]{0}', space=vmem, size = 0x20000, scoped, tag = 'input window, operand 8, single buffered']
    #allocation8 [shape = 'u8[131072]{0}', space=vmem, size = 0x20000, scoped, tag = 'input window, operand 10, single buffered']
    #allocation9 [shape = 's32[1]{0}', space=sflag, size = 0x4, scoped, tag = 'scoped memory for tpu_custom_call.1']
    #allocation10 [shape = 'u8[8192]{0}', space=vmem, size = 0x2000, scoped, tag = 'output window, operand 0, single buffered']
    %21 = vsyncpa [#allocation3], 0
    %22 = vsyncpa [#allocation6], 0
    %23 = vsyncpa [#allocation9], 0
    %24 = vsyncpa [#allocation4], 0
    // Predicated region
    $region2: #{tpu_custom_call.1} parent=1 // pred_check
      _
    $region3: #{tpu_custom_call.1} parent=1 // pred_check_branch
      %26 = sbr.rel (0) target = $region5
    $region4: #{tpu_custom_call.1} parent=1 // pred_region
      _
    $region5: #{tpu_custom_call.1} parent=1 // pred_fallthru
      _
    // Predicated region
    $region6: #{tpu_custom_call.1} parent=1 // pred_check
      _
    $region7: #{tpu_custom_call.1} parent=1 // pred_check_branch
      %28 = sbr.rel (0) target = $region9
    $region8: #{tpu_custom_call.1} parent=1 // pred_region
      _
    $region9: #{tpu_custom_call.1} parent=1 // pred_fallthru
      _
    // Predicated region
    $region10: #{tpu_custom_call.1} parent=1 // pred_check
      _
    $region11: #{tpu_custom_call.1} parent=1 // pred_check_branch
      %30 = sbr.rel (0) target = $region13
    $region12: #{tpu_custom_call.1} parent=1 // pred_region
      _
    $region13: #{tpu_custom_call.1} parent=1 // pred_fallthru
      _
    // Predicated region
    $region14: #{tpu_custom_call.1} parent=1 // pred_check
      _
    $region15: #{tpu_custom_call.1} parent=1 // pred_check_branch
      %32 = sbr.rel (0) target = $region17
    $region16: #{tpu_custom_call.1} parent=1 // pred_region
      _
    $region17: #{tpu_custom_call.1} parent=1 // pred_fallthru
      _
    // Predicated region
    $region18: #{tpu_custom_call.1} parent=1 // pred_check
      _
    $region19: #{tpu_custom_call.1} parent=1 // pred_check_branch
      %34 = sbr.rel (0) target = $region21
    $region20: #{tpu_custom_call.1} parent=1 // pred_region
      %s36 = ssub.s32 6144, 6144
      %37 = vsyncadd [#allocation3], %s36
      %s38 = sshll.u32 [#allocation2], 4
      %s39 = int_to_ptr.vmem [resolvable:$true] %s38
      %44 = dma.hbm_to_vmem [thread:$0]  %s4, 6144, %s39, [#allocation3], 192, 192, 12
    $region21: #{tpu_custom_call.1} parent=1 // pred_fallthru
      _
    // Predicated region
    $region22: #{tpu_custom_call.1} parent=1 // pred_check
      _
    $region23: #{tpu_custom_call.1} parent=1 // pred_check_branch
      %46 = sbr.rel (0) target = $region25
    $region24: #{tpu_custom_call.1} parent=1 // pred_region
      _
    $region25: #{tpu_custom_call.1} parent=1 // pred_fallthru
      _
    // Predicated region
    $region26: #{tpu_custom_call.1} parent=1 // pred_check
      _
    $region27: #{tpu_custom_call.1} parent=1 // pred_check_branch
      %48 = sbr.rel (0) target = $region29
    $region28: #{tpu_custom_call.1} parent=1 // pred_region
      %s50 = ssub.s32 2048, 2048
      %51 = vsyncadd [#allocation6], %s50
      %s52 = sshll.u32 [#allocation5], 4
      %s53 = int_to_ptr.vmem [resolvable:$true] %s52
      %58 = dma.hbm_to_vmem [thread:$0]  %s6, 2048, %s53, [#allocation6], 64, 64, 4
    $region29: #{tpu_custom_call.1} parent=1 // pred_fallthru
      _
    // Predicated region
    $region30: #{tpu_custom_call.1} parent=1 // pred_check
      _
    $region31: #{tpu_custom_call.1} parent=1 // pred_check_branch
      %60 = sbr.rel (0) target = $region33
    $region32: #{tpu_custom_call.1} parent=1 // pred_region
      _
    $region33: #{tpu_custom_call.1} parent=1 // pred_fallthru
      _
    // Predicated region
    $region34: #{tpu_custom_call.1} parent=1 // pred_check
      _
    $region35: #{tpu_custom_call.1} parent=1 // pred_check_branch
      %62 = sbr.rel (0) target = $region37
    $region36: #{tpu_custom_call.1} parent=1 // pred_region
      %s64 = ssub.s32 4096, 4096
      %65 = vsyncadd [#allocation6], %s64
      %s66 = sshll.u32 [#allocation7], 4
      %s67 = int_to_ptr.vmem [resolvable:$true] %s66
      %72 = dma.hbm_to_vmem [thread:$0]  %s8, 4096, %s67, [#allocation6], 128, 128, 8
    $region37: #{tpu_custom_call.1} parent=1 // pred_fallthru
      _
    // Predicated region
    $region38: #{tpu_custom_call.1} parent=1 // pred_check
      _
    $region39: #{tpu_custom_call.1} parent=1 // pred_check_branch
      %74 = sbr.rel (0) target = $region41
    $region40: #{tpu_custom_call.1} parent=1 // pred_region
      _
    $region41: #{tpu_custom_call.1} parent=1 // pred_fallthru
      _
    // Predicated region
    $region42: #{tpu_custom_call.1} parent=1 // pred_check
      _
    $region43: #{tpu_custom_call.1} parent=1 // pred_check_branch
      %76 = sbr.rel (0) target = $region45
    $region44: #{tpu_custom_call.1} parent=1 // pred_region
      %s78 = ssub.s32 4096, 4096
      %79 = vsyncadd [#allocation9], %s78
      %s80 = sshll.u32 [#allocation8], 4
      %s81 = int_to_ptr.vmem [resolvable:$true] %s80
      %86 = dma.hbm_to_vmem [thread:$0]  %s10, 4096, %s81, [#allocation9], 64, 64, 4
    $region45: #{tpu_custom_call.1} parent=1 // pred_fallthru
      _
    // Predicated region
    $region46: #{tpu_custom_call.1} parent=1 // pred_check
      _
    $region47: #{tpu_custom_call.1} parent=1 // pred_check_branch
      %88 = sbr.rel (0) target = $region49
    $region48: #{tpu_custom_call.1} parent=1 // pred_region
      _
    $region49: #{tpu_custom_call.1} parent=1 // pred_fallthru
      _
    // Predicated region
    $region50: #{tpu_custom_call.1} parent=1 // pred_check
      _
    $region51: #{tpu_custom_call.1} parent=1 // pred_check_branch
      %90 = sbr.rel (0) target = $region53
    $region52: #{tpu_custom_call.1} parent=1 // pred_region
      _
    $region53: #{tpu_custom_call.1} parent=1 // pred_fallthru
      _
    // Predicated region
    $region54: #{tpu_custom_call.1} parent=1 // pred_check
      _
    $region55: #{tpu_custom_call.1} parent=1 // pred_check_branch
      %92 = sbr.rel (0) target = $region57
    $region56: #{tpu_custom_call.1} parent=1 // pred_region
      _
    $region57: #{tpu_custom_call.1} parent=1 // pred_fallthru
      _
    // Predicated region
    $region58: #{tpu_custom_call.1} parent=1 // pred_check
      _
    $region59: #{tpu_custom_call.1} parent=1 // pred_check_branch
      %94 = sbr.rel (0) target = $region61
    $region60: #{tpu_custom_call.1} parent=1 // pred_region
      _
    $region61: #{tpu_custom_call.1} parent=1 // pred_fallthru
      _
    // Predicated region
    $region62: #{tpu_custom_call.1} parent=1 // pred_check
      _
    $region63: #{tpu_custom_call.1} parent=1 // pred_check_branch
      %96 = sbr.rel (0) target = $region65
    $region64: #{tpu_custom_call.1} parent=1 // pred_region
      _
    $region65: #{tpu_custom_call.1} parent=1 // pred_fallthru
      _
    // Predicated region
    $region66: #{tpu_custom_call.1} parent=1 // pred_check
      _
    $region67: #{tpu_custom_call.1} parent=1 // pred_check_branch
      %98 = sbr.rel (0) target = $region69
    $region68: #{tpu_custom_call.1} parent=1 // pred_region
      %99 = dma.done [#allocation3], 6144
    $region69: #{tpu_custom_call.1} parent=1 // pred_fallthru
      _
    // Predicated region
    $region70: #{tpu_custom_call.1} parent=1 // pred_check
      _
    $region71: #{tpu_custom_call.1} parent=1 // pred_check_branch
      %101 = sbr.rel (0) target = $region73
    $region72: #{tpu_custom_call.1} parent=1 // pred_region
      %102 = dma.done [#allocation6], 2048
    $region73: #{tpu_custom_call.1} parent=1 // pred_fallthru
      _
    // Predicated region
    $region74: #{tpu_custom_call.1} parent=1 // pred_check
      _
    $region75: #{tpu_custom_call.1} parent=1 // pred_check_branch
      %104 = sbr.rel (0) target = $region77
    $region76: #{tpu_custom_call.1} parent=1 // pred_region
      %105 = dma.done [#allocation6], 4096
    $region77: #{tpu_custom_call.1} parent=1 // pred_fallthru
      _
    // Predicated region
    $region78: #{tpu_custom_call.1} parent=1 // pred_check
      _
    $region79: #{tpu_custom_call.1} parent=1 // pred_check_branch
      %107 = sbr.rel (0) target = $region81
    $region80: #{tpu_custom_call.1} parent=1 // pred_region
      %108 = dma.done [#allocation9], 4096
    $region81: #{tpu_custom_call.1} parent=1 // pred_fallthru
      _
    %v110 = vld [vmem:[%s0] sm:$0xff]
    %v111 = vld [vmem:[%s0 + $0x8] sm:$0xff]
    %v112 = vld [vmem:[%s1] sm:$0xf]
    %v113 = vld [vmem:[%s2] sm:$0x1]
    %v115 = vlaneseq
    %v116 = vshrl.u32 %v115, 7
    %v117 = vsub.s32 0, %v116
    %v118 = vrot.slane %v113, %v117
    %vm120 = vcmask 31744
    %v122 = vsel %vm120, %v110, 0
    %v125 = vsel %vm120, %v111, 0
    %vm127 = vcmask 1043456
    %v129 = vsel %vm127, %v112, 0
    %131 = vmatprep.subr.mxu0 0.0
    %132 = vmatpush1.msra.mxu0 %v129
    %133 = vmatprep.subr.mxu0 0.0
    %134 = vmatpush1.msra.mxu0 0.0
    %135 = vmatprep.subr.mxu0 0.0
    %136 = vmatpush1.msra.mxu0 0.0
    %137 = vmatprep.subr.mxu0 0.0
    %138 = vmatpush1.msra.mxu0 0.0
    %139 = vmatprep.subr.mxu0 0.0
    %140 = vmatpush1.msra.mxu0 0.0
    %141 = vmatprep.subr.mxu0 0.0
    %142 = vmatpush1.msra.mxu0 0.0
    %143 = vmatprep.subr.mxu0 0.0
    %144 = vmatpush1.msra.mxu0 0.0
    %145 = vmatprep.subr.mxu0 0.0
    %146 = vmatpush1.msra.mxu0 0.0
    %147 = vmatprep.subr.mxu0 0.0
    %148 = vmatpush1.msra.mxu0 0.0
    %149 = vmatprep.subr.mxu0 0.0
    %150 = vmatpush1.msra.mxu0 0.0
    %151 = vmatprep.subr.mxu0 0.0
    %152 = vmatpush1.msra.mxu0 0.0
    %153 = vmatprep.subr.mxu0 0.0
    %154 = vmatpush1.msra.mxu0 0.0
    %155 = vmatprep.subr.mxu0 0.0
    %156 = vmatpush1.msra.mxu0 0.0
    %157 = vmatprep.subr.mxu0 0.0
    %158 = vmatpush1.msra.mxu0 0.0
    %159 = vmatprep.subr.mxu0 0.0
    %160 = vmatpush1.msra.mxu0 0.0
    %161 = vmatprep.subr.mxu0 0.0
    %162 = vmatpush1.msra.mxu0 0.0
    %163 = vmatprep.subr.mxu0 0.0
    %164 = vmatpush1.msra.mxu0 0.0
    %165 = vmatprep.subr.mxu0 0.0
    %166 = vmatpush1.msra.mxu0 0.0
    %167 = vmatprep.subr.mxu0 0.0
    %168 = vmatpush1.msra.mxu0 0.0
    %169 = vmatprep.subr.mxu0 0.0
    %170 = vmatpush1.msra.mxu0 0.0
    %171 = vmatprep.subr.mxu0 0.0
    %172 = vmatpush1.msra.mxu0 0.0
    %173 = vmatprep.subr.mxu0 0.0
    %174 = vmatpush1.msra.mxu0 0.0
    %175 = vmatprep.subr.mxu0 0.0
    %176 = vmatpush1.msra.mxu0 0.0
    %177 = vmatprep.subr.mxu0 0.0
    %178 = vmatpush1.msra.mxu0 0.0
    %179 = vmatprep.subr.mxu0 0.0
    %180 = vmatpush1.msra.mxu0 0.0
    %181 = vmatprep.subr.mxu0 0.0
    %182 = vmatpush1.msra.mxu0 0.0
    %183 = vmatprep.subr.mxu0 0.0
    %184 = vmatpush1.msra.mxu0 0.0
    %185 = vmatprep.subr.mxu0 0.0
    %186 = vmatpush1.msra.mxu0 0.0
    %187 = vmatprep.subr.mxu0 0.0
    %188 = vmatpush1.msra.mxu0 0.0
    %189 = vmatprep.subr.mxu0 0.0
    %190 = vmatpush1.msra.mxu0 0.0
    %191 = vmatprep.subr.mxu0 0.0
    %192 = vmatpush1.msra.mxu0 0.0
    %193 = vmatprep.subr.mxu0 0.0
    %194 = vmatpush1.msra.mxu0 0.0
    %195 = vmatprep.mubr.f32.mxu0 0.0
    %196 = vmatmul.mubr.f32.gmra.mrb[0].mxu0 %v122
    %v197 = vpop.f32.mrb[0].mxu0
    %v198 = vadd.f32 %v118, %v197
    %v199 = vpop.f32.mrb[0].mxu0
    %200 = vmatprep.mubr.f32.mxu0 0.0
    %201 = vmatmul.mubr.f32.gmra.mrb[0].mxu0 %v125
    %v202 = vpop.f32.mrb[0].mxu0
    %v203 = vadd.f32 %v118, %v202
    %v204 = vpop.f32.mrb[0].mxu0
    %205 = vdwg.mxu0
    %v206 = vld [vmem:[%s3] sm:$0xff]
    %v207 = vadd.f32 %v198, %v206
    %v208 = vadd.f32 %v203, %v206
    %v209 = vlaneseq
    %v210 = vshrl.u32 %v209, 7
    %v211 = vlaneseq
    %v212 = vand.u32 %v211, 127
    %vm213 = vcmp.le.s32.totalorder %v212, %v210
    %v214 = vsel %vm213, 0.0, -1e+30
    %v215 = vpack.c.bf16 %v208, %v207
    %v216 = vld [vmem:[#allocation2] sm:$0xff]
    %v217 = vld [vmem:[#allocation2 + $0x8] sm:$0xf]
    %v218 = vld [vmem:[#allocation2 + $0xc] sm:$0xff]
    %v219 = vld [vmem:[#allocation2 + $0x14] sm:$0xf]
    %v220 = vld [vmem:[#allocation2 + $0x18] sm:$0xff]
    %v221 = vld [vmem:[#allocation2 + $0x20] sm:$0xf]
    %v222 = vld [vmem:[#allocation2 + $0x24] sm:$0xff]
    %v223 = vld [vmem:[#allocation2 + $0x2c] sm:$0xf]
    %v224 = vld [vmem:[#allocation2 + $0x30] sm:$0xff]
    %v225 = vld [vmem:[#allocation2 + $0x38] sm:$0xf]
    %v226 = vld [vmem:[#allocation2 + $0x3c] sm:$0xff]
    %v227 = vld [vmem:[#allocation2 + $0x44] sm:$0xf]
    %v228 = vld [vmem:[#allocation2 + $0x48] sm:$0xff]
    %v229 = vld [vmem:[#allocation2 + $0x50] sm:$0xf]
    %v230 = vld [vmem:[#allocation2 + $0x54] sm:$0xff]
    %v231 = vld [vmem:[#allocation2 + $0x5c] sm:$0xf]
    %v232 = vld [vmem:[#allocation2 + $0x60] sm:$0xff]
    %v233 = vld [vmem:[#allocation2 + $0x68] sm:$0xf]
    %v234 = vld [vmem:[#allocation2 + $0x6c] sm:$0xff]
    %v235 = vld [vmem:[#allocation2 + $0x74] sm:$0xf]
    %v236 = vld [vmem:[#allocation2 + $0x78] sm:$0xff]
    %v237 = vld [vmem:[#allocation2 + $0x80] sm:$0xf]
    %v238 = vld [vmem:[#allocation2 + $0x84] sm:$0xff]
    %v239 = vld [vmem:[#allocation2 + $0x8c] sm:$0xf]
    %v240 = vld [vmem:[#allocation2 + $0x90] sm:$0xff]
    %v241 = vld [vmem:[#allocation2 + $0x98] sm:$0xf]
    %v242 = vld [vmem:[#allocation2 + $0x9c] sm:$0xff]
    %v243 = vld [vmem:[#allocation2 + $0xa4] sm:$0xf]
    %v244 = vld [vmem:[#allocation2 + $0xa8] sm:$0xff]
    %v245 = vld [vmem:[#allocation2 + $0xb0] sm:$0xf]
    %v246 = vld [vmem:[#allocation2 + $0xb4] sm:$0xff]
    %v247 = vld [vmem:[#allocation2 + $0xbc] sm:$0xf]
    %v248 = vld [vmem:[%s5] sm:$0x7]
    %v250 = vlaneseq
    %v251 = vshrl.u32 %v250, 7
    %v252 = vsub.s32 0, %v251
    %v253 = vrot.slane %v248, %v252
    %v254 = vlaneseq
    %v255 = vshrl.u32 %v254, 7
    %v256 = vsub.s32 1, %v255
    %v257 = vrot.slane %v248, %v256
    %v258 = vlaneseq
    %v259 = vshrl.u32 %v258, 7
    %v260 = vsub.s32 2, %v259
    %v261 = vrot.slane %v248, %v260
    %v297 = vunpack.c.l.b16 %v216
    %v298 = vunpack.c.h.b16 %v216
    %v299 = vunpack.c.l.b16 %v217
    %v300 = vunpack.c.l.b16 %v218
    %v301 = vunpack.c.h.b16 %v218
    %v302 = vunpack.c.l.b16 %v219
    %v303 = vunpack.c.l.b16 %v220
    %v304 = vunpack.c.h.b16 %v220
    %v305 = vunpack.c.l.b16 %v221
    %v306 = vunpack.c.l.b16 %v222
    %v307 = vunpack.c.h.b16 %v222
    %v308 = vunpack.c.l.b16 %v223
    %v309 = vunpack.c.l.b16 %v224
    %v310 = vunpack.c.h.b16 %v224
    %v311 = vunpack.c.l.b16 %v225
    %v312 = vunpack.c.l.b16 %v226
    %v313 = vunpack.c.h.b16 %v226
    %v314 = vunpack.c.l.b16 %v227
    %v315 = vunpack.c.l.b16 %v228
    %v316 = vunpack.c.h.b16 %v228
    %v317 = vunpack.c.l.b16 %v229
    %v318 = vunpack.c.l.b16 %v230
    %v319 = vunpack.c.h.b16 %v230
    %v320 = vunpack.c.l.b16 %v231
    %v321 = vunpack.c.l.b16 %v232
    %v322 = vunpack.c.h.b16 %v232
    %v323 = vunpack.c.l.b16 %v233
    %v324 = vunpack.c.l.b16 %v234
    %v325 = vunpack.c.h.b16 %v234
    %v326 = vunpack.c.l.b16 %v235
    %v327 = vunpack.c.l.b16 %v236
    %v328 = vunpack.c.h.b16 %v236
    %v329 = vunpack.c.l.b16 %v237
    %v330 = vunpack.c.l.b16 %v238
    %v331 = vunpack.c.h.b16 %v238
    %v332 = vunpack.c.l.b16 %v239
    %v333 = vunpack.c.l.b16 %v240
    %v334 = vunpack.c.h.b16 %v240
    %v335 = vunpack.c.l.b16 %v241
    %v336 = vunpack.c.l.b16 %v242
    %v337 = vunpack.c.h.b16 %v242
    %v338 = vunpack.c.l.b16 %v243
    %v339 = vunpack.c.l.b16 %v244
    %v340 = vunpack.c.h.b16 %v244
    %v341 = vunpack.c.l.b16 %v245
    %v342 = vunpack.c.l.b16 %v246
    %v343 = vunpack.c.h.b16 %v246
    %v344 = vunpack.c.l.b16 %v247
    %v345 = vpack.c.b16 %v300, %v297
    %v346 = vpack.c.b16 %v301, %v298
    %v347 = vpack.c.b16 %v302, %v299
    %v348 = vpack.c.b16 %v306, %v303
    %v349 = vpack.c.b16 %v307, %v304
    %v350 = vpack.c.b16 %v308, %v305
    %v351 = vpack.c.b16 %v312, %v309
    %v352 = vpack.c.b16 %v313, %v310
    %v353 = vpack.c.b16 %v314, %v311
    %v354 = vpack.c.b16 %v318, %v315
    %v355 = vpack.c.b16 %v319, %v316
    %v356 = vpack.c.b16 %v320, %v317
    %v357 = vpack.c.b16 %v324, %v321
    %v358 = vpack.c.b16 %v325, %v322
    %v359 = vpack.c.b16 %v326, %v323
    %v360 = vpack.c.b16 %v330, %v327
    %v361 = vpack.c.b16 %v331, %v328
    %v362 = vpack.c.b16 %v332, %v329
    %v363 = vpack.c.b16 %v336, %v333
    %v364 = vpack.c.b16 %v337, %v334
    %v365 = vpack.c.b16 %v338, %v335
    %v366 = vpack.c.b16 %v342, %v339
    %v367 = vpack.c.b16 %v343, %v340
    %v368 = vpack.c.b16 %v344, %v341
    %393 = vmatprep.subr.bf16.mxu0 %v346
    %394 = vmatpush1.bf16.msra.mxu0 %v345
    %395 = vmatprep.subr.bf16.mxu0 %v349
    %396 = vmatpush1.bf16.msra.mxu0 %v348
    %397 = vmatprep.subr.bf16.mxu0 %v352
    %398 = vmatpush1.bf16.msra.mxu0 %v351
    %399 = vmatprep.subr.bf16.mxu0 %v355
    %400 = vmatpush1.bf16.msra.mxu0 %v354
    %401 = vmatprep.subr.bf16.mxu0 %v358
    %402 = vmatpush1.bf16.msra.mxu0 %v357
    %403 = vmatprep.subr.bf16.mxu0 %v361
    %404 = vmatpush1.bf16.msra.mxu0 %v360
    %405 = vmatprep.subr.bf16.mxu0 %v364
    %406 = vmatpush1.bf16.msra.mxu0 %v363
    %407 = vmatprep.subr.bf16.mxu0 %v367
    %408 = vmatpush1.bf16.msra.mxu0 %v366
    %409 = vmatprep.subr.bf16.mxu0 0
    %410 = vmatpush1.bf16.msra.mxu0 0
    %411 = vmatprep.subr.bf16.mxu0 0
    %412 = vmatpush1.bf16.msra.mxu0 0
    %413 = vmatprep.subr.bf16.mxu0 0
    %414 = vmatpush1.bf16.msra.mxu0 0
    %415 = vmatprep.subr.bf16.mxu0 0
    %416 = vmatpush1.bf16.msra.mxu0 0
    %417 = vmatprep.subr.bf16.mxu0 0
    %418 = vmatpush1.bf16.msra.mxu0 0
    %419 = vmatprep.subr.bf16.mxu0 0
    %420 = vmatpush1.bf16.msra.mxu0 0
    %421 = vmatprep.subr.bf16.mxu0 0
    %422 = vmatpush1.bf16.msra.mxu0 0
    %423 = vmatprep.subr.bf16.mxu0 0
    %424 = vmatpush1.bf16.msra.mxu0 0
    %425 = vmatprep.mubr.bf16.mxu0 0
    %426 = vmatmul.mubr.bf16.gmra.mrb[0].mxu0 %v215
    %v427 = vpop.f32.mrb[0].mxu0
    %v428 = vadd.f32 %v253, %v427
    %v429 = vpop.f32.mrb[0].mxu0
    %v430 = vadd.f32 %v257, %v429
    %v431 = vpop.f32.mrb[0].mxu0
    %v432 = vadd.f32 %v253, %v431
    %v433 = vpop.f32.mrb[0].mxu0
    %v434 = vadd.f32 %v257, %v433
    %435 = vdwg.mxu0
    %436 = vmatprep.subr.bf16.mxu0 0
    %437 = vmatpush1.bf16.msra.mxu0 %v347
    %438 = vmatprep.subr.bf16.mxu0 0
    %439 = vmatpush1.bf16.msra.mxu0 %v350
    %440 = vmatprep.subr.bf16.mxu0 0
    %441 = vmatpush1.bf16.msra.mxu0 %v353
    %442 = vmatprep.subr.bf16.mxu0 0
    %443 = vmatpush1.bf16.msra.mxu0 %v356
    %444 = vmatprep.subr.bf16.mxu0 0
    %445 = vmatpush1.bf16.msra.mxu0 %v359
    %446 = vmatprep.subr.bf16.mxu0 0
    %447 = vmatpush1.bf16.msra.mxu0 %v362
    %448 = vmatprep.subr.bf16.mxu0 0
    %449 = vmatpush1.bf16.msra.mxu0 %v365
    %450 = vmatprep.subr.bf16.mxu0 0
    %451 = vmatpush1.bf16.msra.mxu0 %v368
    %452 = vmatprep.subr.bf16.mxu0 0
    %453 = vmatpush1.bf16.msra.mxu0 0
    %454 = vmatprep.subr.bf16.mxu0 0
    %455 = vmatpush1.bf16.msra.mxu0 0
    %456 = vmatprep.subr.bf16.mxu0 0
    %457 = vmatpush1.bf16.msra.mxu0 0
    %458 = vmatprep.subr.bf16.mxu0 0
    %459 = vmatpush1.bf16.msra.mxu0 0
    %460 = vmatprep.subr.bf16.mxu0 0
    %461 = vmatpush1.bf16.msra.mxu0 0
    %462 = vmatprep.subr.bf16.mxu0 0
    %463 = vmatpush1.bf16.msra.mxu0 0
    %464 = vmatprep.subr.bf16.mxu0 0
    %465 = vmatpush1.bf16.msra.mxu0 0
    %466 = vmatprep.subr.bf16.mxu0 0
    %467 = vmatpush1.bf16.msra.mxu0 0
    %468 = vmatprep.mubr.bf16.mxu0 0
    %469 = vmatmul.mubr.bf16.gmra.mrb[0].mxu0 %v215
    %v470 = vpop.f32.mrb[0].mxu0
    %v471 = vadd.f32 %v261, %v470
    %v472 = vpop.f32.mrb[0].mxu0
    %v473 = vpop.f32.mrb[0].mxu0
    %v474 = vadd.f32 %v261, %v473
    %v475 = vpop.f32.mrb[0].mxu0
    %476 = vdwg.mxu0
    %v477 = vmul.f32 %v428, 0.17677669
    %v478 = vmul.f32 %v432, 0.17677669
    %v479 = vpack.c.bf16 %v477, %v477
    %v480 = vpack.c.bf16 %v478, %v478
    %v481 = vpack.c.bf16 %v430, %v430
    %v482 = vpack.c.bf16 %v434, %v434
    %v483 = vpack.c.bf16 %v471, %v471
    %v484 = vpack.c.bf16 %v474, %v474
    %v485 = vld [vmem:[#allocation5] sm:$0xf]
    %v486 = vld [vmem:[#allocation5 + $0x4] sm:$0xf]
    %v487 = vld [vmem:[#allocation5 + $0x8] sm:$0xf]
    %v488 = vld [vmem:[#allocation5 + $0xc] sm:$0xf]
    %v489 = vld [vmem:[#allocation5 + $0x10] sm:$0xf]
    %v490 = vld [vmem:[#allocation5 + $0x14] sm:$0xf]
    %v491 = vld [vmem:[#allocation5 + $0x18] sm:$0xf]
    %v492 = vld [vmem:[#allocation5 + $0x1c] sm:$0xf]
    %v493 = vld [vmem:[#allocation5 + $0x20] sm:$0xf]
    %v494 = vld [vmem:[#allocation5 + $0x24] sm:$0xf]
    %v495 = vld [vmem:[#allocation5 + $0x28] sm:$0xf]
    %v496 = vld [vmem:[#allocation5 + $0x2c] sm:$0xf]
    %v497 = vld [vmem:[#allocation5 + $0x30] sm:$0xf]
    %v498 = vld [vmem:[#allocation5 + $0x34] sm:$0xf]
    %v499 = vld [vmem:[#allocation5 + $0x38] sm:$0xf]
    %v500 = vld [vmem:[#allocation5 + $0x3c] sm:$0xf]
    %v501 = vld [vmem:[%s7] sm:$0x1]
    %v503 = vlaneseq
    %v504 = vshrl.u32 %v503, 7
    %v505 = vsub.s32 0, %v504
    %v506 = vrot.slane %v501, %v505
    %v508 = vadd.f32 %v506, 0.0
    %vm509 = vcmask 261120
    %v511 = vsel %vm509, %v479, 0
    %v514 = vsel %vm509, %v481, 0
    %516 = vmatprep.subr.bf16.mxu0 0
    %517 = vmatpush1.bf16.xpose.msra.mxu0 %v514
    %518 = vmatprep.subr.bf16.mxu0 0
    %519 = vmatpush1.bf16.xpose.msra.mxu0 0
    %520 = vmatprep.subr.bf16.mxu0 0
    %521 = vmatpush1.bf16.xpose.msra.mxu0 0
    %522 = vmatprep.subr.bf16.mxu0 0
    %523 = vmatpush1.bf16.xpose.msra.mxu0 0
    %524 = vmatprep.subr.bf16.mxu0 0
    %525 = vmatpush1.bf16.xpose.msra.mxu0 0
    %526 = vmatprep.subr.bf16.mxu0 0
    %527 = vmatpush1.bf16.xpose.msra.mxu0 0
    %528 = vmatprep.subr.bf16.mxu0 0
    %529 = vmatpush1.bf16.xpose.msra.mxu0 0
    %530 = vmatprep.subr.bf16.mxu0 0
    %531 = vmatpush1.bf16.xpose.msra.mxu0 0
    %532 = vmatprep.subr.bf16.mxu0 0
    %533 = vmatpush1.bf16.xpose.msra.mxu0 0
    %534 = vmatprep.subr.bf16.mxu0 0
    %535 = vmatpush1.bf16.xpose.msra.mxu0 0
    %536 = vmatprep.subr.bf16.mxu0 0
    %537 = vmatpush1.bf16.xpose.msra.mxu0 0
    %538 = vmatprep.subr.bf16.mxu0 0
    %539 = vmatpush1.bf16.xpose.msra.mxu0 0
    %540 = vmatprep.subr.bf16.mxu0 0
    %541 = vmatpush1.bf16.xpose.msra.mxu0 0
    %542 = vmatprep.subr.bf16.mxu0 0
    %543 = vmatpush1.bf16.xpose.msra.mxu0 0
    %544 = vmatprep.subr.bf16.mxu0 0
    %545 = vmatpush1.bf16.xpose.msra.mxu0 0
    %546 = vmatprep.subr.bf16.mxu0 0
    %547 = vmatpush1.bf16.xpose.msra.mxu0 0
    %548 = vmatprep.mubr.bf16.mxu0 0
    %549 = vmatmul.mubr.bf16.gmra.mrb[0].mxu0 %v511
    %v550 = vpop.f32.mrb[0].mxu0
    %v551 = vadd.f32 %v214, %v550
    %v552 = vpop.f32.mrb[0].mxu0
    %v553 = vpop.f32.mrb[0].mxu0
    %v554 = vpop.f32.mrb[0].mxu0
    %555 = vdwg.mxu0
    %v557 = vsel %vm509, %v480, 0
    %v560 = vsel %vm509, %v482, 0
    %562 = vmatprep.subr.bf16.mxu0 0
    %563 = vmatpush1.bf16.xpose.msra.mxu0 %v560
    %564 = vmatprep.subr.bf16.mxu0 0
    %565 = vmatpush1.bf16.xpose.msra.mxu0 0
    %566 = vmatprep.subr.bf16.mxu0 0
    %567 = vmatpush1.bf16.xpose.msra.mxu0 0
    %568 = vmatprep.subr.bf16.mxu0 0
    %569 = vmatpush1.bf16.xpose.msra.mxu0 0
    %570 = vmatprep.subr.bf16.mxu0 0
    %571 = vmatpush1.bf16.xpose.msra.mxu0 0
    %572 = vmatprep.subr.bf16.mxu0 0
    %573 = vmatpush1.bf16.xpose.msra.mxu0 0
    %574 = vmatprep.subr.bf16.mxu0 0
    %575 = vmatpush1.bf16.xpose.msra.mxu0 0
    %576 = vmatprep.subr.bf16.mxu0 0
    %577 = vmatpush1.bf16.xpose.msra.mxu0 0
    %578 = vmatprep.subr.bf16.mxu0 0
    %579 = vmatpush1.bf16.xpose.msra.mxu0 0
    %580 = vmatprep.subr.bf16.mxu0 0
    %581 = vmatpush1.bf16.xpose.msra.mxu0 0
    %582 = vmatprep.subr.bf16.mxu0 0
    %583 = vmatpush1.bf16.xpose.msra.mxu0 0
    %584 = vmatprep.subr.bf16.mxu0 0
    %585 = vmatpush1.bf16.xpose.msra.mxu0 0
    %586 = vmatprep.subr.bf16.mxu0 0
    %587 = vmatpush1.bf16.xpose.msra.mxu0 0
    %588 = vmatprep.subr.bf16.mxu0 0
    %589 = vmatpush1.bf16.xpose.msra.mxu0 0
    %590 = vmatprep.subr.bf16.mxu0 0
    %591 = vmatpush1.bf16.xpose.msra.mxu0 0
    %592 = vmatprep.subr.bf16.mxu0 0
    %593 = vmatpush1.bf16.xpose.msra.mxu0 0
    %594 = vmatprep.mubr.bf16.mxu0 0
    %595 = vmatmul.mubr.bf16.gmra.mrb[0].mxu0 %v557
    %v596 = vpop.f32.mrb[0].mxu0
    %v597 = vadd.f32 %v214, %v596
    %v598 = vpop.f32.mrb[0].mxu0
    %v599 = vpop.f32.mrb[0].mxu0
    %v600 = vpop.f32.mrb[0].mxu0
    %601 = vdwg.mxu0
    %vm602 = vcmask 64512
    %v603 = vsel %vm602, %v551, -inf
    %604 = vmax.xlane.f32.xlu0 %v603
    %v605 = vpop.xlane.xlu0 %604
    %v606 = vsel %vm602, %v597, -inf
    %607 = vmax.xlane.f32.xlu0 %v606
    %v608 = vpop.xlane.xlu0 %607
    %v609 = vsub.f32 %v551, %v605
    %v610 = vsub.f32 %v597, %v608
    %v611 = vmul.f32 %v609, 1.442695
    %v612 = vpow.pop %v611
    %v613 = vmul.f32 %v610, 1.442695
    %v614 = vpow.pop %v613
    %v615 = vsel %vm602, %v612, 0.0
    %616 = vadd.xlane.f32.xlu0 %v615
    %v617 = vpop.xlane.xlu0 %616
    %v618 = vsel %vm602, %v614, 0.0
    %619 = vadd.xlane.f32.xlu0 %v618
    %v620 = vpop.xlane.xlu0 %619
    %v621 = vrcp.pop %v617
    %v622 = vrcp.pop %v620
    %v623 = vmul.f32 %v612, %v621
    %v624 = vmul.f32 %v614, %v622
    %v625 = vpack.c.bf16 %v623, %v623
    %v626 = vpack.c.bf16 %v624, %v624
    %v628 = vsel %vm602, %v625, 0
    %v631 = vsel %vm127, %v483, 0
    %633 = vmatprep.subr.bf16.mxu0 0
    %634 = vmatpush1.bf16.msra.mxu0 %v631
    %635 = vmatprep.subr.bf16.mxu0 0
    %636 = vmatpush1.bf16.msra.mxu0 0
    %637 = vmatprep.subr.bf16.mxu0 0
    %638 = vmatpush1.bf16.msra.mxu0 0
    %639 = vmatprep.subr.bf16.mxu0 0
    %640 = vmatpush1.bf16.msra.mxu0 0
    %641 = vmatprep.subr.bf16.mxu0 0
    %642 = vmatpush1.bf16.msra.mxu0 0
    %643 = vmatprep.subr.bf16.mxu0 0
    %644 = vmatpush1.bf16.msra.mxu0 0
    %645 = vmatprep.subr.bf16.mxu0 0
    %646 = vmatpush1.bf16.msra.mxu0 0
    %647 = vmatprep.subr.bf16.mxu0 0
    %648 = vmatpush1.bf16.msra.mxu0 0
    %649 = vmatprep.subr.bf16.mxu0 0
    %650 = vmatpush1.bf16.msra.mxu0 0
    %651 = vmatprep.subr.bf16.mxu0 0
    %652 = vmatpush1.bf16.msra.mxu0 0
    %653 = vmatprep.subr.bf16.mxu0 0
    %654 = vmatpush1.bf16.msra.mxu0 0
    %655 = vmatprep.subr.bf16.mxu0 0
    %656 = vmatpush1.bf16.msra.mxu0 0
    %657 = vmatprep.subr.bf16.mxu0 0
    %658 = vmatpush1.bf16.msra.mxu0 0
    %659 = vmatprep.subr.bf16.mxu0 0
    %660 = vmatpush1.bf16.msra.mxu0 0
    %661 = vmatprep.subr.bf16.mxu0 0
    %662 = vmatpush1.bf16.msra.mxu0 0
    %663 = vmatprep.subr.bf16.mxu0 0
    %664 = vmatpush1.bf16.msra.mxu0 0
    %665 = vmatprep.mubr.bf16.mxu0 0
    %666 = vmatmul.mubr.bf16.gmra.mrb[0].mxu0 %v628
    %v667 = vpop.f32.mrb[0].mxu0
    %v668 = vadd.f32 0.0, %v667
    %v669 = vpop.f32.mrb[0].mxu0
    %v670 = vpop.f32.mrb[0].mxu0
    %v671 = vpop.f32.mrb[0].mxu0
    %672 = vdwg.mxu0
    %v674 = vsel %vm602, %v626, 0
    %v677 = vsel %vm127, %v484, 0
    %679 = vmatprep.subr.bf16.mxu0 0
    %680 = vmatpush1.bf16.msra.mxu0 %v677
    %681 = vmatprep.subr.bf16.mxu0 0
    %682 = vmatpush1.bf16.msra.mxu0 0
    %683 = vmatprep.subr.bf16.mxu0 0
    %684 = vmatpush1.bf16.msra.mxu0 0
    %685 = vmatprep.subr.bf16.mxu0 0
    %686 = vmatpush1.bf16.msra.mxu0 0
    %687 = vmatprep.subr.bf16.mxu0 0
    %688 = vmatpush1.bf16.msra.mxu0 0
    %689 = vmatprep.subr.bf16.mxu0 0
    %690 = vmatpush1.bf16.msra.mxu0 0
    %691 = vmatprep.subr.bf16.mxu0 0
    %692 = vmatpush1.bf16.msra.mxu0 0
    %693 = vmatprep.subr.bf16.mxu0 0
    %694 = vmatpush1.bf16.msra.mxu0 0
    %695 = vmatprep.subr.bf16.mxu0 0
    %696 = vmatpush1.bf16.msra.mxu0 0
    %697 = vmatprep.subr.bf16.mxu0 0
    %698 = vmatpush1.bf16.msra.mxu0 0
    %699 = vmatprep.subr.bf16.mxu0 0
    %700 = vmatpush1.bf16.msra.mxu0 0
    %701 = vmatprep.subr.bf16.mxu0 0
    %702 = vmatpush1.bf16.msra.mxu0 0
    %703 = vmatprep.subr.bf16.mxu0 0
    %704 = vmatpush1.bf16.msra.mxu0 0
    %705 = vmatprep.subr.bf16.mxu0 0
    %706 = vmatpush1.bf16.msra.mxu0 0
    %707 = vmatprep.subr.bf16.mxu0 0
    %708 = vmatpush1.bf16.msra.mxu0 0
    %709 = vmatprep.subr.bf16.mxu0 0
    %710 = vmatpush1.bf16.msra.mxu0 0
    %711 = vmatprep.mubr.bf16.mxu0 0
    %712 = vmatmul.mubr.bf16.gmra.mrb[0].mxu0 %v674
    %v713 = vpop.f32.mrb[0].mxu0
    %v714 = vadd.f32 0.0, %v713
    %v715 = vpop.f32.mrb[0].mxu0
    %v716 = vpop.f32.mrb[0].mxu0
    %v717 = vpop.f32.mrb[0].mxu0
    %718 = vdwg.mxu0
    %v719 = vpack.c.bf16 %v714, %v668
    %v724 = vunpack.c.l.b16 %v485
    %v725 = vunpack.c.l.b16 %v486
    %v726 = vunpack.c.l.b16 %v487
    %v727 = vunpack.c.l.b16 %v488
    %v728 = vpack.c.b16 %v725, %v724
    %v729 = vpack.c.b16 %v727, %v726
    %v733 = vsel %vm509, %v719, 0
    %735 = vmatprep.subr.bf16.mxu0 0
    %736 = vmatpush1.bf16.msra.mxu0 %v728
    %737 = vmatprep.subr.bf16.mxu0 0
    %738 = vmatpush1.bf16.msra.mxu0 %v729
    %739 = vmatprep.subr.bf16.mxu0 0
    %740 = vmatpush1.bf16.msra.mxu0 0
    %741 = vmatprep.subr.bf16.mxu0 0
    %742 = vmatpush1.bf16.msra.mxu0 0
    %743 = vmatprep.subr.bf16.mxu0 0
    %744 = vmatpush1.bf16.msra.mxu0 0
    %745 = vmatprep.subr.bf16.mxu0 0
    %746 = vmatpush1.bf16.msra.mxu0 0
    %747 = vmatprep.subr.bf16.mxu0 0
    %748 = vmatpush1.bf16.msra.mxu0 0
    %749 = vmatprep.subr.bf16.mxu0 0
    %750 = vmatpush1.bf16.msra.mxu0 0
    %751 = vmatprep.subr.bf16.mxu0 0
    %752 = vmatpush1.bf16.msra.mxu0 0
    %753 = vmatprep.subr.bf16.mxu0 0
    %754 = vmatpush1.bf16.msra.mxu0 0
    %755 = vmatprep.subr.bf16.mxu0 0
    %756 = vmatpush1.bf16.msra.mxu0 0
    %757 = vmatprep.subr.bf16.mxu0 0
    %758 = vmatpush1.bf16.msra.mxu0 0
    %759 = vmatprep.subr.bf16.mxu0 0
    %760 = vmatpush1.bf16.msra.mxu0 0
    %761 = vmatprep.subr.bf16.mxu0 0
    %762 = vmatpush1.bf16.msra.mxu0 0
    %763 = vmatprep.subr.bf16.mxu0 0
    %764 = vmatpush1.bf16.msra.mxu0 0
    %765 = vmatprep.subr.bf16.mxu0 0
    %766 = vmatpush1.bf16.msra.mxu0 0
    %767 = vmatprep.mubr.bf16.mxu0 0
    %768 = vmatmul.mubr.bf16.gmra.mrb[0].mxu0 %v733
    %v769 = vpop.f32.mrb[0].mxu0
    %v770 = vadd.f32 0.0, %v769
    %v771 = vpop.f32.mrb[0].mxu0
    %v772 = vpop.f32.mrb[0].mxu0
    %v773 = vadd.f32 0.0, %v772
    %v774 = vpop.f32.mrb[0].mxu0
    %775 = vdwg.mxu0
    %v776 = vadd.f32 %v508, %v770
    %v777 = vadd.f32 %v508, %v773
    %779 = vrot.lane.b32.xlu0 %v479, 96
    %v780 = vpop.permute.xlu0 %779
    %782 = vrot.lane.b32.xlu0 %v481, 96
    %v783 = vpop.permute.xlu0 %782
    %v785 = vsel %vm509, %v780, 0
    %v788 = vsel %vm509, %v783, 0
    %790 = vmatprep.subr.bf16.mxu0 0
    %791 = vmatpush1.bf16.xpose.msra.mxu0 %v788
    %792 = vmatprep.subr.bf16.mxu0 0
    %793 = vmatpush1.bf16.xpose.msra.mxu0 0
    %794 = vmatprep.subr.bf16.mxu0 0
    %795 = vmatpush1.bf16.xpose.msra.mxu0 0
    %796 = vmatprep.subr.bf16.mxu0 0
    %797 = vmatpush1.bf16.xpose.msra.mxu0 0
    %798 = vmatprep.subr.bf16.mxu0 0
    %799 = vmatpush1.bf16.xpose.msra.mxu0 0
    %800 = vmatprep.subr.bf16.mxu0 0
    %801 = vmatpush1.bf16.xpose.msra.mxu0 0
    %802 = vmatprep.subr.bf16.mxu0 0
    %803 = vmatpush1.bf16.xpose.msra.mxu0 0
    %804 = vmatprep.subr.bf16.mxu0 0
    %805 = vmatpush1.bf16.xpose.msra.mxu0 0
    %806 = vmatprep.subr.bf16.mxu0 0
    %807 = vmatpush1.bf16.xpose.msra.mxu0 0
    %808 = vmatprep.subr.bf16.mxu0 0
    %809 = vmatpush1.bf16.xpose.msra.mxu0 0
    %810 = vmatprep.subr.bf16.mxu0 0
    %811 = vmatpush1.bf16.xpose.msra.mxu0 0
    %812 = vmatprep.subr.bf16.mxu0 0
    %813 = vmatpush1.bf16.xpose.msra.mxu0 0
    %814 = vmatprep.subr.bf16.mxu0 0
    %815 = vmatpush1.bf16.xpose.msra.mxu0 0
    %816 = vmatprep.subr.bf16.mxu0 0
    %817 = vmatpush1.bf16.xpose.msra.mxu0 0
    %818 = vmatprep.subr.bf16.mxu0 0
    %819 = vmatpush1.bf16.xpose.msra.mxu0 0
    %820 = vmatprep.subr.bf16.mxu0 0
    %821 = vmatpush1.bf16.xpose.msra.mxu0 0
    %822 = vmatprep.mubr.bf16.mxu0 0
    %823 = vmatmul.mubr.bf16.gmra.mrb[0].mxu0 %v785
    %v824 = vpop.f32.mrb[0].mxu0
    %v825 = vadd.f32 %v214, %v824
    %v826 = vpop.f32.mrb[0].mxu0
    %v827 = vpop.f32.mrb[0].mxu0
    %v828 = vpop.f32.mrb[0].mxu0
    %829 = vdwg.mxu0
    %831 = vrot.lane.b32.xlu0 %v480, 96
    %v832 = vpop.permute.xlu0 %831
    %834 = vrot.lane.b32.xlu0 %v482, 96
    %v835 = vpop.permute.xlu0 %834
    %v837 = vsel %vm509, %v832, 0
    %v840 = vsel %vm509, %v835, 0
    %842 = vmatprep.subr.bf16.mxu0 0
    %843 = vmatpush1.bf16.xpose.msra.mxu0 %v840
    %844 = vmatprep.subr.bf16.mxu0 0
    %845 = vmatpush1.bf16.xpose.msra.mxu0 0
    %846 = vmatprep.subr.bf16.mxu0 0
    %847 = vmatpush1.bf16.xpose.msra.mxu0 0
    %848 = vmatprep.subr.bf16.mxu0 0
    %849 = vmatpush1.bf16.xpose.msra.mxu0 0
    %850 = vmatprep.subr.bf16.mxu0 0
    %851 = vmatpush1.bf16.xpose.msra.mxu0 0
    %852 = vmatprep.subr.bf16.mxu0 0
    %853 = vmatpush1.bf16.xpose.msra.mxu0 0
    %854 = vmatprep.subr.bf16.mxu0 0
    %855 = vmatpush1.bf16.xpose.msra.mxu0 0
    %856 = vmatprep.subr.bf16.mxu0 0
    %857 = vmatpush1.bf16.xpose.msra.mxu0 0
    %858 = vmatprep.subr.bf16.mxu0 0
    %859 = vmatpush1.bf16.xpose.msra.mxu0 0
    %860 = vmatprep.subr.bf16.mxu0 0
    %861 = vmatpush1.bf16.xpose.msra.mxu0 0
    %862 = vmatprep.subr.bf16.mxu0 0
    %863 = vmatpush1.bf16.xpose.msra.mxu0 0
    %864 = vmatprep.subr.bf16.mxu0 0
    %865 = vmatpush1.bf16.xpose.msra.mxu0 0
    %866 = vmatprep.subr.bf16.mxu0 0
    %867 = vmatpush1.bf16.xpose.msra.mxu0 0
    %868 = vmatprep.subr.bf16.mxu0 0
    %869 = vmatpush1.bf16.xpose.msra.mxu0 0
    %870 = vmatprep.subr.bf16.mxu0 0
    %871 = vmatpush1.bf16.xpose.msra.mxu0 0
    %872 = vmatprep.subr.bf16.mxu0 0
    %873 = vmatpush1.bf16.xpose.msra.mxu0 0
    %874 = vmatprep.mubr.bf16.mxu0 0
    %875 = vmatmul.mubr.bf16.gmra.mrb[0].mxu0 %v837
    %v876 = vpop.f32.mrb[0].mxu0
    %v877 = vadd.f32 %v214, %v876
    %v878 = vpop.f32.mrb[0].mxu0
    %v879 = vpop.f32.mrb[0].mxu0
    %v880 = vpop.f32.mrb[0].mxu0
    %881 = vdwg.mxu0
    %v882 = vsel %vm602, %v825, -inf
    %883 = vmax.xlane.f32.xlu0 %v882
    %v884 = vpop.xlane.xlu0 %883
    %v885 = vsel %vm602, %v877, -inf
    %886 = vmax.xlane.f32.xlu0 %v885
    %v887 = vpop.xlane.xlu0 %886
    %v888 = vsub.f32 %v825, %v884
    %v889 = vsub.f32 %v877, %v887
    %v890 = vmul.f32 %v888, 1.442695
    %v891 = vpow.pop %v890
    %v892 = vmul.f32 %v889, 1.442695
    %v893 = vpow.pop %v892
    %v894 = vsel %vm602, %v891, 0.0
    %895 = vadd.xlane.f32.xlu0 %v894
    %v896 = vpop.xlane.xlu0 %895
    %v897 = vsel %vm602, %v893, 0.0
    %898 = vadd.xlane.f32.xlu0 %v897
    %v899 = vpop.xlane.xlu0 %898
    %v900 = vrcp.pop %v896
    %v901 = vrcp.pop %v899
    %v902 = vmul.f32 %v891, %v900
    %v903 = vmul.f32 %v893, %v901
    %v904 = vpack.c.bf16 %v902, %v902
    %v905 = vpack.c.bf16 %v903, %v903
    %907 = vrot.lane.b32.xlu0 %v483, 96
    %v908 = vpop.permute.xlu0 %907
    %v910 = vsel %vm602, %v904, 0
    %v913 = vsel %vm127, %v908, 0
    %915 = vmatprep.subr.bf16.mxu0 0
    %916 = vmatpush1.bf16.msra.mxu0 %v913
    %917 = vmatprep.subr.bf16.mxu0 0
    %918 = vmatpush1.bf16.msra.mxu0 0
    %919 = vmatprep.subr.bf16.mxu0 0
    %920 = vmatpush1.bf16.msra.mxu0 0
    %921 = vmatprep.subr.bf16.mxu0 0
    %922 = vmatpush1.bf16.msra.mxu0 0
    %923 = vmatprep.subr.bf16.mxu0 0
    %924 = vmatpush1.bf16.msra.mxu0 0
    %925 = vmatprep.subr.bf16.mxu0 0
    %926 = vmatpush1.bf16.msra.mxu0 0
    %927 = vmatprep.subr.bf16.mxu0 0
    %928 = vmatpush1.bf16.msra.mxu0 0
    %929 = vmatprep.subr.bf16.mxu0 0
    %930 = vmatpush1.bf16.msra.mxu0 0
    %931 = vmatprep.subr.bf16.mxu0 0
    %932 = vmatpush1.bf16.msra.mxu0 0
    %933 = vmatprep.subr.bf16.mxu0 0
    %934 = vmatpush1.bf16.msra.mxu0 0
    %935 = vmatprep.subr.bf16.mxu0 0
    %936 = vmatpush1.bf16.msra.mxu0 0
    %937 = vmatprep.subr.bf16.mxu0 0
    %938 = vmatpush1.bf16.msra.mxu0 0
    %939 = vmatprep.subr.bf16.mxu0 0
    %940 = vmatpush1.bf16.msra.mxu0 0
    %941 = vmatprep.subr.bf16.mxu0 0
    %942 = vmatpush1.bf16.msra.mxu0 0
    %943 = vmatprep.subr.bf16.mxu0 0
    %944 = vmatpush1.bf16.msra.mxu0 0
    %945 = vmatprep.subr.bf16.mxu0 0
    %946 = vmatpush1.bf16.msra.mxu0 0
    %947 = vmatprep.mubr.bf16.mxu0 0
    %948 = vmatmul.mubr.bf16.gmra.mrb[0].mxu0 %v910
    %v949 = vpop.f32.mrb[0].mxu0
    %v950 = vadd.f32 0.0, %v949
    %v951 = vpop.f32.mrb[0].mxu0
    %v952 = vpop.f32.mrb[0].mxu0
    %v953 = vpop.f32.mrb[0].mxu0
    %954 = vdwg.mxu0
    %956 = vrot.lane.b32.xlu0 %v484, 96
    %v957 = vpop.permute.xlu0 %956
    %v959 = vsel %vm602, %v905, 0
    %v962 = vsel %vm127, %v957, 0
    %964 = vmatprep.subr.bf16.mxu0 0
    %965 = vmatpush1.bf16.msra.mxu0 %v962
    %966 = vmatprep.subr.bf16.mxu0 0
    %967 = vmatpush1.bf16.msra.mxu0 0
    %968 = vmatprep.subr.bf16.mxu0 0
    %969 = vmatpush1.bf16.msra.mxu0 0
    %970 = vmatprep.subr.bf16.mxu0 0
    %971 = vmatpush1.bf16.msra.mxu0 0
    %972 = vmatprep.subr.bf16.mxu0 0
    %973 = vmatpush1.bf16.msra.mxu0 0
    %974 = vmatprep.subr.bf16.mxu0 0
    %975 = vmatpush1.bf16.msra.mxu0 0
    %976 = vmatprep.subr.bf16.mxu0 0
    %977 = vmatpush1.bf16.msra.mxu0 0
    %978 = vmatprep.subr.bf16.mxu0 0
    %979 = vmatpush1.bf16.msra.mxu0 0
    %980 = vmatprep.subr.bf16.mxu0 0
    %981 = vmatpush1.bf16.msra.mxu0 0
    %982 = vmatprep.subr.bf16.mxu0 0
    %983 = vmatpush1.bf16.msra.mxu0 0
    %984 = vmatprep.subr.bf16.mxu0 0
    %985 = vmatpush1.bf16.msra.mxu0 0
    %986 = vmatprep.subr.bf16.mxu0 0
    %987 = vmatpush1.bf16.msra.mxu0 0
    %988 = vmatprep.subr.bf16.mxu0 0
    %989 = vmatpush1.bf16.msra.mxu0 0
    %990 = vmatprep.subr.bf16.mxu0 0
    %991 = vmatpush1.bf16.msra.mxu0 0
    %992 = vmatprep.subr.bf16.mxu0 0
    %993 = vmatpush1.bf16.msra.mxu0 0
    %994 = vmatprep.subr.bf16.mxu0 0
    %995 = vmatpush1.bf16.msra.mxu0 0
    %996 = vmatprep.mubr.bf16.mxu0 0
    %997 = vmatmul.mubr.bf16.gmra.mrb[0].mxu0 %v959
    %v998 = vpop.f32.mrb[0].mxu0
    %v999 = vadd.f32 0.0, %v998
    %v1000 = vpop.f32.mrb[0].mxu0
    %v1001 = vpop.f32.mrb[0].mxu0
    %v1002 = vpop.f32.mrb[0].mxu0
    %1003 = vdwg.mxu0
    %v1004 = vpack.c.bf16 %v999, %v950
    %v1009 = vunpack.c.l.b16 %v489
    %v1010 = vunpack.c.l.b16 %v490
    %v1011 = vunpack.c.l.b16 %v491
    %v1012 = vunpack.c.l.b16 %v492
    %v1013 = vpack.c.b16 %v1010, %v1009
    %v1014 = vpack.c.b16 %v1012, %v1011
    %v1018 = vsel %vm509, %v1004, 0
    %1020 = vmatprep.subr.bf16.mxu0 0
    %1021 = vmatpush1.bf16.msra.mxu0 %v1013
    %1022 = vmatprep.subr.bf16.mxu0 0
    %1023 = vmatpush1.bf16.msra.mxu0 %v1014
    %1024 = vmatprep.subr.bf16.mxu0 0
    %1025 = vmatpush1.bf16.msra.mxu0 0
    %1026 = vmatprep.subr.bf16.mxu0 0
    %1027 = vmatpush1.bf16.msra.mxu0 0
    %1028 = vmatprep.subr.bf16.mxu0 0
    %1029 = vmatpush1.bf16.msra.mxu0 0
    %1030 = vmatprep.subr.bf16.mxu0 0
    %1031 = vmatpush1.bf16.msra.mxu0 0
    %1032 = vmatprep.subr.bf16.mxu0 0
    %1033 = vmatpush1.bf16.msra.mxu0 0
    %1034 = vmatprep.subr.bf16.mxu0 0
    %1035 = vmatpush1.bf16.msra.mxu0 0
    %1036 = vmatprep.subr.bf16.mxu0 0
    %1037 = vmatpush1.bf16.msra.mxu0 0
    %1038 = vmatprep.subr.bf16.mxu0 0
    %1039 = vmatpush1.bf16.msra.mxu0 0
    %1040 = vmatprep.subr.bf16.mxu0 0
    %1041 = vmatpush1.bf16.msra.mxu0 0
    %1042 = vmatprep.subr.bf16.mxu0 0
    %1043 = vmatpush1.bf16.msra.mxu0 0
    %1044 = vmatprep.subr.bf16.mxu0 0
    %1045 = vmatpush1.bf16.msra.mxu0 0
    %1046 = vmatprep.subr.bf16.mxu0 0
    %1047 = vmatpush1.bf16.msra.mxu0 0
    %1048 = vmatprep.subr.bf16.mxu0 0
    %1049 = vmatpush1.bf16.msra.mxu0 0
    %1050 = vmatprep.subr.bf16.mxu0 0
    %1051 = vmatpush1.bf16.msra.mxu0 0
    %1052 = vmatprep.mubr.bf16.mxu0 0
    %1053 = vmatmul.mubr.bf16.gmra.mrb[0].mxu0 %v1018
    %v1054 = vpop.f32.mrb[0].mxu0
    %v1055 = vadd.f32 0.0, %v1054
    %v1056 = vpop.f32.mrb[0].mxu0
    %v1057 = vpop.f32.mrb[0].mxu0
    %v1058 = vadd.f32 0.0, %v1057
    %v1059 = vpop.f32.mrb[0].mxu0
    %1060 = vdwg.mxu0
    %v1061 = vadd.f32 %v776, %v1055
    %v1062 = vadd.f32 %v777, %v1058
    %1063 = vrot.lane.b32.xlu0 %v479, 64
    %v1064 = vpop.permute.xlu0 %1063
    %1065 = vrot.lane.b32.xlu0 %v481, 64
    %v1066 = vpop.permute.xlu0 %1065
    %v1068 = vsel %vm509, %v1064, 0
    %v1071 = vsel %vm509, %v1066, 0
    %1073 = vmatprep.subr.bf16.mxu0 0
    %1074 = vmatpush1.bf16.xpose.msra.mxu0 %v1071
    %1075 = vmatprep.subr.bf16.mxu0 0
    %1076 = vmatpush1.bf16.xpose.msra.mxu0 0
    %1077 = vmatprep.subr.bf16.mxu0 0
    %1078 = vmatpush1.bf16.xpose.msra.mxu0 0
    %1079 = vmatprep.subr.bf16.mxu0 0
    %1080 = vmatpush1.bf16.xpose.msra.mxu0 0
    %1081 = vmatprep.subr.bf16.mxu0 0
    %1082 = vmatpush1.bf16.xpose.msra.mxu0 0
    %1083 = vmatprep.subr.bf16.mxu0 0
    %1084 = vmatpush1.bf16.xpose.msra.mxu0 0
    %1085 = vmatprep.subr.bf16.mxu0 0
    %1086 = vmatpush1.bf16.xpose.msra.mxu0 0
    %1087 = vmatprep.subr.bf16.mxu0 0
    %1088 = vmatpush1.bf16.xpose.msra.mxu0 0
    %1089 = vmatprep.subr.bf16.mxu0 0
    %1090 = vmatpush1.bf16.xpose.msra.mxu0 0
    %1091 = vmatprep.subr.bf16.mxu0 0
    %1092 = vmatpush1.bf16.xpose.msra.mxu0 0
    %1093 = vmatprep.subr.bf16.mxu0 0
    %1094 = vmatpush1.bf16.xpose.msra.mxu0 0
    %1095 = vmatprep.subr.bf16.mxu0 0
    %1096 = vmatpush1.bf16.xpose.msra.mxu0 0
    %1097 = vmatprep.subr.bf16.mxu0 0
    %1098 = vmatpush1.bf16.xpose.msra.mxu0 0
    %1099 = vmatprep.subr.bf16.mxu0 0
    %1100 = vmatpush1.bf16.xpose.msra.mxu0 0
    %1101 = vmatprep.subr.bf16.mxu0 0
    %1102 = vmatpush1.bf16.xpose.msra.mxu0 0
    %1103 = vmatprep.subr.bf16.mxu0 0
    %1104 = vmatpush1.bf16.xpose.msra.mxu0 0
    %1105 = vmatprep.mubr.bf16.mxu0 0
    %1106 = vmatmul.mubr.bf16.gmra.mrb[0].mxu0 %v1068
    %v1107 = vpop.f32.mrb[0].mxu0
    %v1108 = vadd.f32 %v214, %v1107
    %v1109 = vpop.f32.mrb[0].mxu0
    %v1110 = vpop.f32.mrb[0].mxu0
    %v1111 = vpop.f32.mrb[0].mxu0
    %1112 = vdwg.mxu0
    %1113 = vrot.lane.b32.xlu0 %v480, 64
    %v1114 = vpop.permute.xlu0 %1113
    %1115 = vrot.lane.b32.xlu0 %v482, 64
    %v1116 = vpop.permute.xlu0 %1115
    %v1118 = vsel %vm509, %v1114, 0
    %v1121 = vsel %vm509, %v1116, 0
    %1123 = vmatprep.subr.bf16.mxu0 0
    %1124 = vmatpush1.bf16.xpose.msra.mxu0 %v1121
    %1125 = vmatprep.subr.bf16.mxu0 0
    %1126 = vmatpush1.bf16.xpose.msra.mxu0 0
    %1127 = vmatprep.subr.bf16.mxu0 0
    %1128 = vmatpush1.bf16.xpose.msra.mxu0 0
    %1129 = vmatprep.subr.bf16.mxu0 0
    %1130 = vmatpush1.bf16.xpose.msra.mxu0 0
    %1131 = vmatprep.subr.bf16.mxu0 0
    %1132 = vmatpush1.bf16.xpose.msra.mxu0 0
    %1133 = vmatprep.subr.bf16.mxu0 0
    %1134 = vmatpush1.bf16.xpose.msra.mxu0 0
    %1135 = vmatprep.subr.bf16.mxu0 0
    %1136 = vmatpush1.bf16.xpose.msra.mxu0 0
    %1137 = vmatprep.subr.bf16.mxu0 0
    %1138 = vmatpush1.bf16.xpose.msra.mxu0 0
    %1139 = vmatprep.subr.bf16.mxu0 0
    %1140 = vmatpush1.bf16.xpose.msra.mxu0 0
    %1141 = vmatprep.subr.bf16.mxu0 0
    %1142 = vmatpush1.bf16.xpose.msra.mxu0 0
    %1143 = vmatprep.subr.bf16.mxu0 0
    %1144 = vmatpush1.bf16.xpose.msra.mxu0 0
    %1145 = vmatprep.subr.bf16.mxu0 0
    %1146 = vmatpush1.bf16.xpose.msra.mxu0 0
    %1147 = vmatprep.subr.bf16.mxu0 0
    %1148 = vmatpush1.bf16.xpose.msra.mxu0 0
    %1149 = vmatprep.subr.bf16.mxu0 0
    %1150 = vmatpush1.bf16.xpose.msra.mxu0 0
    %1151 = vmatprep.subr.bf16.mxu0 0
    %1152 = vmatpush1.bf16.xpose.msra.mxu0 0
    %1153 = vmatprep.subr.bf16.mxu0 0
    %1154 = vmatpush1.bf16.xpose.msra.mxu0 0
    %1155 = vmatprep.mubr.bf16.mxu0 0
    %1156 = vmatmul.mubr.bf16.gmra.mrb[0].mxu0 %v1118
    %v1157 = vpop.f32.mrb[0].mxu0
    %v1158 = vadd.f32 %v214, %v1157
    %v1159 = vpop.f32.mrb[0].mxu0
    %v1160 = vpop.f32.mrb[0].mxu0
    %v1161 = vpop.f32.mrb[0].mxu0
    %1162 = vdwg.mxu0
    %v1163 = vsel %vm602, %v1108, -inf
    %1164 = vmax.xlane.f32.xlu0 %v1163
    %v1165 = vpop.xlane.xlu0 %1164
    %v1166 = vsel %vm602, %v1158, -inf
    %1167 = vmax.xlane.f32.xlu0 %v1166
    %v1168 = vpop.xlane.xlu0 %1167
    %v1169 = vsub.f32 %v1108, %v1165
    %v1170 = vsub.f32 %v1158, %v1168
    %v1171 = vmul.f32 %v1169, 1.442695
    %v1172 = vpow.pop %v1171
    %v1173 = vmul.f32 %v1170, 1.442695
    %v1174 = vpow.pop %v1173
    %v1175 = vsel %vm602, %v1172, 0.0
    %1176 = vadd.xlane.f32.xlu0 %v1175
    %v1177 = vpop.xlane.xlu0 %1176
    %v1178 = vsel %vm602, %v1174, 0.0
    %1179 = vadd.xlane.f32.xlu0 %v1178
    %v1180 = vpop.xlane.xlu0 %1179
    %v1181 = vrcp.pop %v1177
    %v1182 = vrcp.pop %v1180
    %v1183 = vmul.f32 %v1172, %v1181
    %v1184 = vmul.f32 %v1174, %v1182
    %v1185 = vpack.c.bf16 %v1183, %v1183
    %v1186 = vpack.c.bf16 %v1184, %v1184
    %1187 = vrot.lane.b32.xlu0 %v483, 64
    %v1188 = vpop.permute.xlu0 %1187
    %v1190 = vsel %vm602, %v1185, 0
    %v1193 = vsel %vm127, %v1188, 0
    %1195 = vmatprep.subr.bf16.mxu0 0
    %1196 = vmatpush1.bf16.msra.mxu0 %v1193
    %1197 = vmatprep.subr.bf16.mxu0 0
    %1198 = vmatpush1.bf16.msra.mxu0 0
    %1199 = vmatprep.subr.bf16.mxu0 0
    %1200 = vmatpush1.bf16.msra.mxu0 0
    %1201 = vmatprep.subr.bf16.mxu0 0
    %1202 = vmatpush1.bf16.msra.mxu0 0
    %1203 = vmatprep.subr.bf16.mxu0 0
    %1204 = vmatpush1.bf16.msra.mxu0 0
    %1205 = vmatprep.subr.bf16.mxu0 0
    %1206 = vmatpush1.bf16.msra.mxu0 0
    %1207 = vmatprep.subr.bf16.mxu0 0
    %1208 = vmatpush1.bf16.msra.mxu0 0
    %1209 = vmatprep.subr.bf16.mxu0 0
    %1210 = vmatpush1.bf16.msra.mxu0 0
    %1211 = vmatprep.subr.bf16.mxu0 0
    %1212 = vmatpush1.bf16.msra.mxu0 0
    %1213 = vmatprep.subr.bf16.mxu0 0
    %1214 = vmatpush1.bf16.msra.mxu0 0
    %1215 = vmatprep.subr.bf16.mxu0 0
    %1216 = vmatpush1.bf16.msra.mxu0 0
    %1217 = vmatprep.subr.bf16.mxu0 0
    %1218 = vmatpush1.bf16.msra.mxu0 0
    %1219 = vmatprep.subr.bf16.mxu0 0
    %1220 = vmatpush1.bf16.msra.mxu0 0
    %1221 = vmatprep.subr.bf16.mxu0 0
    %1222 = vmatpush1.bf16.msra.mxu0 0
    %1223 = vmatprep.subr.bf16.mxu0 0
    %1224 = vmatpush1.bf16.msra.mxu0 0
    %1225 = vmatprep.subr.bf16.mxu0 0
    %1226 = vmatpush1.bf16.msra.mxu0 0
    %1227 = vmatprep.mubr.bf16.mxu0 0
    %1228 = vmatmul.mubr.bf16.gmra.mrb[0].mxu0 %v1190
    %v1229 = vpop.f32.mrb[0].mxu0
    %v1230 = vadd.f32 0.0, %v1229
    %v1231 = vpop.f32.mrb[0].mxu0
    %v1232 = vpop.f32.mrb[0].mxu0
    %v1233 = vpop.f32.mrb[0].mxu0
    %1234 = vdwg.mxu0
    %1235 = vrot.lane.b32.xlu0 %v484, 64
    %v1236 = vpop.permute.xlu0 %1235
    %v1238 = vsel %vm602, %v1186, 0
    %v1241 = vsel %vm127, %v1236, 0
    %1243 = vmatprep.subr.bf16.mxu0 0
    %1244 = vmatpush1.bf16.msra.mxu0 %v1241
    %1245 = vmatprep.subr.bf16.mxu0 0
    %1246 = vmatpush1.bf16.msra.mxu0 0
    %1247 = vmatprep.subr.bf16.mxu0 0
    %1248 = vmatpush1.bf16.msra.mxu0 0
    %1249 = vmatprep.subr.bf16.mxu0 0
    %1250 = vmatpush1.bf16.msra.mxu0 0
    %1251 = vmatprep.subr.bf16.mxu0 0
    %1252 = vmatpush1.bf16.msra.mxu0 0
    %1253 = vmatprep.subr.bf16.mxu0 0
    %1254 = vmatpush1.bf16.msra.mxu0 0
    %1255 = vmatprep.subr.bf16.mxu0 0
    %1256 = vmatpush1.bf16.msra.mxu0 0
    %1257 = vmatprep.subr.bf16.mxu0 0
    %1258 = vmatpush1.bf16.msra.mxu0 0
    %1259 = vmatprep.subr.bf16.mxu0 0
    %1260 = vmatpush1.bf16.msra.mxu0 0
    %1261 = vmatprep.subr.bf16.mxu0 0
    %1262 = vmatpush1.bf16.msra.mxu0 0
    %1263 = vmatprep.subr.bf16.mxu0 0
    %1264 = vmatpush1.bf16.msra.mxu0 0
    %1265 = vmatprep.subr.bf16.mxu0 0
    %1266 = vmatpush1.bf16.msra.mxu0 0
    %1267 = vmatprep.subr.bf16.mxu0 0
    %1268 = vmatpush1.bf16.msra.mxu0 0
    %1269 = vmatprep.subr.bf16.mxu0 0
    %1270 = vmatpush1.bf16.msra.mxu0 0
    %1271 = vmatprep.subr.bf16.mxu0 0
    %1272 = vmatpush1.bf16.msra.mxu0 0
    %1273 = vmatprep.subr.bf16.mxu0 0
    %1274 = vmatpush1.bf16.msra.mxu0 0
    %1275 = vmatprep.mubr.bf16.mxu0 0
    %1276 = vmatmul.mubr.bf16.gmra.mrb[0].mxu0 %v1238
    %v1277 = vpop.f32.mrb[0].mxu0
    %v1278 = vadd.f32 0.0, %v1277
    %v1279 = vpop.f32.mrb[0].mxu0
    %v1280 = vpop.f32.mrb[0].mxu0
    %v1281 = vpop.f32.mrb[0].mxu0
    %1282 = vdwg.mxu0
    %v1283 = vpack.c.bf16 %v1278, %v1230
    %v1288 = vunpack.c.l.b16 %v493
    %v1289 = vunpack.c.l.b16 %v494
    %v1290 = vunpack.c.l.b16 %v495
    %v1291 = vunpack.c.l.b16 %v496
    %v1292 = vpack.c.b16 %v1289, %v1288
    %v1293 = vpack.c.b16 %v1291, %v1290
    %v1297 = vsel %vm509, %v1283, 0
    %1299 = vmatprep.subr.bf16.mxu0 0
    %1300 = vmatpush1.bf16.msra.mxu0 %v1292
    %1301 = vmatprep.subr.bf16.mxu0 0
    %1302 = vmatpush1.bf16.msra.mxu0 %v1293
    %1303 = vmatprep.subr.bf16.mxu0 0
    %1304 = vmatpush1.bf16.msra.mxu0 0
    %1305 = vmatprep.subr.bf16.mxu0 0
    %1306 = vmatpush1.bf16.msra.mxu0 0
    %1307 = vmatprep.subr.bf16.mxu0 0
    %1308 = vmatpush1.bf16.msra.mxu0 0
    %1309 = vmatprep.subr.bf16.mxu0 0
    %1310 = vmatpush1.bf16.msra.mxu0 0
    %1311 = vmatprep.subr.bf16.mxu0 0
    %1312 = vmatpush1.bf16.msra.mxu0 0
    %1313 = vmatprep.subr.bf16.mxu0 0
    %1314 = vmatpush1.bf16.msra.mxu0 0
    %1315 = vmatprep.subr.bf16.mxu0 0
    %1316 = vmatpush1.bf16.msra.mxu0 0
    %1317 = vmatprep.subr.bf16.mxu0 0
    %1318 = vmatpush1.bf16.msra.mxu0 0
    %1319 = vmatprep.subr.bf16.mxu0 0
    %1320 = vmatpush1.bf16.msra.mxu0 0
    %1321 = vmatprep.subr.bf16.mxu0 0
    %1322 = vmatpush1.bf16.msra.mxu0 0
    %1323 = vmatprep.subr.bf16.mxu0 0
    %1324 = vmatpush1.bf16.msra.mxu0 0
    %1325 = vmatprep.subr.bf16.mxu0 0
    %1326 = vmatpush1.bf16.msra.mxu0 0
    %1327 = vmatprep.subr.bf16.mxu0 0
    %1328 = vmatpush1.bf16.msra.mxu0 0
    %1329 = vmatprep.subr.bf16.mxu0 0
    %1330 = vmatpush1.bf16.msra.mxu0 0
    %1331 = vmatprep.mubr.bf16.mxu0 0
    %1332 = vmatmul.mubr.bf16.gmra.mrb[0].mxu0 %v1297
    %v1333 = vpop.f32.mrb[0].mxu0
    %v1334 = vadd.f32 0.0, %v1333
    %v1335 = vpop.f32.mrb[0].mxu0
    %v1336 = vpop.f32.mrb[0].mxu0
    %v1337 = vadd.f32 0.0, %v1336
    %v1338 = vpop.f32.mrb[0].mxu0
    %1339 = vdwg.mxu0
    %v1340 = vadd.f32 %v1061, %v1334
    %v1341 = vadd.f32 %v1062, %v1337
    %1342 = vrot.lane.b32.xlu0 %v479, 32
    %v1343 = vpop.permute.xlu0 %1342
    %1344 = vrot.lane.b32.xlu0 %v481, 32
    %v1345 = vpop.permute.xlu0 %1344
    %v1347 = vsel %vm509, %v1343, 0
    %v1350 = vsel %vm509, %v1345, 0
    %1352 = vmatprep.subr.bf16.mxu0 0
    %1353 = vmatpush1.bf16.xpose.msra.mxu0 %v1350
    %1354 = vmatprep.subr.bf16.mxu0 0
    %1355 = vmatpush1.bf16.xpose.msra.mxu0 0
    %1356 = vmatprep.subr.bf16.mxu0 0
    %1357 = vmatpush1.bf16.xpose.msra.mxu0 0
    %1358 = vmatprep.subr.bf16.mxu0 0
    %1359 = vmatpush1.bf16.xpose.msra.mxu0 0
    %1360 = vmatprep.subr.bf16.mxu0 0
    %1361 = vmatpush1.bf16.xpose.msra.mxu0 0
    %1362 = vmatprep.subr.bf16.mxu0 0
    %1363 = vmatpush1.bf16.xpose.msra.mxu0 0
    %1364 = vmatprep.subr.bf16.mxu0 0
    %1365 = vmatpush1.bf16.xpose.msra.mxu0 0
    %1366 = vmatprep.subr.bf16.mxu0 0
    %1367 = vmatpush1.bf16.xpose.msra.mxu0 0
    %1368 = vmatprep.subr.bf16.mxu0 0
    %1369 = vmatpush1.bf16.xpose.msra.mxu0 0
    %1370 = vmatprep.subr.bf16.mxu0 0
    %1371 = vmatpush1.bf16.xpose.msra.mxu0 0
    %1372 = vmatprep.subr.bf16.mxu0 0
    %1373 = vmatpush1.bf16.xpose.msra.mxu0 0
    %1374 = vmatprep.subr.bf16.mxu0 0
    %1375 = vmatpush1.bf16.xpose.msra.mxu0 0
    %1376 = vmatprep.subr.bf16.mxu0 0
    %1377 = vmatpush1.bf16.xpose.msra.mxu0 0
    %1378 = vmatprep.subr.bf16.mxu0 0
    %1379 = vmatpush1.bf16.xpose.msra.mxu0 0
    %1380 = vmatprep.subr.bf16.mxu0 0
    %1381 = vmatpush1.bf16.xpose.msra.mxu0 0
    %1382 = vmatprep.subr.bf16.mxu0 0
    %1383 = vmatpush1.bf16.xpose.msra.mxu0 0
    %1384 = vmatprep.mubr.bf16.mxu0 0
    %1385 = vmatmul.mubr.bf16.gmra.mrb[0].mxu0 %v1347
    %v1386 = vpop.f32.mrb[0].mxu0
    %v1387 = vadd.f32 %v214, %v1386
    %v1388 = vpop.f32.mrb[0].mxu0
    %v1389 = vpop.f32.mrb[0].mxu0
    %v1390 = vpop.f32.mrb[0].mxu0
    %1391 = vdwg.mxu0
    %1392 = vrot.lane.b32.xlu0 %v480, 32
    %v1393 = vpop.permute.xlu0 %1392
    %1394 = vrot.lane.b32.xlu0 %v482, 32
    %v1395 = vpop.permute.xlu0 %1394
    %v1397 = vsel %vm509, %v1393, 0
    %v1400 = vsel %vm509, %v1395, 0
    %1402 = vmatprep.subr.bf16.mxu0 0
    %1403 = vmatpush1.bf16.xpose.msra.mxu0 %v1400
    %1404 = vmatprep.subr.bf16.mxu0 0
    %1405 = vmatpush1.bf16.xpose.msra.mxu0 0
    %1406 = vmatprep.subr.bf16.mxu0 0
    %1407 = vmatpush1.bf16.xpose.msra.mxu0 0
    %1408 = vmatprep.subr.bf16.mxu0 0
    %1409 = vmatpush1.bf16.xpose.msra.mxu0 0
    %1410 = vmatprep.subr.bf16.mxu0 0
    %1411 = vmatpush1.bf16.xpose.msra.mxu0 0
    %1412 = vmatprep.subr.bf16.mxu0 0
    %1413 = vmatpush1.bf16.xpose.msra.mxu0 0
    %1414 = vmatprep.subr.bf16.mxu0 0
    %1415 = vmatpush1.bf16.xpose.msra.mxu0 0
    %1416 = vmatprep.subr.bf16.mxu0 0
    %1417 = vmatpush1.bf16.xpose.msra.mxu0 0
    %1418 = vmatprep.subr.bf16.mxu0 0
    %1419 = vmatpush1.bf16.xpose.msra.mxu0 0
    %1420 = vmatprep.subr.bf16.mxu0 0
    %1421 = vmatpush1.bf16.xpose.msra.mxu0 0
    %1422 = vmatprep.subr.bf16.mxu0 0
    %1423 = vmatpush1.bf16.xpose.msra.mxu0 0
    %1424 = vmatprep.subr.bf16.mxu0 0
    %1425 = vmatpush1.bf16.xpose.msra.mxu0 0
    %1426 = vmatprep.subr.bf16.mxu0 0
    %1427 = vmatpush1.bf16.xpose.msra.mxu0 0
    %1428 = vmatprep.subr.bf16.mxu0 0
    %1429 = vmatpush1.bf16.xpose.msra.mxu0 0
    %1430 = vmatprep.subr.bf16.mxu0 0
    %1431 = vmatpush1.bf16.xpose.msra.mxu0 0
    %1432 = vmatprep.subr.bf16.mxu0 0
    %1433 = vmatpush1.bf16.xpose.msra.mxu0 0
    %1434 = vmatprep.mubr.bf16.mxu0 0
    %1435 = vmatmul.mubr.bf16.gmra.mrb[0].mxu0 %v1397
    %v1436 = vpop.f32.mrb[0].mxu0
    %v1437 = vadd.f32 %v214, %v1436
    %v1438 = vpop.f32.mrb[0].mxu0
    %v1439 = vpop.f32.mrb[0].mxu0
    %v1440 = vpop.f32.mrb[0].mxu0
    %1441 = vdwg.mxu0
    %v1442 = vsel %vm602, %v1387, -inf
    %1443 = vmax.xlane.f32.xlu0 %v1442
    %v1444 = vpop.xlane.xlu0 %1443
    %v1445 = vsel %vm602, %v1437, -inf
    %1446 = vmax.xlane.f32.xlu0 %v1445
    %v1447 = vpop.xlane.xlu0 %1446
    %v1448 = vsub.f32 %v1387, %v1444
    %v1449 = vsub.f32 %v1437, %v1447
    %v1450 = vmul.f32 %v1448, 1.442695
    %v1451 = vpow.pop %v1450
    %v1452 = vmul.f32 %v1449, 1.442695
    %v1453 = vpow.pop %v1452
    %v1454 = vsel %vm602, %v1451, 0.0
    %1455 = vadd.xlane.f32.xlu0 %v1454
    %v1456 = vpop.xlane.xlu0 %1455
    %v1457 = vsel %vm602, %v1453, 0.0
    %1458 = vadd.xlane.f32.xlu0 %v1457
    %v1459 = vpop.xlane.xlu0 %1458
    %v1460 = vrcp.pop %v1456
    %v1461 = vrcp.pop %v1459
    %v1462 = vmul.f32 %v1451, %v1460
    %v1463 = vmul.f32 %v1453, %v1461
    %v1464 = vpack.c.bf16 %v1462, %v1462
    %v1465 = vpack.c.bf16 %v1463, %v1463
    %1466 = vrot.lane.b32.xlu0 %v483, 32
    %v1467 = vpop.permute.xlu0 %1466
    %v1469 = vsel %vm602, %v1464, 0
    %v1472 = vsel %vm127, %v1467, 0
    %1474 = vmatprep.subr.bf16.mxu0 0
    %1475 = vmatpush1.bf16.msra.mxu0 %v1472
    %1476 = vmatprep.subr.bf16.mxu0 0
    %1477 = vmatpush1.bf16.msra.mxu0 0
    %1478 = vmatprep.subr.bf16.mxu0 0
    %1479 = vmatpush1.bf16.msra.mxu0 0
    %1480 = vmatprep.subr.bf16.mxu0 0
    %1481 = vmatpush1.bf16.msra.mxu0 0
    %1482 = vmatprep.subr.bf16.mxu0 0
    %1483 = vmatpush1.bf16.msra.mxu0 0
    %1484 = vmatprep.subr.bf16.mxu0 0
    %1485 = vmatpush1.bf16.msra.mxu0 0
    %1486 = vmatprep.subr.bf16.mxu0 0
    %1487 = vmatpush1.bf16.msra.mxu0 0
    %1488 = vmatprep.subr.bf16.mxu0 0
    %1489 = vmatpush1.bf16.msra.mxu0 0
    %1490 = vmatprep.subr.bf16.mxu0 0
    %1491 = vmatpush1.bf16.msra.mxu0 0
    %1492 = vmatprep.subr.bf16.mxu0 0
    %1493 = vmatpush1.bf16.msra.mxu0 0
    %1494 = vmatprep.subr.bf16.mxu0 0
    %1495 = vmatpush1.bf16.msra.mxu0 0
    %1496 = vmatprep.subr.bf16.mxu0 0
    %1497 = vmatpush1.bf16.msra.mxu0 0
    %1498 = vmatprep.subr.bf16.mxu0 0
    %1499 = vmatpush1.bf16.msra.mxu0 0
    %1500 = vmatprep.subr.bf16.mxu0 0
    %1501 = vmatpush1.bf16.msra.mxu0 0
    %1502 = vmatprep.subr.bf16.mxu0 0
    %1503 = vmatpush1.bf16.msra.mxu0 0
    %1504 = vmatprep.subr.bf16.mxu0 0
    %1505 = vmatpush1.bf16.msra.mxu0 0
    %1506 = vmatprep.mubr.bf16.mxu0 0
    %1507 = vmatmul.mubr.bf16.gmra.mrb[0].mxu0 %v1469
    %v1508 = vpop.f32.mrb[0].mxu0
    %v1509 = vadd.f32 0.0, %v1508
    %v1510 = vpop.f32.mrb[0].mxu0
    %v1511 = vpop.f32.mrb[0].mxu0
    %v1512 = vpop.f32.mrb[0].mxu0
    %1513 = vdwg.mxu0
    %1514 = vrot.lane.b32.xlu0 %v484, 32
    %v1515 = vpop.permute.xlu0 %1514
    %v1517 = vsel %vm602, %v1465, 0
    %v1520 = vsel %vm127, %v1515, 0
    %1522 = vmatprep.subr.bf16.mxu0 0
    %1523 = vmatpush1.bf16.msra.mxu0 %v1520
    %1524 = vmatprep.subr.bf16.mxu0 0
    %1525 = vmatpush1.bf16.msra.mxu0 0
    %1526 = vmatprep.subr.bf16.mxu0 0
    %1527 = vmatpush1.bf16.msra.mxu0 0
    %1528 = vmatprep.subr.bf16.mxu0 0
    %1529 = vmatpush1.bf16.msra.mxu0 0
    %1530 = vmatprep.subr.bf16.mxu0 0
    %1531 = vmatpush1.bf16.msra.mxu0 0
    %1532 = vmatprep.subr.bf16.mxu0 0
    %1533 = vmatpush1.bf16.msra.mxu0 0
    %1534 = vmatprep.subr.bf16.mxu0 0
    %1535 = vmatpush1.bf16.msra.mxu0 0
    %1536 = vmatprep.subr.bf16.mxu0 0
    %1537 = vmatpush1.bf16.msra.mxu0 0
    %1538 = vmatprep.subr.bf16.mxu0 0
    %1539 = vmatpush1.bf16.msra.mxu0 0
    %1540 = vmatprep.subr.bf16.mxu0 0
    %1541 = vmatpush1.bf16.msra.mxu0 0
    %1542 = vmatprep.subr.bf16.mxu0 0
    %1543 = vmatpush1.bf16.msra.mxu0 0
    %1544 = vmatprep.subr.bf16.mxu0 0
    %1545 = vmatpush1.bf16.msra.mxu0 0
    %1546 = vmatprep.subr.bf16.mxu0 0
    %1547 = vmatpush1.bf16.msra.mxu0 0
    %1548 = vmatprep.subr.bf16.mxu0 0
    %1549 = vmatpush1.bf16.msra.mxu0 0
    %1550 = vmatprep.subr.bf16.mxu0 0
    %1551 = vmatpush1.bf16.msra.mxu0 0
    %1552 = vmatprep.subr.bf16.mxu0 0
    %1553 = vmatpush1.bf16.msra.mxu0 0
    %1554 = vmatprep.mubr.bf16.mxu0 0
    %1555 = vmatmul.mubr.bf16.gmra.mrb[0].mxu0 %v1517
    %v1556 = vpop.f32.mrb[0].mxu0
    %v1557 = vadd.f32 0.0, %v1556
    %v1558 = vpop.f32.mrb[0].mxu0
    %v1559 = vpop.f32.mrb[0].mxu0
    %v1560 = vpop.f32.mrb[0].mxu0
    %1561 = vdwg.mxu0
    %v1562 = vpack.c.bf16 %v1557, %v1509
    %v1567 = vunpack.c.l.b16 %v497
    %v1568 = vunpack.c.l.b16 %v498
    %v1569 = vunpack.c.l.b16 %v499
    %v1570 = vunpack.c.l.b16 %v500
    %v1571 = vpack.c.b16 %v1568, %v1567
    %v1572 = vpack.c.b16 %v1570, %v1569
    %v1576 = vsel %vm509, %v1562, 0
    %1578 = vmatprep.subr.bf16.mxu0 0
    %1579 = vmatpush1.bf16.msra.mxu0 %v1571
    %1580 = vmatprep.subr.bf16.mxu0 0
    %1581 = vmatpush1.bf16.msra.mxu0 %v1572
    %1582 = vmatprep.subr.bf16.mxu0 0
    %1583 = vmatpush1.bf16.msra.mxu0 0
    %1584 = vmatprep.subr.bf16.mxu0 0
    %1585 = vmatpush1.bf16.msra.mxu0 0
    %1586 = vmatprep.subr.bf16.mxu0 0
    %1587 = vmatpush1.bf16.msra.mxu0 0
    %1588 = vmatprep.subr.bf16.mxu0 0
    %1589 = vmatpush1.bf16.msra.mxu0 0
    %1590 = vmatprep.subr.bf16.mxu0 0
    %1591 = vmatpush1.bf16.msra.mxu0 0
    %1592 = vmatprep.subr.bf16.mxu0 0
    %1593 = vmatpush1.bf16.msra.mxu0 0
    %1594 = vmatprep.subr.bf16.mxu0 0
    %1595 = vmatpush1.bf16.msra.mxu0 0
    %1596 = vmatprep.subr.bf16.mxu0 0
    %1597 = vmatpush1.bf16.msra.mxu0 0
    %1598 = vmatprep.subr.bf16.mxu0 0
    %1599 = vmatpush1.bf16.msra.mxu0 0
    %1600 = vmatprep.subr.bf16.mxu0 0
    %1601 = vmatpush1.bf16.msra.mxu0 0
    %1602 = vmatprep.subr.bf16.mxu0 0
    %1603 = vmatpush1.bf16.msra.mxu0 0
    %1604 = vmatprep.subr.bf16.mxu0 0
    %1605 = vmatpush1.bf16.msra.mxu0 0
    %1606 = vmatprep.subr.bf16.mxu0 0
    %1607 = vmatpush1.bf16.msra.mxu0 0
    %1608 = vmatprep.subr.bf16.mxu0 0
    %1609 = vmatpush1.bf16.msra.mxu0 0
    %1610 = vmatprep.mubr.bf16.mxu0 0
    %1611 = vmatmul.mubr.bf16.gmra.mrb[0].mxu0 %v1576
    %v1612 = vpop.f32.mrb[0].mxu0
    %v1613 = vadd.f32 0.0, %v1612
    %v1614 = vpop.f32.mrb[0].mxu0
    %v1615 = vpop.f32.mrb[0].mxu0
    %v1616 = vadd.f32 0.0, %v1615
    %v1617 = vpop.f32.mrb[0].mxu0
    %1618 = vdwg.mxu0
    %v1619 = vadd.f32 %v1340, %v1613
    %v1620 = vadd.f32 %v1341, %v1616
    %v1621 = vadd.f32 %v207, %v1619
    %v1622 = vadd.f32 %v208, %v1620
    %v1623 = vld [vmem:[%s12] sm:$0x1]
    %v1624 = vld [vmem:[%s13] sm:$0x1]
    %1625 = vadd.xlane.f32.xlu0 %v1621
    %v1626 = vpop.xlane.xlu0 %1625
    %1627 = vadd.xlane.f32.xlu0 %v1622
    %v1628 = vpop.xlane.xlu0 %1627
    %v1629 = vrcp.pop 128.0
    %v1630 = vmul.f32 %v1626, %v1629
    %v1631 = vmul.f32 %v1628, %v1629
    %v1632 = vsub.f32 %v1621, %v1630
    %v1633 = vsub.f32 %v1622, %v1631
    %v1634 = vmul.f32 %v1632, %v1632
    %v1635 = vmul.f32 %v1633, %v1633
    %1636 = vadd.xlane.f32.xlu0 %v1634
    %v1637 = vpop.xlane.xlu0 %1636
    %1638 = vadd.xlane.f32.xlu0 %v1635
    %v1639 = vpop.xlane.xlu0 %1638
    %v1640 = vmul.f32 %v1637, %v1629
    %v1641 = vmul.f32 %v1639, %v1629
    %v1642 = vadd.f32 %v1640, 1e-05
    %v1643 = vadd.f32 %v1641, 1e-05
    %v1644 = vrsqrt.pop %v1642
    %v1645 = vrsqrt.pop %v1643
    %v1646 = vmul.f32 %v1632, %v1644
    %v1647 = vmul.f32 %v1633, %v1645
    %v1649 = vlaneseq
    %v1650 = vshrl.u32 %v1649, 7
    %v1651 = vsub.s32 0, %v1650
    %v1652 = vrot.slane %v1623, %v1651
    %v1654 = vmul.f32 %v1646, %v1652
    %v1655 = vmul.f32 %v1647, %v1652
    %v1657 = vlaneseq
    %v1658 = vshrl.u32 %v1657, 7
    %v1659 = vsub.s32 0, %v1658
    %v1660 = vrot.slane %v1624, %v1659
    %v1662 = vadd.f32 %v1654, %v1660
    %v1663 = vadd.f32 %v1655, %v1660
    %v1664 = vpack.c.bf16 %v1663, %v1662
    %v1665 = vld [vmem:[#allocation7] sm:$0xff]
    %v1666 = vld [vmem:[#allocation7 + $0x8] sm:$0xff]
    %v1667 = vld [vmem:[#allocation7 + $0x10] sm:$0xff]
    %v1668 = vld [vmem:[#allocation7 + $0x18] sm:$0xff]
    %v1669 = vld [vmem:[#allocation7 + $0x20] sm:$0xff]
    %v1670 = vld [vmem:[#allocation7 + $0x28] sm:$0xff]
    %v1671 = vld [vmem:[#allocation7 + $0x30] sm:$0xff]
    %v1672 = vld [vmem:[#allocation7 + $0x38] sm:$0xff]
    %v1673 = vld [vmem:[#allocation7 + $0x40] sm:$0xff]
    %v1674 = vld [vmem:[#allocation7 + $0x48] sm:$0xff]
    %v1675 = vld [vmem:[#allocation7 + $0x50] sm:$0xff]
    %v1676 = vld [vmem:[#allocation7 + $0x58] sm:$0xff]
    %v1677 = vld [vmem:[#allocation7 + $0x60] sm:$0xff]
    %v1678 = vld [vmem:[#allocation7 + $0x68] sm:$0xff]
    %v1679 = vld [vmem:[#allocation7 + $0x70] sm:$0xff]
    %v1680 = vld [vmem:[#allocation7 + $0x78] sm:$0xff]
    %v1681 = vld [vmem:[%s9] sm:$0x3]
    %v1683 = vlaneseq
    %v1684 = vshrl.u32 %v1683, 7
    %v1685 = vsub.s32 0, %v1684
    %v1686 = vrot.slane %v1681, %v1685
    %v1687 = vlaneseq
    %v1688 = vshrl.u32 %v1687, 7
    %v1689 = vsub.s32 1, %v1688
    %v1690 = vrot.slane %v1681, %v1689
    %v1709 = vunpack.c.l.b16 %v1665
    %v1710 = vunpack.c.h.b16 %v1665
    %v1711 = vunpack.c.l.b16 %v1666
    %v1712 = vunpack.c.h.b16 %v1666
    %v1713 = vunpack.c.l.b16 %v1667
    %v1714 = vunpack.c.h.b16 %v1667
    %v1715 = vunpack.c.l.b16 %v1668
    %v1716 = vunpack.c.h.b16 %v1668
    %v1717 = vunpack.c.l.b16 %v1669
    %v1718 = vunpack.c.h.b16 %v1669
    %v1719 = vunpack.c.l.b16 %v1670
    %v1720 = vunpack.c.h.b16 %v1670
    %v1721 = vunpack.c.l.b16 %v1671
    %v1722 = vunpack.c.h.b16 %v1671
    %v1723 = vunpack.c.l.b16 %v1672
    %v1724 = vunpack.c.h.b16 %v1672
    %v1725 = vunpack.c.l.b16 %v1673
    %v1726 = vunpack.c.h.b16 %v1673
    %v1727 = vunpack.c.l.b16 %v1674
    %v1728 = vunpack.c.h.b16 %v1674
    %v1729 = vunpack.c.l.b16 %v1675
    %v1730 = vunpack.c.h.b16 %v1675
    %v1731 = vunpack.c.l.b16 %v1676
    %v1732 = vunpack.c.h.b16 %v1676
    %v1733 = vunpack.c.l.b16 %v1677
    %v1734 = vunpack.c.h.b16 %v1677
    %v1735 = vunpack.c.l.b16 %v1678
    %v1736 = vunpack.c.h.b16 %v1678
    %v1737 = vunpack.c.l.b16 %v1679
    %v1738 = vunpack.c.h.b16 %v1679
    %v1739 = vunpack.c.l.b16 %v1680
    %v1740 = vunpack.c.h.b16 %v1680
    %v1741 = vpack.c.b16 %v1711, %v1709
    %v1742 = vpack.c.b16 %v1712, %v1710
    %v1743 = vpack.c.b16 %v1715, %v1713
    %v1744 = vpack.c.b16 %v1716, %v1714
    %v1745 = vpack.c.b16 %v1719, %v1717
    %v1746 = vpack.c.b16 %v1720, %v1718
    %v1747 = vpack.c.b16 %v1723, %v1721
    %v1748 = vpack.c.b16 %v1724, %v1722
    %v1749 = vpack.c.b16 %v1727, %v1725
    %v1750 = vpack.c.b16 %v1728, %v1726
    %v1751 = vpack.c.b16 %v1731, %v1729
    %v1752 = vpack.c.b16 %v1732, %v1730
    %v1753 = vpack.c.b16 %v1735, %v1733
    %v1754 = vpack.c.b16 %v1736, %v1734
    %v1755 = vpack.c.b16 %v1739, %v1737
    %v1756 = vpack.c.b16 %v1740, %v1738
    %1773 = vmatprep.subr.bf16.mxu0 %v1742
    %1774 = vmatpush1.bf16.msra.mxu0 %v1741
    %1775 = vmatprep.subr.bf16.mxu0 %v1744
    %1776 = vmatpush1.bf16.msra.mxu0 %v1743
    %1777 = vmatprep.subr.bf16.mxu0 %v1746
    %1778 = vmatpush1.bf16.msra.mxu0 %v1745
    %1779 = vmatprep.subr.bf16.mxu0 %v1748
    %1780 = vmatpush1.bf16.msra.mxu0 %v1747
    %1781 = vmatprep.subr.bf16.mxu0 %v1750
    %1782 = vmatpush1.bf16.msra.mxu0 %v1749
    %1783 = vmatprep.subr.bf16.mxu0 %v1752
    %1784 = vmatpush1.bf16.msra.mxu0 %v1751
    %1785 = vmatprep.subr.bf16.mxu0 %v1754
    %1786 = vmatpush1.bf16.msra.mxu0 %v1753
    %1787 = vmatprep.subr.bf16.mxu0 %v1756
    %1788 = vmatpush1.bf16.msra.mxu0 %v1755
    %1789 = vmatprep.subr.bf16.mxu0 0
    %1790 = vmatpush1.bf16.msra.mxu0 0
    %1791 = vmatprep.subr.bf16.mxu0 0
    %1792 = vmatpush1.bf16.msra.mxu0 0
    %1793 = vmatprep.subr.bf16.mxu0 0
    %1794 = vmatpush1.bf16.msra.mxu0 0
    %1795 = vmatprep.subr.bf16.mxu0 0
    %1796 = vmatpush1.bf16.msra.mxu0 0
    %1797 = vmatprep.subr.bf16.mxu0 0
    %1798 = vmatpush1.bf16.msra.mxu0 0
    %1799 = vmatprep.subr.bf16.mxu0 0
    %1800 = vmatpush1.bf16.msra.mxu0 0
    %1801 = vmatprep.subr.bf16.mxu0 0
    %1802 = vmatpush1.bf16.msra.mxu0 0
    %1803 = vmatprep.subr.bf16.mxu0 0
    %1804 = vmatpush1.bf16.msra.mxu0 0
    %1805 = vmatprep.mubr.bf16.mxu0 0
    %1806 = vmatmul.mubr.bf16.gmra.mrb[0].mxu0 %v1664
    %v1807 = vpop.f32.mrb[0].mxu0
    %v1808 = vadd.f32 %v1686, %v1807
    %v1809 = vpop.f32.mrb[0].mxu0
    %v1810 = vadd.f32 %v1690, %v1809
    %v1811 = vpop.f32.mrb[0].mxu0
    %v1812 = vadd.f32 %v1686, %v1811
    %v1813 = vpop.f32.mrb[0].mxu0
    %v1814 = vadd.f32 %v1690, %v1813
    %1815 = vdwg.mxu0
    %v1816 = vmax.f32 %v1808, 0.0
    %v1817 = vmax.f32 %v1810, 0.0
    %v1818 = vmax.f32 %v1812, 0.0
    %v1819 = vmax.f32 %v1814, 0.0
    %v1820 = vpack.c.bf16 %v1818, %v1816
    %v1821 = vpack.c.bf16 %v1819, %v1817
    %v1822 = vld [vmem:[#allocation8] sm:$0xf]
    %v1823 = vld [vmem:[#allocation8 + $0x4] sm:$0xf]
    %v1824 = vld [vmem:[#allocation8 + $0x8] sm:$0xf]
    %v1825 = vld [vmem:[#allocation8 + $0xc] sm:$0xf]
    %v1826 = vld [vmem:[#allocation8 + $0x10] sm:$0xf]
    %v1827 = vld [vmem:[#allocation8 + $0x14] sm:$0xf]
    %v1828 = vld [vmem:[#allocation8 + $0x18] sm:$0xf]
    %v1829 = vld [vmem:[#allocation8 + $0x1c] sm:$0xf]
    %v1830 = vld [vmem:[#allocation8 + $0x20] sm:$0xf]
    %v1831 = vld [vmem:[#allocation8 + $0x24] sm:$0xf]
    %v1832 = vld [vmem:[#allocation8 + $0x28] sm:$0xf]
    %v1833 = vld [vmem:[#allocation8 + $0x2c] sm:$0xf]
    %v1834 = vld [vmem:[#allocation8 + $0x30] sm:$0xf]
    %v1835 = vld [vmem:[#allocation8 + $0x34] sm:$0xf]
    %v1836 = vld [vmem:[#allocation8 + $0x38] sm:$0xf]
    %v1837 = vld [vmem:[#allocation8 + $0x3c] sm:$0xf]
    %v1838 = vld [vmem:[#allocation8 + $0x40] sm:$0xf]
    %v1839 = vld [vmem:[#allocation8 + $0x44] sm:$0xf]
    %v1840 = vld [vmem:[#allocation8 + $0x48] sm:$0xf]
    %v1841 = vld [vmem:[#allocation8 + $0x4c] sm:$0xf]
    %v1842 = vld [vmem:[#allocation8 + $0x50] sm:$0xf]
    %v1843 = vld [vmem:[#allocation8 + $0x54] sm:$0xf]
    %v1844 = vld [vmem:[#allocation8 + $0x58] sm:$0xf]
    %v1845 = vld [vmem:[#allocation8 + $0x5c] sm:$0xf]
    %v1846 = vld [vmem:[#allocation8 + $0x60] sm:$0xf]
    %v1847 = vld [vmem:[#allocation8 + $0x64] sm:$0xf]
    %v1848 = vld [vmem:[#allocation8 + $0x68] sm:$0xf]
    %v1849 = vld [vmem:[#allocation8 + $0x6c] sm:$0xf]
    %v1850 = vld [vmem:[#allocation8 + $0x70] sm:$0xf]
    %v1851 = vld [vmem:[#allocation8 + $0x74] sm:$0xf]
    %v1852 = vld [vmem:[#allocation8 + $0x78] sm:$0xf]
    %v1853 = vld [vmem:[#allocation8 + $0x7c] sm:$0xf]
    %v1854 = vld [vmem:[%s11] sm:$0x1]
    %v1856 = vlaneseq
    %v1857 = vshrl.u32 %v1856, 7
    %v1858 = vsub.s32 0, %v1857
    %v1859 = vrot.slane %v1854, %v1858
    %v1893 = vunpack.c.l.b16 %v1822
    %v1894 = vunpack.c.l.b16 %v1823
    %v1895 = vunpack.c.l.b16 %v1824
    %v1896 = vunpack.c.l.b16 %v1825
    %v1897 = vunpack.c.l.b16 %v1826
    %v1898 = vunpack.c.l.b16 %v1827
    %v1899 = vunpack.c.l.b16 %v1828
    %v1900 = vunpack.c.l.b16 %v1829
    %v1901 = vunpack.c.l.b16 %v1830
    %v1902 = vunpack.c.l.b16 %v1831
    %v1903 = vunpack.c.l.b16 %v1832
    %v1904 = vunpack.c.l.b16 %v1833
    %v1905 = vunpack.c.l.b16 %v1834
    %v1906 = vunpack.c.l.b16 %v1835
    %v1907 = vunpack.c.l.b16 %v1836
    %v1908 = vunpack.c.l.b16 %v1837
    %v1909 = vunpack.c.l.b16 %v1838
    %v1910 = vunpack.c.l.b16 %v1839
    %v1911 = vunpack.c.l.b16 %v1840
    %v1912 = vunpack.c.l.b16 %v1841
    %v1913 = vunpack.c.l.b16 %v1842
    %v1914 = vunpack.c.l.b16 %v1843
    %v1915 = vunpack.c.l.b16 %v1844
    %v1916 = vunpack.c.l.b16 %v1845
    %v1917 = vunpack.c.l.b16 %v1846
    %v1918 = vunpack.c.l.b16 %v1847
    %v1919 = vunpack.c.l.b16 %v1848
    %v1920 = vunpack.c.l.b16 %v1849
    %v1921 = vunpack.c.l.b16 %v1850
    %v1922 = vunpack.c.l.b16 %v1851
    %v1923 = vunpack.c.l.b16 %v1852
    %v1924 = vunpack.c.l.b16 %v1853
    %v1925 = vpack.c.b16 %v1894, %v1893
    %v1926 = vpack.c.b16 %v1896, %v1895
    %v1927 = vpack.c.b16 %v1898, %v1897
    %v1928 = vpack.c.b16 %v1900, %v1899
    %v1929 = vpack.c.b16 %v1902, %v1901
    %v1930 = vpack.c.b16 %v1904, %v1903
    %v1931 = vpack.c.b16 %v1906, %v1905
    %v1932 = vpack.c.b16 %v1908, %v1907
    %v1933 = vpack.c.b16 %v1910, %v1909
    %v1934 = vpack.c.b16 %v1912, %v1911
    %v1935 = vpack.c.b16 %v1914, %v1913
    %v1936 = vpack.c.b16 %v1916, %v1915
    %v1937 = vpack.c.b16 %v1918, %v1917
    %v1938 = vpack.c.b16 %v1920, %v1919
    %v1939 = vpack.c.b16 %v1922, %v1921
    %v1940 = vpack.c.b16 %v1924, %v1923
    %1957 = vmatprep.subr.bf16.mxu0 0
    %1958 = vmatpush1.bf16.msra.mxu0 %v1925
    %1959 = vmatprep.subr.bf16.mxu0 0
    %1960 = vmatpush1.bf16.msra.mxu0 %v1926
    %1961 = vmatprep.subr.bf16.mxu0 0
    %1962 = vmatpush1.bf16.msra.mxu0 %v1927
    %1963 = vmatprep.subr.bf16.mxu0 0
    %1964 = vmatpush1.bf16.msra.mxu0 %v1928
    %1965 = vmatprep.subr.bf16.mxu0 0
    %1966 = vmatpush1.bf16.msra.mxu0 %v1929
    %1967 = vmatprep.subr.bf16.mxu0 0
    %1968 = vmatpush1.bf16.msra.mxu0 %v1930
    %1969 = vmatprep.subr.bf16.mxu0 0
    %1970 = vmatpush1.bf16.msra.mxu0 %v1931
    %1971 = vmatprep.subr.bf16.mxu0 0
    %1972 = vmatpush1.bf16.msra.mxu0 %v1932
    %1973 = vmatprep.subr.bf16.mxu0 0
    %1974 = vmatpush1.bf16.msra.mxu0 %v1933
    %1975 = vmatprep.subr.bf16.mxu0 0
    %1976 = vmatpush1.bf16.msra.mxu0 %v1934
    %1977 = vmatprep.subr.bf16.mxu0 0
    %1978 = vmatpush1.bf16.msra.mxu0 %v1935
    %1979 = vmatprep.subr.bf16.mxu0 0
    %1980 = vmatpush1.bf16.msra.mxu0 %v1936
    %1981 = vmatprep.subr.bf16.mxu0 0
    %1982 = vmatpush1.bf16.msra.mxu0 %v1937
    %1983 = vmatprep.subr.bf16.mxu0 0
    %1984 = vmatpush1.bf16.msra.mxu0 %v1938
    %1985 = vmatprep.subr.bf16.mxu0 0
    %1986 = vmatpush1.bf16.msra.mxu0 %v1939
    %1987 = vmatprep.subr.bf16.mxu0 0
    %1988 = vmatpush1.bf16.msra.mxu0 %v1940
    %1989 = vmatprep.mubr.bf16.mxu0 %v1821
    %1990 = vmatmul.mubr.bf16.gmra.mrb[0].mxu0 %v1820
    %v1991 = vpop.f32.mrb[0].mxu0
    %v1992 = vadd.f32 %v1859, %v1991
    %v1993 = vpop.f32.mrb[0].mxu0
    %v1994 = vpop.f32.mrb[0].mxu0
    %v1995 = vadd.f32 %v1859, %v1994
    %v1996 = vpop.f32.mrb[0].mxu0
    %1997 = vdwg.mxu0
    %v1998 = vadd.f32 %v1662, %v1992
    %v1999 = vadd.f32 %v1663, %v1995
    %v2000 = vld [vmem:[%s14] sm:$0x1]
    %v2001 = vld [vmem:[%s15] sm:$0x1]
    %2002 = vadd.xlane.f32.xlu0 %v1998
    %v2003 = vpop.xlane.xlu0 %2002
    %2004 = vadd.xlane.f32.xlu0 %v1999
    %v2005 = vpop.xlane.xlu0 %2004
    %v2006 = vmul.f32 %v2003, %v1629
    %v2007 = vmul.f32 %v2005, %v1629
    %v2008 = vsub.f32 %v1998, %v2006
    %v2009 = vsub.f32 %v1999, %v2007
    %v2010 = vmul.f32 %v2008, %v2008
    %v2011 = vmul.f32 %v2009, %v2009
    %2012 = vadd.xlane.f32.xlu0 %v2010
    %v2013 = vpop.xlane.xlu0 %2012
    %2014 = vadd.xlane.f32.xlu0 %v2011
    %v2015 = vpop.xlane.xlu0 %2014
    %v2016 = vmul.f32 %v2013, %v1629
    %v2017 = vmul.f32 %v2015, %v1629
    %v2018 = vadd.f32 %v2016, 1e-05
    %v2019 = vadd.f32 %v2017, 1e-05
    %v2020 = vrsqrt.pop %v2018
    %v2021 = vrsqrt.pop %v2019
    %v2022 = vmul.f32 %v2008, %v2020
    %v2023 = vmul.f32 %v2009, %v2021
    %v2025 = vlaneseq
    %v2026 = vshrl.u32 %v2025, 7
    %v2027 = vsub.s32 0, %v2026
    %v2028 = vrot.slane %v2000, %v2027
    %v2030 = vmul.f32 %v2022, %v2028
    %v2031 = vmul.f32 %v2023, %v2028
    %v2033 = vlaneseq
    %v2034 = vshrl.u32 %v2033, 7
    %v2035 = vsub.s32 0, %v2034
    %v2036 = vrot.slane %v2001, %v2035
    %v2038 = vadd.f32 %v2030, %v2036
    %v2039 = vadd.f32 %v2031, %v2036
    %v2040 = vpack.c.bf16 %v2039, %v2038
    %s2041 = scalar_lea.vmem [#allocation2], 192
    %v2042 = vld [vmem:[%s2041] sm:$0xff]
    %v2043 = vld [vmem:[%s2041 + $0x8] sm:$0xf]
    %v2044 = vld [vmem:[%s2041 + $0xc] sm:$0xff]
    %v2045 = vld [vmem:[%s2041 + $0x14] sm:$0xf]
    %v2046 = vld [vmem:[%s2041 + $0x18] sm:$0xff]
    %v2047 = vld [vmem:[%s2041 + $0x20] sm:$0xf]
    %v2048 = vld [vmem:[%s2041 + $0x24] sm:$0xff]
    %v2049 = vld [vmem:[%s2041 + $0x2c] sm:$0xf]
    %v2050 = vld [vmem:[%s2041 + $0x30] sm:$0xff]
    %v2051 = vld [vmem:[%s2041 + $0x38] sm:$0xf]
    %v2052 = vld [vmem:[%s2041 + $0x3c] sm:$0xff]
    %v2053 = vld [vmem:[%s2041 + $0x44] sm:$0xf]
    %v2054 = vld [vmem:[%s2041 + $0x48] sm:$0xff]
    %v2055 = vld [vmem:[%s2041 + $0x50] sm:$0xf]
    %v2056 = vld [vmem:[%s2041 + $0x54] sm:$0xff]
    %v2057 = vld [vmem:[%s2041 + $0x5c] sm:$0xf]
    %v2058 = vld [vmem:[%s2041 + $0x60] sm:$0xff]
    %v2059 = vld [vmem:[%s2041 + $0x68] sm:$0xf]
    %v2060 = vld [vmem:[%s2041 + $0x6c] sm:$0xff]
    %v2061 = vld [vmem:[%s2041 + $0x74] sm:$0xf]
    %v2062 = vld [vmem:[%s2041 + $0x78] sm:$0xff]
    %v2063 = vld [vmem:[%s2041 + $0x80] sm:$0xf]
    %v2064 = vld [vmem:[%s2041 + $0x84] sm:$0xff]
    %v2065 = vld [vmem:[%s2041 + $0x8c] sm:$0xf]
    %v2066 = vld [vmem:[%s2041 + $0x90] sm:$0xff]
    %v2067 = vld [vmem:[%s2041 + $0x98] sm:$0xf]
    %v2068 = vld [vmem:[%s2041 + $0x9c] sm:$0xff]
    %v2069 = vld [vmem:[%s2041 + $0xa4] sm:$0xf]
    %v2070 = vld [vmem:[%s2041 + $0xa8] sm:$0xff]
    %v2071 = vld [vmem:[%s2041 + $0xb0] sm:$0xf]
    %v2072 = vld [vmem:[%s2041 + $0xb4] sm:$0xff]
    %v2073 = vld [vmem:[%s2041 + $0xbc] sm:$0xf]
    %s2074 = scalar_lea.vmem %s5, 3
    %v2075 = vld [vmem:[%s2074] sm:$0x7]
    %v2077 = vlaneseq
    %v2078 = vshrl.u32 %v2077, 7
    %v2079 = vsub.s32 0, %v2078
    %v2080 = vrot.slane %v2075, %v2079
    %v2081 = vlaneseq
    %v2082 = vshrl.u32 %v2081, 7
    %v2083 = vsub.s32 1, %v2082
    %v2084 = vrot.slane %v2075, %v2083
    %v2085 = vlaneseq
    %v2086 = vshrl.u32 %v2085, 7
    %v2087 = vsub.s32 2, %v2086
    %v2088 = vrot.slane %v2075, %v2087
    %v2124 = vunpack.c.l.b16 %v2042
    %v2125 = vunpack.c.h.b16 %v2042
    %v2126 = vunpack.c.l.b16 %v2043
    %v2127 = vunpack.c.l.b16 %v2044
    %v2128 = vunpack.c.h.b16 %v2044
    %v2129 = vunpack.c.l.b16 %v2045
    %v2130 = vunpack.c.l.b16 %v2046
    %v2131 = vunpack.c.h.b16 %v2046
    %v2132 = vunpack.c.l.b16 %v2047
    %v2133 = vunpack.c.l.b16 %v2048
    %v2134 = vunpack.c.h.b16 %v2048
    %v2135 = vunpack.c.l.b16 %v2049
    %v2136 = vunpack.c.l.b16 %v2050
    %v2137 = vunpack.c.h.b16 %v2050
    %v2138 = vunpack.c.l.b16 %v2051
    %v2139 = vunpack.c.l.b16 %v2052
    %v2140 = vunpack.c.h.b16 %v2052
    %v2141 = vunpack.c.l.b16 %v2053
    %v2142 = vunpack.c.l.b16 %v2054
    %v2143 = vunpack.c.h.b16 %v2054
    %v2144 = vunpack.c.l.b16 %v2055
    %v2145 = vunpack.c.l.b16 %v2056
    %v2146 = vunpack.c.h.b16 %v2056
    %v2147 = vunpack.c.l.b16 %v2057
    %v2148 = vunpack.c.l.b16 %v2058
    %v2149 = vunpack.c.h.b16 %v2058
    %v2150 = vunpack.c.l.b16 %v2059
    %v2151 = vunpack.c.l.b16 %v2060
    %v2152 = vunpack.c.h.b16 %v2060
    %v2153 = vunpack.c.l.b16 %v2061
    %v2154 = vunpack.c.l.b16 %v2062
    %v2155 = vunpack.c.h.b16 %v2062
    %v2156 = vunpack.c.l.b16 %v2063
    %v2157 = vunpack.c.l.b16 %v2064
    %v2158 = vunpack.c.h.b16 %v2064
    %v2159 = vunpack.c.l.b16 %v2065
    %v2160 = vunpack.c.l.b16 %v2066
    %v2161 = vunpack.c.h.b16 %v2066
    %v2162 = vunpack.c.l.b16 %v2067
    %v2163 = vunpack.c.l.b16 %v2068
    %v2164 = vunpack.c.h.b16 %v2068
    %v2165 = vunpack.c.l.b16 %v2069
    %v2166 = vunpack.c.l.b16 %v2070
    %v2167 = vunpack.c.h.b16 %v2070
    %v2168 = vunpack.c.l.b16 %v2071
    %v2169 = vunpack.c.l.b16 %v2072
    %v2170 = vunpack.c.h.b16 %v2072
    %v2171 = vunpack.c.l.b16 %v2073
    %v2172 = vpack.c.b16 %v2127, %v2124
    %v2173 = vpack.c.b16 %v2128, %v2125
    %v2174 = vpack.c.b16 %v2129, %v2126
    %v2175 = vpack.c.b16 %v2133, %v2130
    %v2176 = vpack.c.b16 %v2134, %v2131
    %v2177 = vpack.c.b16 %v2135, %v2132
    %v2178 = vpack.c.b16 %v2139, %v2136
    %v2179 = vpack.c.b16 %v2140, %v2137
    %v2180 = vpack.c.b16 %v2141, %v2138
    %v2181 = vpack.c.b16 %v2145, %v2142
    %v2182 = vpack.c.b16 %v2146, %v2143
    %v2183 = vpack.c.b16 %v2147, %v2144
    %v2184 = vpack.c.b16 %v2151, %v2148
    %v2185 = vpack.c.b16 %v2152, %v2149
    %v2186 = vpack.c.b16 %v2153, %v2150
    %v2187 = vpack.c.b16 %v2157, %v2154
    %v2188 = vpack.c.b16 %v2158, %v2155
    %v2189 = vpack.c.b16 %v2159, %v2156
    %v2190 = vpack.c.b16 %v2163, %v2160
    %v2191 = vpack.c.b16 %v2164, %v2161
    %v2192 = vpack.c.b16 %v2165, %v2162
    %v2193 = vpack.c.b16 %v2169, %v2166
    %v2194 = vpack.c.b16 %v2170, %v2167
    %v2195 = vpack.c.b16 %v2171, %v2168
    %2220 = vmatprep.subr.bf16.mxu0 %v2173
    %2221 = vmatpush1.bf16.msra.mxu0 %v2172
    %2222 = vmatprep.subr.bf16.mxu0 %v2176
    %2223 = vmatpush1.bf16.msra.mxu0 %v2175
    %2224 = vmatprep.subr.bf16.mxu0 %v2179
    %2225 = vmatpush1.bf16.msra.mxu0 %v2178
    %2226 = vmatprep.subr.bf16.mxu0 %v2182
    %2227 = vmatpush1.bf16.msra.mxu0 %v2181
    %2228 = vmatprep.subr.bf16.mxu0 %v2185
    %2229 = vmatpush1.bf16.msra.mxu0 %v2184
    %2230 = vmatprep.subr.bf16.mxu0 %v2188
    %2231 = vmatpush1.bf16.msra.mxu0 %v2187
    %2232 = vmatprep.subr.bf16.mxu0 %v2191
    %2233 = vmatpush1.bf16.msra.mxu0 %v2190
    %2234 = vmatprep.subr.bf16.mxu0 %v2194
    %2235 = vmatpush1.bf16.msra.mxu0 %v2193
    %2236 = vmatprep.subr.bf16.mxu0 0
    %2237 = vmatpush1.bf16.msra.mxu0 0
    %2238 = vmatprep.subr.bf16.mxu0 0
    %2239 = vmatpush1.bf16.msra.mxu0 0
    %2240 = vmatprep.subr.bf16.mxu0 0
    %2241 = vmatpush1.bf16.msra.mxu0 0
    %2242 = vmatprep.subr.bf16.mxu0 0
    %2243 = vmatpush1.bf16.msra.mxu0 0
    %2244 = vmatprep.subr.bf16.mxu0 0
    %2245 = vmatpush1.bf16.msra.mxu0 0
    %2246 = vmatprep.subr.bf16.mxu0 0
    %2247 = vmatpush1.bf16.msra.mxu0 0
    %2248 = vmatprep.subr.bf16.mxu0 0
    %2249 = vmatpush1.bf16.msra.mxu0 0
    %2250 = vmatprep.subr.bf16.mxu0 0
    %2251 = vmatpush1.bf16.msra.mxu0 0
    %2252 = vmatprep.mubr.bf16.mxu0 0
    %2253 = vmatmul.mubr.bf16.gmra.mrb[0].mxu0 %v2040
    %v2254 = vpop.f32.mrb[0].mxu0
    %v2255 = vadd.f32 %v2080, %v2254
    %v2256 = vpop.f32.mrb[0].mxu0
    %v2257 = vadd.f32 %v2084, %v2256
    %v2258 = vpop.f32.mrb[0].mxu0
    %v2259 = vadd.f32 %v2080, %v2258
    %v2260 = vpop.f32.mrb[0].mxu0
    %v2261 = vadd.f32 %v2084, %v2260
    %2262 = vdwg.mxu0
    %2263 = vmatprep.subr.bf16.mxu0 0
    %2264 = vmatpush1.bf16.msra.mxu0 %v2174
    %2265 = vmatprep.subr.bf16.mxu0 0
    %2266 = vmatpush1.bf16.msra.mxu0 %v2177
    %2267 = vmatprep.subr.bf16.mxu0 0
    %2268 = vmatpush1.bf16.msra.mxu0 %v2180
    %2269 = vmatprep.subr.bf16.mxu0 0
    %2270 = vmatpush1.bf16.msra.mxu0 %v2183
    %2271 = vmatprep.subr.bf16.mxu0 0
    %2272 = vmatpush1.bf16.msra.mxu0 %v2186
    %2273 = vmatprep.subr.bf16.mxu0 0
    %2274 = vmatpush1.bf16.msra.mxu0 %v2189
    %2275 = vmatprep.subr.bf16.mxu0 0
    %2276 = vmatpush1.bf16.msra.mxu0 %v2192
    %2277 = vmatprep.subr.bf16.mxu0 0
    %2278 = vmatpush1.bf16.msra.mxu0 %v2195
    %2279 = vmatprep.subr.bf16.mxu0 0
    %2280 = vmatpush1.bf16.msra.mxu0 0
    %2281 = vmatprep.subr.bf16.mxu0 0
    %2282 = vmatpush1.bf16.msra.mxu0 0
    %2283 = vmatprep.subr.bf16.mxu0 0
    %2284 = vmatpush1.bf16.msra.mxu0 0
    %2285 = vmatprep.subr.bf16.mxu0 0
    %2286 = vmatpush1.bf16.msra.mxu0 0
    %2287 = vmatprep.subr.bf16.mxu0 0
    %2288 = vmatpush1.bf16.msra.mxu0 0
    %2289 = vmatprep.subr.bf16.mxu0 0
    %2290 = vmatpush1.bf16.msra.mxu0 0
    %2291 = vmatprep.subr.bf16.mxu0 0
    %2292 = vmatpush1.bf16.msra.mxu0 0
    %2293 = vmatprep.subr.bf16.mxu0 0
    %2294 = vmatpush1.bf16.msra.mxu0 0
    %2295 = vmatprep.mubr.bf16.mxu0 0
    %2296 = vmatmul.mubr.bf16.gmra.mrb[0].mxu0 %v2040
    %v2297 = vpop.f32.mrb[0].mxu0
    %v2298 = vadd.f32 %v2088, %v2297
    %v2299 = vpop.f32.mrb[0].mxu0
    %v2300 = vpop.f32.mrb[0].mxu0
    %v2301 = vadd.f32 %v2088, %v2300
    %v2302 = vpop.f32.mrb[0].mxu0
    %2303 = vdwg.mxu0
    %v2304 = vmul.f32 %v2255, 0.17677669
    %v2305 = vmul.f32 %v2259, 0.17677669
    %v2306 = vpack.c.bf16 %v2304, %v2304
    %v2307 = vpack.c.bf16 %v2305, %v2305
    %v2308 = vpack.c.bf16 %v2257, %v2257
    %v2309 = vpack.c.bf16 %v2261, %v2261
    %v2310 = vpack.c.bf16 %v2298, %v2298
    %v2311 = vpack.c.bf16 %v2301, %v2301
    %s2312 = scalar_lea.vmem [#allocation5], 64
    %v2313 = vld [vmem:[%s2312] sm:$0xf]
    %v2314 = vld [vmem:[%s2312 + $0x4] sm:$0xf]
    %v2315 = vld [vmem:[%s2312 + $0x8] sm:$0xf]
    %v2316 = vld [vmem:[%s2312 + $0xc] sm:$0xf]
    %v2317 = vld [vmem:[%s2312 + $0x10] sm:$0xf]
    %v2318 = vld [vmem:[%s2312 + $0x14] sm:$0xf]
    %v2319 = vld [vmem:[%s2312 + $0x18] sm:$0xf]
    %v2320 = vld [vmem:[%s2312 + $0x1c] sm:$0xf]
    %v2321 = vld [vmem:[%s2312 + $0x20] sm:$0xf]
    %v2322 = vld [vmem:[%s2312 + $0x24] sm:$0xf]
    %v2323 = vld [vmem:[%s2312 + $0x28] sm:$0xf]
    %v2324 = vld [vmem:[%s2312 + $0x2c] sm:$0xf]
    %v2325 = vld [vmem:[%s2312 + $0x30] sm:$0xf]
    %v2326 = vld [vmem:[%s2312 + $0x34] sm:$0xf]
    %v2327 = vld [vmem:[%s2312 + $0x38] sm:$0xf]
    %v2328 = vld [vmem:[%s2312 + $0x3c] sm:$0xf]
    %s2329 = scalar_lea.vmem %s7, 1
    %v2330 = vld [vmem:[%s2329] sm:$0x1]
    %v2332 = vlaneseq
    %v2333 = vshrl.u32 %v2332, 7
    %v2334 = vsub.s32 0, %v2333
    %v2335 = vrot.slane %v2330, %v2334
    %v2337 = vadd.f32 %v2335, 0.0
    %v2339 = vsel %vm509, %v2306, 0
    %v2342 = vsel %vm509, %v2308, 0
    %2344 = vmatprep.subr.bf16.mxu0 0
    %2345 = vmatpush1.bf16.xpose.msra.mxu0 %v2342
    %2346 = vmatprep.subr.bf16.mxu0 0
    %2347 = vmatpush1.bf16.xpose.msra.mxu0 0
    %2348 = vmatprep.subr.bf16.mxu0 0
    %2349 = vmatpush1.bf16.xpose.msra.mxu0 0
    %2350 = vmatprep.subr.bf16.mxu0 0
    %2351 = vmatpush1.bf16.xpose.msra.mxu0 0
    %2352 = vmatprep.subr.bf16.mxu0 0
    %2353 = vmatpush1.bf16.xpose.msra.mxu0 0
    %2354 = vmatprep.subr.bf16.mxu0 0
    %2355 = vmatpush1.bf16.xpose.msra.mxu0 0
    %2356 = vmatprep.subr.bf16.mxu0 0
    %2357 = vmatpush1.bf16.xpose.msra.mxu0 0
    %2358 = vmatprep.subr.bf16.mxu0 0
    %2359 = vmatpush1.bf16.xpose.msra.mxu0 0
    %2360 = vmatprep.subr.bf16.mxu0 0
    %2361 = vmatpush1.bf16.xpose.msra.mxu0 0
    %2362 = vmatprep.subr.bf16.mxu0 0
    %2363 = vmatpush1.bf16.xpose.msra.mxu0 0
    %2364 = vmatprep.subr.bf16.mxu0 0
    %2365 = vmatpush1.bf16.xpose.msra.mxu0 0
    %2366 = vmatprep.subr.bf16.mxu0 0
    %2367 = vmatpush1.bf16.xpose.msra.mxu0 0
    %2368 = vmatprep.subr.bf16.mxu0 0
    %2369 = vmatpush1.bf16.xpose.msra.mxu0 0
    %2370 = vmatprep.subr.bf16.mxu0 0
    %2371 = vmatpush1.bf16.xpose.msra.mxu0 0
    %2372 = vmatprep.subr.bf16.mxu0 0
    %2373 = vmatpush1.bf16.xpose.msra.mxu0 0
    %2374 = vmatprep.subr.bf16.mxu0 0
    %2375 = vmatpush1.bf16.xpose.msra.mxu0 0
    %2376 = vmatprep.mubr.bf16.mxu0 0
    %2377 = vmatmul.mubr.bf16.gmra.mrb[0].mxu0 %v2339
    %v2378 = vpop.f32.mrb[0].mxu0
    %v2379 = vadd.f32 %v214, %v2378
    %v2380 = vpop.f32.mrb[0].mxu0
    %v2381 = vpop.f32.mrb[0].mxu0
    %v2382 = vpop.f32.mrb[0].mxu0
    %2383 = vdwg.mxu0
    %v2385 = vsel %vm509, %v2307, 0
    %v2388 = vsel %vm509, %v2309, 0
    %2390 = vmatprep.subr.bf16.mxu0 0
    %2391 = vmatpush1.bf16.xpose.msra.mxu0 %v2388
    %2392 = vmatprep.subr.bf16.mxu0 0
    %2393 = vmatpush1.bf16.xpose.msra.mxu0 0
    %2394 = vmatprep.subr.bf16.mxu0 0
    %2395 = vmatpush1.bf16.xpose.msra.mxu0 0
    %2396 = vmatprep.subr.bf16.mxu0 0
    %2397 = vmatpush1.bf16.xpose.msra.mxu0 0
    %2398 = vmatprep.subr.bf16.mxu0 0
    %2399 = vmatpush1.bf16.xpose.msra.mxu0 0
    %2400 = vmatprep.subr.bf16.mxu0 0
    %2401 = vmatpush1.bf16.xpose.msra.mxu0 0
    %2402 = vmatprep.subr.bf16.mxu0 0
    %2403 = vmatpush1.bf16.xpose.msra.mxu0 0
    %2404 = vmatprep.subr.bf16.mxu0 0
    %2405 = vmatpush1.bf16.xpose.msra.mxu0 0
    %2406 = vmatprep.subr.bf16.mxu0 0
    %2407 = vmatpush1.bf16.xpose.msra.mxu0 0
    %2408 = vmatprep.subr.bf16.mxu0 0
    %2409 = vmatpush1.bf16.xpose.msra.mxu0 0
    %2410 = vmatprep.subr.bf16.mxu0 0
    %2411 = vmatpush1.bf16.xpose.msra.mxu0 0
    %2412 = vmatprep.subr.bf16.mxu0 0
    %2413 = vmatpush1.bf16.xpose.msra.mxu0 0
    %2414 = vmatprep.subr.bf16.mxu0 0
    %2415 = vmatpush1.bf16.xpose.msra.mxu0 0
    %2416 = vmatprep.subr.bf16.mxu0 0
    %2417 = vmatpush1.bf16.xpose.msra.mxu0 0
    %2418 = vmatprep.subr.bf16.mxu0 0
    %2419 = vmatpush1.bf16.xpose.msra.mxu0 0
    %2420 = vmatprep.subr.bf16.mxu0 0
    %2421 = vmatpush1.bf16.xpose.msra.mxu0 0
    %2422 = vmatprep.mubr.bf16.mxu0 0
    %2423 = vmatmul.mubr.bf16.gmra.mrb[0].mxu0 %v2385
    %v2424 = vpop.f32.mrb[0].mxu0
    %v2425 = vadd.f32 %v214, %v2424
    %v2426 = vpop.f32.mrb[0].mxu0
    %v2427 = vpop.f32.mrb[0].mxu0
    %v2428 = vpop.f32.mrb[0].mxu0
    %2429 = vdwg.mxu0
    %v2430 = vsel %vm602, %v2379, -inf
    %2431 = vmax.xlane.f32.xlu0 %v2430
    %v2432 = vpop.xlane.xlu0 %2431
    %v2433 = vsel %vm602, %v2425, -inf
    %2434 = vmax.xlane.f32.xlu0 %v2433
    %v2435 = vpop.xlane.xlu0 %2434
    %v2436 = vsub.f32 %v2379, %v2432
    %v2437 = vsub.f32 %v2425, %v2435
    %v2438 = vmul.f32 %v2436, 1.442695
    %v2439 = vpow.pop %v2438
    %v2440 = vmul.f32 %v2437, 1.442695
    %v2441 = vpow.pop %v2440
    %v2442 = vsel %vm602, %v2439, 0.0
    %2443 = vadd.xlane.f32.xlu0 %v2442
    %v2444 = vpop.xlane.xlu0 %2443
    %v2445 = vsel %vm602, %v2441, 0.0
    %2446 = vadd.xlane.f32.xlu0 %v2445
    %v2447 = vpop.xlane.xlu0 %2446
    %v2448 = vrcp.pop %v2444
    %v2449 = vrcp.pop %v2447
    %v2450 = vmul.f32 %v2439, %v2448
    %v2451 = vmul.f32 %v2441, %v2449
    %v2452 = vpack.c.bf16 %v2450, %v2450
    %v2453 = vpack.c.bf16 %v2451, %v2451
    %v2455 = vsel %vm602, %v2452, 0
    %v2458 = vsel %vm127, %v2310, 0
    %2460 = vmatprep.subr.bf16.mxu0 0
    %2461 = vmatpush1.bf16.msra.mxu0 %v2458
    %2462 = vmatprep.subr.bf16.mxu0 0
    %2463 = vmatpush1.bf16.msra.mxu0 0
    %2464 = vmatprep.subr.bf16.mxu0 0
    %2465 = vmatpush1.bf16.msra.mxu0 0
    %2466 = vmatprep.subr.bf16.mxu0 0
    %2467 = vmatpush1.bf16.msra.mxu0 0
    %2468 = vmatprep.subr.bf16.mxu0 0
    %2469 = vmatpush1.bf16.msra.mxu0 0
    %2470 = vmatprep.subr.bf16.mxu0 0
    %2471 = vmatpush1.bf16.msra.mxu0 0
    %2472 = vmatprep.subr.bf16.mxu0 0
    %2473 = vmatpush1.bf16.msra.mxu0 0
    %2474 = vmatprep.subr.bf16.mxu0 0
    %2475 = vmatpush1.bf16.msra.mxu0 0
    %2476 = vmatprep.subr.bf16.mxu0 0
    %2477 = vmatpush1.bf16.msra.mxu0 0
    %2478 = vmatprep.subr.bf16.mxu0 0
    %2479 = vmatpush1.bf16.msra.mxu0 0
    %2480 = vmatprep.subr.bf16.mxu0 0
    %2481 = vmatpush1.bf16.msra.mxu0 0
    %2482 = vmatprep.subr.bf16.mxu0 0
    %2483 = vmatpush1.bf16.msra.mxu0 0
    %2484 = vmatprep.subr.bf16.mxu0 0
    %2485 = vmatpush1.bf16.msra.mxu0 0
    %2486 = vmatprep.subr.bf16.mxu0 0
    %2487 = vmatpush1.bf16.msra.mxu0 0
    %2488 = vmatprep.subr.bf16.mxu0 0
    %2489 = vmatpush1.bf16.msra.mxu0 0
    %2490 = vmatprep.subr.bf16.mxu0 0
    %2491 = vmatpush1.bf16.msra.mxu0 0
    %2492 = vmatprep.mubr.bf16.mxu0 0
    %2493 = vmatmul.mubr.bf16.gmra.mrb[0].mxu0 %v2455
    %v2494 = vpop.f32.mrb[0].mxu0
    %v2495 = vadd.f32 0.0, %v2494
    %v2496 = vpop.f32.mrb[0].mxu0
    %v2497 = vpop.f32.mrb[0].mxu0
    %v2498 = vpop.f32.mrb[0].mxu0
    %2499 = vdwg.mxu0
    %v2501 = vsel %vm602, %v2453, 0
    %v2504 = vsel %vm127, %v2311, 0
    %2506 = vmatprep.subr.bf16.mxu0 0
    %2507 = vmatpush1.bf16.msra.mxu0 %v2504
    %2508 = vmatprep.subr.bf16.mxu0 0
    %2509 = vmatpush1.bf16.msra.mxu0 0
    %2510 = vmatprep.subr.bf16.mxu0 0
    %2511 = vmatpush1.bf16.msra.mxu0 0
    %2512 = vmatprep.subr.bf16.mxu0 0
    %2513 = vmatpush1.bf16.msra.mxu0 0
    %2514 = vmatprep.subr.bf16.mxu0 0
    %2515 = vmatpush1.bf16.msra.mxu0 0
    %2516 = vmatprep.subr.bf16.mxu0 0
    %2517 = vmatpush1.bf16.msra.mxu0 0
    %2518 = vmatprep.subr.bf16.mxu0 0
    %2519 = vmatpush1.bf16.msra.mxu0 0
    %2520 = vmatprep.subr.bf16.mxu0 0
    %2521 = vmatpush1.bf16.msra.mxu0 0
    %2522 = vmatprep.subr.bf16.mxu0 0
    %2523 = vmatpush1.bf16.msra.mxu0 0
    %2524 = vmatprep.subr.bf16.mxu0 0
    %2525 = vmatpush1.bf16.msra.mxu0 0
    %2526 = vmatprep.subr.bf16.mxu0 0
    %2527 = vmatpush1.bf16.msra.mxu0 0
    %2528 = vmatprep.subr.bf16.mxu0 0
    %2529 = vmatpush1.bf16.msra.mxu0 0
    %2530 = vmatprep.subr.bf16.mxu0 0
    %2531 = vmatpush1.bf16.msra.mxu0 0
    %2532 = vmatprep.subr.bf16.mxu0 0
    %2533 = vmatpush1.bf16.msra.mxu0 0
    %2534 = vmatprep.subr.bf16.mxu0 0
    %2535 = vmatpush1.bf16.msra.mxu0 0
    %2536 = vmatprep.subr.bf16.mxu0 0
    %2537 = vmatpush1.bf16.msra.mxu0 0
    %2538 = vmatprep.mubr.bf16.mxu0 0
    %2539 = vmatmul.mubr.bf16.gmra.mrb[0].mxu0 %v2501
    %v2540 = vpop.f32.mrb[0].mxu0
    %v2541 = vadd.f32 0.0, %v2540
    %v2542 = vpop.f32.mrb[0].mxu0
    %v2543 = vpop.f32.mrb[0].mxu0
    %v2544 = vpop.f32.mrb[0].mxu0
    %2545 = vdwg.mxu0
    %v2546 = vpack.c.bf16 %v2541, %v2495
    %v2551 = vunpack.c.l.b16 %v2313
    %v2552 = vunpack.c.l.b16 %v2314
    %v2553 = vunpack.c.l.b16 %v2315
    %v2554 = vunpack.c.l.b16 %v2316
    %v2555 = vpack.c.b16 %v2552, %v2551
    %v2556 = vpack.c.b16 %v2554, %v2553
    %v2560 = vsel %vm509, %v2546, 0
    %2562 = vmatprep.subr.bf16.mxu0 0
    %2563 = vmatpush1.bf16.msra.mxu0 %v2555
    %2564 = vmatprep.subr.bf16.mxu0 0
    %2565 = vmatpush1.bf16.msra.mxu0 %v2556
    %2566 = vmatprep.subr.bf16.mxu0 0
    %2567 = vmatpush1.bf16.msra.mxu0 0
    %2568 = vmatprep.subr.bf16.mxu0 0
    %2569 = vmatpush1.bf16.msra.mxu0 0
    %2570 = vmatprep.subr.bf16.mxu0 0
    %2571 = vmatpush1.bf16.msra.mxu0 0
    %2572 = vmatprep.subr.bf16.mxu0 0
    %2573 = vmatpush1.bf16.msra.mxu0 0
    %2574 = vmatprep.subr.bf16.mxu0 0
    %2575 = vmatpush1.bf16.msra.mxu0 0
    %2576 = vmatprep.subr.bf16.mxu0 0
    %2577 = vmatpush1.bf16.msra.mxu0 0
    %2578 = vmatprep.subr.bf16.mxu0 0
    %2579 = vmatpush1.bf16.msra.mxu0 0
    %2580 = vmatprep.subr.bf16.mxu0 0
    %2581 = vmatpush1.bf16.msra.mxu0 0
    %2582 = vmatprep.subr.bf16.mxu0 0
    %2583 = vmatpush1.bf16.msra.mxu0 0
    %2584 = vmatprep.subr.bf16.mxu0 0
    %2585 = vmatpush1.bf16.msra.mxu0 0
    %2586 = vmatprep.subr.bf16.mxu0 0
    %2587 = vmatpush1.bf16.msra.mxu0 0
    %2588 = vmatprep.subr.bf16.mxu0 0
    %2589 = vmatpush1.bf16.msra.mxu0 0
    %2590 = vmatprep.subr.bf16.mxu0 0
    %2591 = vmatpush1.bf16.msra.mxu0 0
    %2592 = vmatprep.subr.bf16.mxu0 0
    %2593 = vmatpush1.bf16.msra.mxu0 0
    %2594 = vmatprep.mubr.bf16.mxu0 0
    %2595 = vmatmul.mubr.bf16.gmra.mrb[0].mxu0 %v2560
    %v2596 = vpop.f32.mrb[0].mxu0
    %v2597 = vadd.f32 0.0, %v2596
    %v2598 = vpop.f32.mrb[0].mxu0
    %v2599 = vpop.f32.mrb[0].mxu0
    %v2600 = vadd.f32 0.0, %v2599
    %v2601 = vpop.f32.mrb[0].mxu0
    %2602 = vdwg.mxu0
    %v2603 = vadd.f32 %v2337, %v2597
    %v2604 = vadd.f32 %v2337, %v2600
    %2606 = vrot.lane.b32.xlu0 %v2306, 96
    %v2607 = vpop.permute.xlu0 %2606
    %2609 = vrot.lane.b32.xlu0 %v2308, 96
    %v2610 = vpop.permute.xlu0 %2609
    %v2612 = vsel %vm509, %v2607, 0
    %v2615 = vsel %vm509, %v2610, 0
    %2617 = vmatprep.subr.bf16.mxu0 0
    %2618 = vmatpush1.bf16.xpose.msra.mxu0 %v2615
    %2619 = vmatprep.subr.bf16.mxu0 0
    %2620 = vmatpush1.bf16.xpose.msra.mxu0 0
    %2621 = vmatprep.subr.bf16.mxu0 0
    %2622 = vmatpush1.bf16.xpose.msra.mxu0 0
    %2623 = vmatprep.subr.bf16.mxu0 0
    %2624 = vmatpush1.bf16.xpose.msra.mxu0 0
    %2625 = vmatprep.subr.bf16.mxu0 0
    %2626 = vmatpush1.bf16.xpose.msra.mxu0 0
    %2627 = vmatprep.subr.bf16.mxu0 0
    %2628 = vmatpush1.bf16.xpose.msra.mxu0 0
    %2629 = vmatprep.subr.bf16.mxu0 0
    %2630 = vmatpush1.bf16.xpose.msra.mxu0 0
    %2631 = vmatprep.subr.bf16.mxu0 0
    %2632 = vmatpush1.bf16.xpose.msra.mxu0 0
    %2633 = vmatprep.subr.bf16.mxu0 0
    %2634 = vmatpush1.bf16.xpose.msra.mxu0 0
    %2635 = vmatprep.subr.bf16.mxu0 0
    %2636 = vmatpush1.bf16.xpose.msra.mxu0 0
    %2637 = vmatprep.subr.bf16.mxu0 0
    %2638 = vmatpush1.bf16.xpose.msra.mxu0 0
    %2639 = vmatprep.subr.bf16.mxu0 0
    %2640 = vmatpush1.bf16.xpose.msra.mxu0 0
    %2641 = vmatprep.subr.bf16.mxu0 0
    %2642 = vmatpush1.bf16.xpose.msra.mxu0 0
    %2643 = vmatprep.subr.bf16.mxu0 0
    %2644 = vmatpush1.bf16.xpose.msra.mxu0 0
    %2645 = vmatprep.subr.bf16.mxu0 0
    %2646 = vmatpush1.bf16.xpose.msra.mxu0 0
    %2647 = vmatprep.subr.bf16.mxu0 0
    %2648 = vmatpush1.bf16.xpose.msra.mxu0 0
    %2649 = vmatprep.mubr.bf16.mxu0 0
    %2650 = vmatmul.mubr.bf16.gmra.mrb[0].mxu0 %v2612
    %v2651 = vpop.f32.mrb[0].mxu0
    %v2652 = vadd.f32 %v214, %v2651
    %v2653 = vpop.f32.mrb[0].mxu0
    %v2654 = vpop.f32.mrb[0].mxu0
    %v2655 = vpop.f32.mrb[0].mxu0
    %2656 = vdwg.mxu0
    %2658 = vrot.lane.b32.xlu0 %v2307, 96
    %v2659 = vpop.permute.xlu0 %2658
    %2661 = vrot.lane.b32.xlu0 %v2309, 96
    %v2662 = vpop.permute.xlu0 %2661
    %v2664 = vsel %vm509, %v2659, 0
    %v2667 = vsel %vm509, %v2662, 0
    %2669 = vmatprep.subr.bf16.mxu0 0
    %2670 = vmatpush1.bf16.xpose.msra.mxu0 %v2667
    %2671 = vmatprep.subr.bf16.mxu0 0
    %2672 = vmatpush1.bf16.xpose.msra.mxu0 0
    %2673 = vmatprep.subr.bf16.mxu0 0
    %2674 = vmatpush1.bf16.xpose.msra.mxu0 0
    %2675 = vmatprep.subr.bf16.mxu0 0
    %2676 = vmatpush1.bf16.xpose.msra.mxu0 0
    %2677 = vmatprep.subr.bf16.mxu0 0
    %2678 = vmatpush1.bf16.xpose.msra.mxu0 0
    %2679 = vmatprep.subr.bf16.mxu0 0
    %2680 = vmatpush1.bf16.xpose.msra.mxu0 0
    %2681 = vmatprep.subr.bf16.mxu0 0
    %2682 = vmatpush1.bf16.xpose.msra.mxu0 0
    %2683 = vmatprep.subr.bf16.mxu0 0
    %2684 = vmatpush1.bf16.xpose.msra.mxu0 0
    %2685 = vmatprep.subr.bf16.mxu0 0
    %2686 = vmatpush1.bf16.xpose.msra.mxu0 0
    %2687 = vmatprep.subr.bf16.mxu0 0
    %2688 = vmatpush1.bf16.xpose.msra.mxu0 0
    %2689 = vmatprep.subr.bf16.mxu0 0
    %2690 = vmatpush1.bf16.xpose.msra.mxu0 0
    %2691 = vmatprep.subr.bf16.mxu0 0
    %2692 = vmatpush1.bf16.xpose.msra.mxu0 0
    %2693 = vmatprep.subr.bf16.mxu0 0
    %2694 = vmatpush1.bf16.xpose.msra.mxu0 0
    %2695 = vmatprep.subr.bf16.mxu0 0
    %2696 = vmatpush1.bf16.xpose.msra.mxu0 0
    %2697 = vmatprep.subr.bf16.mxu0 0
    %2698 = vmatpush1.bf16.xpose.msra.mxu0 0
    %2699 = vmatprep.subr.bf16.mxu0 0
    %2700 = vmatpush1.bf16.xpose.msra.mxu0 0
    %2701 = vmatprep.mubr.bf16.mxu0 0
    %2702 = vmatmul.mubr.bf16.gmra.mrb[0].mxu0 %v2664
    %v2703 = vpop.f32.mrb[0].mxu0
    %v2704 = vadd.f32 %v214, %v2703
    %v2705 = vpop.f32.mrb[0].mxu0
    %v2706 = vpop.f32.mrb[0].mxu0
    %v2707 = vpop.f32.mrb[0].mxu0
    %2708 = vdwg.mxu0
    %v2709 = vsel %vm602, %v2652, -inf
    %2710 = vmax.xlane.f32.xlu0 %v2709
    %v2711 = vpop.xlane.xlu0 %2710
    %v2712 = vsel %vm602, %v2704, -inf
    %2713 = vmax.xlane.f32.xlu0 %v2712
    %v2714 = vpop.xlane.xlu0 %2713
    %v2715 = vsub.f32 %v2652, %v2711
    %v2716 = vsub.f32 %v2704, %v2714
    %v2717 = vmul.f32 %v2715, 1.442695
    %v2718 = vpow.pop %v2717
    %v2719 = vmul.f32 %v2716, 1.442695
    %v2720 = vpow.pop %v2719
    %v2721 = vsel %vm602, %v2718, 0.0
    %2722 = vadd.xlane.f32.xlu0 %v2721
    %v2723 = vpop.xlane.xlu0 %2722
    %v2724 = vsel %vm602, %v2720, 0.0
    %2725 = vadd.xlane.f32.xlu0 %v2724
    %v2726 = vpop.xlane.xlu0 %2725
    %v2727 = vrcp.pop %v2723
    %v2728 = vrcp.pop %v2726
    %v2729 = vmul.f32 %v2718, %v2727
    %v2730 = vmul.f32 %v2720, %v2728
    %v2731 = vpack.c.bf16 %v2729, %v2729
    %v2732 = vpack.c.bf16 %v2730, %v2730
    %2734 = vrot.lane.b32.xlu0 %v2310, 96
    %v2735 = vpop.permute.xlu0 %2734
    %v2737 = vsel %vm602, %v2731, 0
    %v2740 = vsel %vm127, %v2735, 0
    %2742 = vmatprep.subr.bf16.mxu0 0
    %2743 = vmatpush1.bf16.msra.mxu0 %v2740
    %2744 = vmatprep.subr.bf16.mxu0 0
    %2745 = vmatpush1.bf16.msra.mxu0 0
    %2746 = vmatprep.subr.bf16.mxu0 0
    %2747 = vmatpush1.bf16.msra.mxu0 0
    %2748 = vmatprep.subr.bf16.mxu0 0
    %2749 = vmatpush1.bf16.msra.mxu0 0
    %2750 = vmatprep.subr.bf16.mxu0 0
    %2751 = vmatpush1.bf16.msra.mxu0 0
    %2752 = vmatprep.subr.bf16.mxu0 0
    %2753 = vmatpush1.bf16.msra.mxu0 0
    %2754 = vmatprep.subr.bf16.mxu0 0
    %2755 = vmatpush1.bf16.msra.mxu0 0
    %2756 = vmatprep.subr.bf16.mxu0 0
    %2757 = vmatpush1.bf16.msra.mxu0 0
    %2758 = vmatprep.subr.bf16.mxu0 0
    %2759 = vmatpush1.bf16.msra.mxu0 0
    %2760 = vmatprep.subr.bf16.mxu0 0
    %2761 = vmatpush1.bf16.msra.mxu0 0
    %2762 = vmatprep.subr.bf16.mxu0 0
    %2763 = vmatpush1.bf16.msra.mxu0 0
    %2764 = vmatprep.subr.bf16.mxu0 0
    %2765 = vmatpush1.bf16.msra.mxu0 0
    %2766 = vmatprep.subr.bf16.mxu0 0
    %2767 = vmatpush1.bf16.msra.mxu0 0
    %2768 = vmatprep.subr.bf16.mxu0 0
    %2769 = vmatpush1.bf16.msra.mxu0 0
    %2770 = vmatprep.subr.bf16.mxu0 0
    %2771 = vmatpush1.bf16.msra.mxu0 0
    %2772 = vmatprep.subr.bf16.mxu0 0
    %2773 = vmatpush1.bf16.msra.mxu0 0
    %2774 = vmatprep.mubr.bf16.mxu0 0
    %2775 = vmatmul.mubr.bf16.gmra.mrb[0].mxu0 %v2737
    %v2776 = vpop.f32.mrb[0].mxu0
    %v2777 = vadd.f32 0.0, %v2776
    %v2778 = vpop.f32.mrb[0].mxu0
    %v2779 = vpop.f32.mrb[0].mxu0
    %v2780 = vpop.f32.mrb[0].mxu0
    %2781 = vdwg.mxu0
    %2783 = vrot.lane.b32.xlu0 %v2311, 96
    %v2784 = vpop.permute.xlu0 %2783
    %v2786 = vsel %vm602, %v2732, 0
    %v2789 = vsel %vm127, %v2784, 0
    %2791 = vmatprep.subr.bf16.mxu0 0
    %2792 = vmatpush1.bf16.msra.mxu0 %v2789
    %2793 = vmatprep.subr.bf16.mxu0 0
    %2794 = vmatpush1.bf16.msra.mxu0 0
    %2795 = vmatprep.subr.bf16.mxu0 0
    %2796 = vmatpush1.bf16.msra.mxu0 0
    %2797 = vmatprep.subr.bf16.mxu0 0
    %2798 = vmatpush1.bf16.msra.mxu0 0
    %2799 = vmatprep.subr.bf16.mxu0 0
    %2800 = vmatpush1.bf16.msra.mxu0 0
    %2801 = vmatprep.subr.bf16.mxu0 0
    %2802 = vmatpush1.bf16.msra.mxu0 0
    %2803 = vmatprep.subr.bf16.mxu0 0
    %2804 = vmatpush1.bf16.msra.mxu0 0
    %2805 = vmatprep.subr.bf16.mxu0 0
    %2806 = vmatpush1.bf16.msra.mxu0 0
    %2807 = vmatprep.subr.bf16.mxu0 0
    %2808 = vmatpush1.bf16.msra.mxu0 0
    %2809 = vmatprep.subr.bf16.mxu0 0
    %2810 = vmatpush1.bf16.msra.mxu0 0
    %2811 = vmatprep.subr.bf16.mxu0 0
    %2812 = vmatpush1.bf16.msra.mxu0 0
    %2813 = vmatprep.subr.bf16.mxu0 0
    %2814 = vmatpush1.bf16.msra.mxu0 0
    %2815 = vmatprep.subr.bf16.mxu0 0
    %2816 = vmatpush1.bf16.msra.mxu0 0
    %2817 = vmatprep.subr.bf16.mxu0 0
    %2818 = vmatpush1.bf16.msra.mxu0 0
    %2819 = vmatprep.subr.bf16.mxu0 0
    %2820 = vmatpush1.bf16.msra.mxu0 0
    %2821 = vmatprep.subr.bf16.mxu0 0
    %2822 = vmatpush1.bf16.msra.mxu0 0
    %2823 = vmatprep.mubr.bf16.mxu0 0
    %2824 = vmatmul.mubr.bf16.gmra.mrb[0].mxu0 %v2786
    %v2825 = vpop.f32.mrb[0].mxu0
    %v2826 = vadd.f32 0.0, %v2825
    %v2827 = vpop.f32.mrb[0].mxu0
    %v2828 = vpop.f32.mrb[0].mxu0
    %v2829 = vpop.f32.mrb[0].mxu0
    %2830 = vdwg.mxu0
    %v2831 = vpack.c.bf16 %v2826, %v2777
    %v2836 = vunpack.c.l.b16 %v2317
    %v2837 = vunpack.c.l.b16 %v2318
    %v2838 = vunpack.c.l.b16 %v2319
    %v2839 = vunpack.c.l.b16 %v2320
    %v2840 = vpack.c.b16 %v2837, %v2836
    %v2841 = vpack.c.b16 %v2839, %v2838
    %v2845 = vsel %vm509, %v2831, 0
    %2847 = vmatprep.subr.bf16.mxu0 0
    %2848 = vmatpush1.bf16.msra.mxu0 %v2840
    %2849 = vmatprep.subr.bf16.mxu0 0
    %2850 = vmatpush1.bf16.msra.mxu0 %v2841
    %2851 = vmatprep.subr.bf16.mxu0 0
    %2852 = vmatpush1.bf16.msra.mxu0 0
    %2853 = vmatprep.subr.bf16.mxu0 0
    %2854 = vmatpush1.bf16.msra.mxu0 0
    %2855 = vmatprep.subr.bf16.mxu0 0
    %2856 = vmatpush1.bf16.msra.mxu0 0
    %2857 = vmatprep.subr.bf16.mxu0 0
    %2858 = vmatpush1.bf16.msra.mxu0 0
    %2859 = vmatprep.subr.bf16.mxu0 0
    %2860 = vmatpush1.bf16.msra.mxu0 0
    %2861 = vmatprep.subr.bf16.mxu0 0
    %2862 = vmatpush1.bf16.msra.mxu0 0
    %2863 = vmatprep.subr.bf16.mxu0 0
    %2864 = vmatpush1.bf16.msra.mxu0 0
    %2865 = vmatprep.subr.bf16.mxu0 0
    %2866 = vmatpush1.bf16.msra.mxu0 0
    %2867 = vmatprep.subr.bf16.mxu0 0
    %2868 = vmatpush1.bf16.msra.mxu0 0
    %2869 = vmatprep.subr.bf16.mxu0 0
    %2870 = vmatpush1.bf16.msra.mxu0 0
    %2871 = vmatprep.subr.bf16.mxu0 0
    %2872 = vmatpush1.bf16.msra.mxu0 0
    %2873 = vmatprep.subr.bf16.mxu0 0
    %2874 = vmatpush1.bf16.msra.mxu0 0
    %2875 = vmatprep.subr.bf16.mxu0 0
    %2876 = vmatpush1.bf16.msra.mxu0 0
    %2877 = vmatprep.subr.bf16.mxu0 0
    %2878 = vmatpush1.bf16.msra.mxu0 0
    %2879 = vmatprep.mubr.bf16.mxu0 0
    %2880 = vmatmul.mubr.bf16.gmra.mrb[0].mxu0 %v2845
    %v2881 = vpop.f32.mrb[0].mxu0
    %v2882 = vadd.f32 0.0, %v2881
    %v2883 = vpop.f32.mrb[0].mxu0
    %v2884 = vpop.f32.mrb[0].mxu0
    %v2885 = vadd.f32 0.0, %v2884
    %v2886 = vpop.f32.mrb[0].mxu0
    %2887 = vdwg.mxu0
    %v2888 = vadd.f32 %v2603, %v2882
    %v2889 = vadd.f32 %v2604, %v2885
    %2890 = vrot.lane.b32.xlu0 %v2306, 64
    %v2891 = vpop.permute.xlu0 %2890
    %2892 = vrot.lane.b32.xlu0 %v2308, 64
    %v2893 = vpop.permute.xlu0 %2892
    %v2895 = vsel %vm509, %v2891, 0
    %v2898 = vsel %vm509, %v2893, 0
    %2900 = vmatprep.subr.bf16.mxu0 0
    %2901 = vmatpush1.bf16.xpose.msra.mxu0 %v2898
    %2902 = vmatprep.subr.bf16.mxu0 0
    %2903 = vmatpush1.bf16.xpose.msra.mxu0 0
    %2904 = vmatprep.subr.bf16.mxu0 0
    %2905 = vmatpush1.bf16.xpose.msra.mxu0 0
    %2906 = vmatprep.subr.bf16.mxu0 0
    %2907 = vmatpush1.bf16.xpose.msra.mxu0 0
    %2908 = vmatprep.subr.bf16.mxu0 0
    %2909 = vmatpush1.bf16.xpose.msra.mxu0 0
    %2910 = vmatprep.subr.bf16.mxu0 0
    %2911 = vmatpush1.bf16.xpose.msra.mxu0 0
    %2912 = vmatprep.subr.bf16.mxu0 0
    %2913 = vmatpush1.bf16.xpose.msra.mxu0 0
    %2914 = vmatprep.subr.bf16.mxu0 0
    %2915 = vmatpush1.bf16.xpose.msra.mxu0 0
    %2916 = vmatprep.subr.bf16.mxu0 0
    %2917 = vmatpush1.bf16.xpose.msra.mxu0 0
    %2918 = vmatprep.subr.bf16.mxu0 0
    %2919 = vmatpush1.bf16.xpose.msra.mxu0 0
    %2920 = vmatprep.subr.bf16.mxu0 0
    %2921 = vmatpush1.bf16.xpose.msra.mxu0 0
    %2922 = vmatprep.subr.bf16.mxu0 0
    %2923 = vmatpush1.bf16.xpose.msra.mxu0 0
    %2924 = vmatprep.subr.bf16.mxu0 0
    %2925 = vmatpush1.bf16.xpose.msra.mxu0 0
    %2926 = vmatprep.subr.bf16.mxu0 0
    %2927 = vmatpush1.bf16.xpose.msra.mxu0 0
    %2928 = vmatprep.subr.bf16.mxu0 0
    %2929 = vmatpush1.bf16.xpose.msra.mxu0 0
    %2930 = vmatprep.subr.bf16.mxu0 0
    %2931 = vmatpush1.bf16.xpose.msra.mxu0 0
    %2932 = vmatprep.mubr.bf16.mxu0 0
    %2933 = vmatmul.mubr.bf16.gmra.mrb[0].mxu0 %v2895
    %v2934 = vpop.f32.mrb[0].mxu0
    %v2935 = vadd.f32 %v214, %v2934
    %v2936 = vpop.f32.mrb[0].mxu0
    %v2937 = vpop.f32.mrb[0].mxu0
    %v2938 = vpop.f32.mrb[0].mxu0
    %2939 = vdwg.mxu0
    %2940 = vrot.lane.b32.xlu0 %v2307, 64
    %v2941 = vpop.permute.xlu0 %2940
    %2942 = vrot.lane.b32.xlu0 %v2309, 64
    %v2943 = vpop.permute.xlu0 %2942
    %v2945 = vsel %vm509, %v2941, 0
    %v2948 = vsel %vm509, %v2943, 0
    %2950 = vmatprep.subr.bf16.mxu0 0
    %2951 = vmatpush1.bf16.xpose.msra.mxu0 %v2948
    %2952 = vmatprep.subr.bf16.mxu0 0
    %2953 = vmatpush1.bf16.xpose.msra.mxu0 0
    %2954 = vmatprep.subr.bf16.mxu0 0
    %2955 = vmatpush1.bf16.xpose.msra.mxu0 0
    %2956 = vmatprep.subr.bf16.mxu0 0
    %2957 = vmatpush1.bf16.xpose.msra.mxu0 0
    %2958 = vmatprep.subr.bf16.mxu0 0
    %2959 = vmatpush1.bf16.xpose.msra.mxu0 0
    %2960 = vmatprep.subr.bf16.mxu0 0
    %2961 = vmatpush1.bf16.xpose.msra.mxu0 0
    %2962 = vmatprep.subr.bf16.mxu0 0
    %2963 = vmatpush1.bf16.xpose.msra.mxu0 0
    %2964 = vmatprep.subr.bf16.mxu0 0
    %2965 = vmatpush1.bf16.xpose.msra.mxu0 0
    %2966 = vmatprep.subr.bf16.mxu0 0
    %2967 = vmatpush1.bf16.xpose.msra.mxu0 0
    %2968 = vmatprep.subr.bf16.mxu0 0
    %2969 = vmatpush1.bf16.xpose.msra.mxu0 0
    %2970 = vmatprep.subr.bf16.mxu0 0
    %2971 = vmatpush1.bf16.xpose.msra.mxu0 0
    %2972 = vmatprep.subr.bf16.mxu0 0
    %2973 = vmatpush1.bf16.xpose.msra.mxu0 0
    %2974 = vmatprep.subr.bf16.mxu0 0
    %2975 = vmatpush1.bf16.xpose.msra.mxu0 0
    %2976 = vmatprep.subr.bf16.mxu0 0
    %2977 = vmatpush1.bf16.xpose.msra.mxu0 0
    %2978 = vmatprep.subr.bf16.mxu0 0
    %2979 = vmatpush1.bf16.xpose.msra.mxu0 0
    %2980 = vmatprep.subr.bf16.mxu0 0
    %2981 = vmatpush1.bf16.xpose.msra.mxu0 0
    %2982 = vmatprep.mubr.bf16.mxu0 0
    %2983 = vmatmul.mubr.bf16.gmra.mrb[0].mxu0 %v2945
    %v2984 = vpop.f32.mrb[0].mxu0
    %v2985 = vadd.f32 %v214, %v2984
    %v2986 = vpop.f32.mrb[0].mxu0
    %v2987 = vpop.f32.mrb[0].mxu0
    %v2988 = vpop.f32.mrb[0].mxu0
    %2989 = vdwg.mxu0
    %v2990 = vsel %vm602, %v2935, -inf
    %2991 = vmax.xlane.f32.xlu0 %v2990
    %v2992 = vpop.xlane.xlu0 %2991
    %v2993 = vsel %vm602, %v2985, -inf
    %2994 = vmax.xlane.f32.xlu0 %v2993
    %v2995 = vpop.xlane.xlu0 %2994
    %v2996 = vsub.f32 %v2935, %v2992
    %v2997 = vsub.f32 %v2985, %v2995
    %v2998 = vmul.f32 %v2996, 1.442695
    %v2999 = vpow.pop %v2998
    %v3000 = vmul.f32 %v2997, 1.442695
    %v3001 = vpow.pop %v3000
    %v3002 = vsel %vm602, %v2999, 0.0
    %3003 = vadd.xlane.f32.xlu0 %v3002
    %v3004 = vpop.xlane.xlu0 %3003
    %v3005 = vsel %vm602, %v3001, 0.0
    %3006 = vadd.xlane.f32.xlu0 %v3005
    %v3007 = vpop.xlane.xlu0 %3006
    %v3008 = vrcp.pop %v3004
    %v3009 = vrcp.pop %v3007
    %v3010 = vmul.f32 %v2999, %v3008
    %v3011 = vmul.f32 %v3001, %v3009
    %v3012 = vpack.c.bf16 %v3010, %v3010
    %v3013 = vpack.c.bf16 %v3011, %v3011
    %3014 = vrot.lane.b32.xlu0 %v2310, 64
    %v3015 = vpop.permute.xlu0 %3014
    %v3017 = vsel %vm602, %v3012, 0
    %v3020 = vsel %vm127, %v3015, 0
    %3022 = vmatprep.subr.bf16.mxu0 0
    %3023 = vmatpush1.bf16.msra.mxu0 %v3020
    %3024 = vmatprep.subr.bf16.mxu0 0
    %3025 = vmatpush1.bf16.msra.mxu0 0
    %3026 = vmatprep.subr.bf16.mxu0 0
    %3027 = vmatpush1.bf16.msra.mxu0 0
    %3028 = vmatprep.subr.bf16.mxu0 0
    %3029 = vmatpush1.bf16.msra.mxu0 0
    %3030 = vmatprep.subr.bf16.mxu0 0
    %3031 = vmatpush1.bf16.msra.mxu0 0
    %3032 = vmatprep.subr.bf16.mxu0 0
    %3033 = vmatpush1.bf16.msra.mxu0 0
    %3034 = vmatprep.subr.bf16.mxu0 0
    %3035 = vmatpush1.bf16.msra.mxu0 0
    %3036 = vmatprep.subr.bf16.mxu0 0
    %3037 = vmatpush1.bf16.msra.mxu0 0
    %3038 = vmatprep.subr.bf16.mxu0 0
    %3039 = vmatpush1.bf16.msra.mxu0 0
    %3040 = vmatprep.subr.bf16.mxu0 0
    %3041 = vmatpush1.bf16.msra.mxu0 0
    %3042 = vmatprep.subr.bf16.mxu0 0
    %3043 = vmatpush1.bf16.msra.mxu0 0
    %3044 = vmatprep.subr.bf16.mxu0 0
    %3045 = vmatpush1.bf16.msra.mxu0 0
    %3046 = vmatprep.subr.bf16.mxu0 0
    %3047 = vmatpush1.bf16.msra.mxu0 0
    %3048 = vmatprep.subr.bf16.mxu0 0
    %3049 = vmatpush1.bf16.msra.mxu0 0
    %3050 = vmatprep.subr.bf16.mxu0 0
    %3051 = vmatpush1.bf16.msra.mxu0 0
    %3052 = vmatprep.subr.bf16.mxu0 0
    %3053 = vmatpush1.bf16.msra.mxu0 0
    %3054 = vmatprep.mubr.bf16.mxu0 0
    %3055 = vmatmul.mubr.bf16.gmra.mrb[0].mxu0 %v3017
    %v3056 = vpop.f32.mrb[0].mxu0
    %v3057 = vadd.f32 0.0, %v3056
    %v3058 = vpop.f32.mrb[0].mxu0
    %v3059 = vpop.f32.mrb[0].mxu0
    %v3060 = vpop.f32.mrb[0].mxu0
    %3061 = vdwg.mxu0
    %3062 = vrot.lane.b32.xlu0 %v2311, 64
    %v3063 = vpop.permute.xlu0 %3062
    %v3065 = vsel %vm602, %v3013, 0
    %v3068 = vsel %vm127, %v3063, 0
    %3070 = vmatprep.subr.bf16.mxu0 0
    %3071 = vmatpush1.bf16.msra.mxu0 %v3068
    %3072 = vmatprep.subr.bf16.mxu0 0
    %3073 = vmatpush1.bf16.msra.mxu0 0
    %3074 = vmatprep.subr.bf16.mxu0 0
    %3075 = vmatpush1.bf16.msra.mxu0 0
    %3076 = vmatprep.subr.bf16.mxu0 0
    %3077 = vmatpush1.bf16.msra.mxu0 0
    %3078 = vmatprep.subr.bf16.mxu0 0
    %3079 = vmatpush1.bf16.msra.mxu0 0
    %3080 = vmatprep.subr.bf16.mxu0 0
    %3081 = vmatpush1.bf16.msra.mxu0 0
    %3082 = vmatprep.subr.bf16.mxu0 0
    %3083 = vmatpush1.bf16.msra.mxu0 0
    %3084 = vmatprep.subr.bf16.mxu0 0
    %3085 = vmatpush1.bf16.msra.mxu0 0
    %3086 = vmatprep.subr.bf16.mxu0 0
    %3087 = vmatpush1.bf16.msra.mxu0 0
    %3088 = vmatprep.subr.bf16.mxu0 0
    %3089 = vmatpush1.bf16.msra.mxu0 0
    %3090 = vmatprep.subr.bf16.mxu0 0
    %3091 = vmatpush1.bf16.msra.mxu0 0
    %3092 = vmatprep.subr.bf16.mxu0 0
    %3093 = vmatpush1.bf16.msra.mxu0 0
    %3094 = vmatprep.subr.bf16.mxu0 0
    %3095 = vmatpush1.bf16.msra.mxu0 0
    %3096 = vmatprep.subr.bf16.mxu0 0
    %3097 = vmatpush1.bf16.msra.mxu0 0
    %3098 = vmatprep.subr.bf16.mxu0 0
    %3099 = vmatpush1.bf16.msra.mxu0 0
    %3100 = vmatprep.subr.bf16.mxu0 0
    %3101 = vmatpush1.bf16.msra.mxu0 0
    %3102 = vmatprep.mubr.bf16.mxu0 0
    %3103 = vmatmul.mubr.bf16.gmra.mrb[0].mxu0 %v3065
    %v3104 = vpop.f32.mrb[0].mxu0
    %v3105 = vadd.f32 0.0, %v3104
    %v3106 = vpop.f32.mrb[0].mxu0
    %v3107 = vpop.f32.mrb[0].mxu0
    %v3108 = vpop.f32.mrb[0].mxu0
    %3109 = vdwg.mxu0
    %v3110 = vpack.c.bf16 %v3105, %v3057
    %v3115 = vunpack.c.l.b16 %v2321
    %v3116 = vunpack.c.l.b16 %v2322
    %v3117 = vunpack.c.l.b16 %v2323
    %v3118 = vunpack.c.l.b16 %v2324
    %v3119 = vpack.c.b16 %v3116, %v3115
    %v3120 = vpack.c.b16 %v3118, %v3117
    %v3124 = vsel %vm509, %v3110, 0
    %3126 = vmatprep.subr.bf16.mxu0 0
    %3127 = vmatpush1.bf16.msra.mxu0 %v3119
    %3128 = vmatprep.subr.bf16.mxu0 0
    %3129 = vmatpush1.bf16.msra.mxu0 %v3120
    %3130 = vmatprep.subr.bf16.mxu0 0
    %3131 = vmatpush1.bf16.msra.mxu0 0
    %3132 = vmatprep.subr.bf16.mxu0 0
    %3133 = vmatpush1.bf16.msra.mxu0 0
    %3134 = vmatprep.subr.bf16.mxu0 0
    %3135 = vmatpush1.bf16.msra.mxu0 0
    %3136 = vmatprep.subr.bf16.mxu0 0
    %3137 = vmatpush1.bf16.msra.mxu0 0
    %3138 = vmatprep.subr.bf16.mxu0 0
    %3139 = vmatpush1.bf16.msra.mxu0 0
    %3140 = vmatprep.subr.bf16.mxu0 0
    %3141 = vmatpush1.bf16.msra.mxu0 0
    %3142 = vmatprep.subr.bf16.mxu0 0
    %3143 = vmatpush1.bf16.msra.mxu0 0
    %3144 = vmatprep.subr.bf16.mxu0 0
    %3145 = vmatpush1.bf16.msra.mxu0 0
    %3146 = vmatprep.subr.bf16.mxu0 0
    %3147 = vmatpush1.bf16.msra.mxu0 0
    %3148 = vmatprep.subr.bf16.mxu0 0
    %3149 = vmatpush1.bf16.msra.mxu0 0
    %3150 = vmatprep.subr.bf16.mxu0 0
    %3151 = vmatpush1.bf16.msra.mxu0 0
    %3152 = vmatprep.subr.bf16.mxu0 0
    %3153 = vmatpush1.bf16.msra.mxu0 0
    %3154 = vmatprep.subr.bf16.mxu0 0
    %3155 = vmatpush1.bf16.msra.mxu0 0
    %3156 = vmatprep.subr.bf16.mxu0 0
    %3157 = vmatpush1.bf16.msra.mxu0 0
    %3158 = vmatprep.mubr.bf16.mxu0 0
    %3159 = vmatmul.mubr.bf16.gmra.mrb[0].mxu0 %v3124
    %v3160 = vpop.f32.mrb[0].mxu0
    %v3161 = vadd.f32 0.0, %v3160
    %v3162 = vpop.f32.mrb[0].mxu0
    %v3163 = vpop.f32.mrb[0].mxu0
    %v3164 = vadd.f32 0.0, %v3163
    %v3165 = vpop.f32.mrb[0].mxu0
    %3166 = vdwg.mxu0
    %v3167 = vadd.f32 %v2888, %v3161
    %v3168 = vadd.f32 %v2889, %v3164
    %3169 = vrot.lane.b32.xlu0 %v2306, 32
    %v3170 = vpop.permute.xlu0 %3169
    %3171 = vrot.lane.b32.xlu0 %v2308, 32
    %v3172 = vpop.permute.xlu0 %3171
    %v3174 = vsel %vm509, %v3170, 0
    %v3177 = vsel %vm509, %v3172, 0
    %3179 = vmatprep.subr.bf16.mxu0 0
    %3180 = vmatpush1.bf16.xpose.msra.mxu0 %v3177
    %3181 = vmatprep.subr.bf16.mxu0 0
    %3182 = vmatpush1.bf16.xpose.msra.mxu0 0
    %3183 = vmatprep.subr.bf16.mxu0 0
    %3184 = vmatpush1.bf16.xpose.msra.mxu0 0
    %3185 = vmatprep.subr.bf16.mxu0 0
    %3186 = vmatpush1.bf16.xpose.msra.mxu0 0
    %3187 = vmatprep.subr.bf16.mxu0 0
    %3188 = vmatpush1.bf16.xpose.msra.mxu0 0
    %3189 = vmatprep.subr.bf16.mxu0 0
    %3190 = vmatpush1.bf16.xpose.msra.mxu0 0
    %3191 = vmatprep.subr.bf16.mxu0 0
    %3192 = vmatpush1.bf16.xpose.msra.mxu0 0
    %3193 = vmatprep.subr.bf16.mxu0 0
    %3194 = vmatpush1.bf16.xpose.msra.mxu0 0
    %3195 = vmatprep.subr.bf16.mxu0 0
    %3196 = vmatpush1.bf16.xpose.msra.mxu0 0
    %3197 = vmatprep.subr.bf16.mxu0 0
    %3198 = vmatpush1.bf16.xpose.msra.mxu0 0
    %3199 = vmatprep.subr.bf16.mxu0 0
    %3200 = vmatpush1.bf16.xpose.msra.mxu0 0
    %3201 = vmatprep.subr.bf16.mxu0 0
    %3202 = vmatpush1.bf16.xpose.msra.mxu0 0
    %3203 = vmatprep.subr.bf16.mxu0 0
    %3204 = vmatpush1.bf16.xpose.msra.mxu0 0
    %3205 = vmatprep.subr.bf16.mxu0 0
    %3206 = vmatpush1.bf16.xpose.msra.mxu0 0
    %3207 = vmatprep.subr.bf16.mxu0 0
    %3208 = vmatpush1.bf16.xpose.msra.mxu0 0
    %3209 = vmatprep.subr.bf16.mxu0 0
    %3210 = vmatpush1.bf16.xpose.msra.mxu0 0
    %3211 = vmatprep.mubr.bf16.mxu0 0
    %3212 = vmatmul.mubr.bf16.gmra.mrb[0].mxu0 %v3174
    %v3213 = vpop.f32.mrb[0].mxu0
    %v3214 = vadd.f32 %v214, %v3213
    %v3215 = vpop.f32.mrb[0].mxu0
    %v3216 = vpop.f32.mrb[0].mxu0
    %v3217 = vpop.f32.mrb[0].mxu0
    %3218 = vdwg.mxu0
    %3219 = vrot.lane.b32.xlu0 %v2307, 32
    %v3220 = vpop.permute.xlu0 %3219
    %3221 = vrot.lane.b32.xlu0 %v2309, 32
    %v3222 = vpop.permute.xlu0 %3221
    %v3224 = vsel %vm509, %v3220, 0
    %v3227 = vsel %vm509, %v3222, 0
    %3229 = vmatprep.subr.bf16.mxu0 0
    %3230 = vmatpush1.bf16.xpose.msra.mxu0 %v3227
    %3231 = vmatprep.subr.bf16.mxu0 0
    %3232 = vmatpush1.bf16.xpose.msra.mxu0 0
    %3233 = vmatprep.subr.bf16.mxu0 0
    %3234 = vmatpush1.bf16.xpose.msra.mxu0 0
    %3235 = vmatprep.subr.bf16.mxu0 0
    %3236 = vmatpush1.bf16.xpose.msra.mxu0 0
    %3237 = vmatprep.subr.bf16.mxu0 0
    %3238 = vmatpush1.bf16.xpose.msra.mxu0 0
    %3239 = vmatprep.subr.bf16.mxu0 0
    %3240 = vmatpush1.bf16.xpose.msra.mxu0 0
    %3241 = vmatprep.subr.bf16.mxu0 0
    %3242 = vmatpush1.bf16.xpose.msra.mxu0 0
    %3243 = vmatprep.subr.bf16.mxu0 0
    %3244 = vmatpush1.bf16.xpose.msra.mxu0 0
    %3245 = vmatprep.subr.bf16.mxu0 0
    %3246 = vmatpush1.bf16.xpose.msra.mxu0 0
    %3247 = vmatprep.subr.bf16.mxu0 0
    %3248 = vmatpush1.bf16.xpose.msra.mxu0 0
    %3249 = vmatprep.subr.bf16.mxu0 0
    %3250 = vmatpush1.bf16.xpose.msra.mxu0 0
    %3251 = vmatprep.subr.bf16.mxu0 0
    %3252 = vmatpush1.bf16.xpose.msra.mxu0 0
    %3253 = vmatprep.subr.bf16.mxu0 0
    %3254 = vmatpush1.bf16.xpose.msra.mxu0 0
    %3255 = vmatprep.subr.bf16.mxu0 0
    %3256 = vmatpush1.bf16.xpose.msra.mxu0 0
    %3257 = vmatprep.subr.bf16.mxu0 0
    %3258 = vmatpush1.bf16.xpose.msra.mxu0 0
    %3259 = vmatprep.subr.bf16.mxu0 0
    %3260 = vmatpush1.bf16.xpose.msra.mxu0 0
    %3261 = vmatprep.mubr.bf16.mxu0 0
    %3262 = vmatmul.mubr.bf16.gmra.mrb[0].mxu0 %v3224
    %v3263 = vpop.f32.mrb[0].mxu0
    %v3264 = vadd.f32 %v214, %v3263
    %v3265 = vpop.f32.mrb[0].mxu0
    %v3266 = vpop.f32.mrb[0].mxu0
    %v3267 = vpop.f32.mrb[0].mxu0
    %3268 = vdwg.mxu0
    %v3269 = vsel %vm602, %v3214, -inf
    %3270 = vmax.xlane.f32.xlu0 %v3269
    %v3271 = vpop.xlane.xlu0 %3270
    %v3272 = vsel %vm602, %v3264, -inf
    %3273 = vmax.xlane.f32.xlu0 %v3272
    %v3274 = vpop.xlane.xlu0 %3273
    %v3275 = vsub.f32 %v3214, %v3271
    %v3276 = vsub.f32 %v3264, %v3274
    %v3277 = vmul.f32 %v3275, 1.442695
    %v3278 = vpow.pop %v3277
    %v3279 = vmul.f32 %v3276, 1.442695
    %v3280 = vpow.pop %v3279
    %v3281 = vsel %vm602, %v3278, 0.0
    %3282 = vadd.xlane.f32.xlu0 %v3281
    %v3283 = vpop.xlane.xlu0 %3282
    %v3284 = vsel %vm602, %v3280, 0.0
    %3285 = vadd.xlane.f32.xlu0 %v3284
    %v3286 = vpop.xlane.xlu0 %3285
    %v3287 = vrcp.pop %v3283
    %v3288 = vrcp.pop %v3286
    %v3289 = vmul.f32 %v3278, %v3287
    %v3290 = vmul.f32 %v3280, %v3288
    %v3291 = vpack.c.bf16 %v3289, %v3289
    %v3292 = vpack.c.bf16 %v3290, %v3290
    %3293 = vrot.lane.b32.xlu0 %v2310, 32
    %v3294 = vpop.permute.xlu0 %3293
    %v3296 = vsel %vm602, %v3291, 0
    %v3299 = vsel %vm127, %v3294, 0
    %3301 = vmatprep.subr.bf16.mxu0 0
    %3302 = vmatpush1.bf16.msra.mxu0 %v3299
    %3303 = vmatprep.subr.bf16.mxu0 0
    %3304 = vmatpush1.bf16.msra.mxu0 0
    %3305 = vmatprep.subr.bf16.mxu0 0
    %3306 = vmatpush1.bf16.msra.mxu0 0
    %3307 = vmatprep.subr.bf16.mxu0 0
    %3308 = vmatpush1.bf16.msra.mxu0 0
    %3309 = vmatprep.subr.bf16.mxu0 0
    %3310 = vmatpush1.bf16.msra.mxu0 0
    %3311 = vmatprep.subr.bf16.mxu0 0
    %3312 = vmatpush1.bf16.msra.mxu0 0
    %3313 = vmatprep.subr.bf16.mxu0 0
    %3314 = vmatpush1.bf16.msra.mxu0 0
    %3315 = vmatprep.subr.bf16.mxu0 0
    %3316 = vmatpush1.bf16.msra.mxu0 0
    %3317 = vmatprep.subr.bf16.mxu0 0
    %3318 = vmatpush1.bf16.msra.mxu0 0
    %3319 = vmatprep.subr.bf16.mxu0 0
    %3320 = vmatpush1.bf16.msra.mxu0 0
    %3321 = vmatprep.subr.bf16.mxu0 0
    %3322 = vmatpush1.bf16.msra.mxu0 0
    %3323 = vmatprep.subr.bf16.mxu0 0
    %3324 = vmatpush1.bf16.msra.mxu0 0
    %3325 = vmatprep.subr.bf16.mxu0 0
    %3326 = vmatpush1.bf16.msra.mxu0 0
    %3327 = vmatprep.subr.bf16.mxu0 0
    %3328 = vmatpush1.bf16.msra.mxu0 0
    %3329 = vmatprep.subr.bf16.mxu0 0
    %3330 = vmatpush1.bf16.msra.mxu0 0
    %3331 = vmatprep.subr.bf16.mxu0 0
    %3332 = vmatpush1.bf16.msra.mxu0 0
    %3333 = vmatprep.mubr.bf16.mxu0 0
    %3334 = vmatmul.mubr.bf16.gmra.mrb[0].mxu0 %v3296
    %v3335 = vpop.f32.mrb[0].mxu0
    %v3336 = vadd.f32 0.0, %v3335
    %v3337 = vpop.f32.mrb[0].mxu0
    %v3338 = vpop.f32.mrb[0].mxu0
    %v3339 = vpop.f32.mrb[0].mxu0
    %3340 = vdwg.mxu0
    %3341 = vrot.lane.b32.xlu0 %v2311, 32
    %v3342 = vpop.permute.xlu0 %3341
    %v3344 = vsel %vm602, %v3292, 0
    %v3347 = vsel %vm127, %v3342, 0
    %3349 = vmatprep.subr.bf16.mxu0 0
    %3350 = vmatpush1.bf16.msra.mxu0 %v3347
    %3351 = vmatprep.subr.bf16.mxu0 0
    %3352 = vmatpush1.bf16.msra.mxu0 0
    %3353 = vmatprep.subr.bf16.mxu0 0
    %3354 = vmatpush1.bf16.msra.mxu0 0
    %3355 = vmatprep.subr.bf16.mxu0 0
    %3356 = vmatpush1.bf16.msra.mxu0 0
    %3357 = vmatprep.subr.bf16.mxu0 0
    %3358 = vmatpush1.bf16.msra.mxu0 0
    %3359 = vmatprep.subr.bf16.mxu0 0
    %3360 = vmatpush1.bf16.msra.mxu0 0
    %3361 = vmatprep.subr.bf16.mxu0 0
    %3362 = vmatpush1.bf16.msra.mxu0 0
    %3363 = vmatprep.subr.bf16.mxu0 0
    %3364 = vmatpush1.bf16.msra.mxu0 0
    %3365 = vmatprep.subr.bf16.mxu0 0
    %3366 = vmatpush1.bf16.msra.mxu0 0
    %3367 = vmatprep.subr.bf16.mxu0 0
    %3368 = vmatpush1.bf16.msra.mxu0 0
    %3369 = vmatprep.subr.bf16.mxu0 0
    %3370 = vmatpush1.bf16.msra.mxu0 0
    %3371 = vmatprep.subr.bf16.mxu0 0
    %3372 = vmatpush1.bf16.msra.mxu0 0
    %3373 = vmatprep.subr.bf16.mxu0 0
    %3374 = vmatpush1.bf16.msra.mxu0 0
    %3375 = vmatprep.subr.bf16.mxu0 0
    %3376 = vmatpush1.bf16.msra.mxu0 0
    %3377 = vmatprep.subr.bf16.mxu0 0
    %3378 = vmatpush1.bf16.msra.mxu0 0
    %3379 = vmatprep.subr.bf16.mxu0 0
    %3380 = vmatpush1.bf16.msra.mxu0 0
    %3381 = vmatprep.mubr.bf16.mxu0 0
    %3382 = vmatmul.mubr.bf16.gmra.mrb[0].mxu0 %v3344
    %v3383 = vpop.f32.mrb[0].mxu0
    %v3384 = vadd.f32 0.0, %v3383
    %v3385 = vpop.f32.mrb[0].mxu0
    %v3386 = vpop.f32.mrb[0].mxu0
    %v3387 = vpop.f32.mrb[0].mxu0
    %3388 = vdwg.mxu0
    %v3389 = vpack.c.bf16 %v3384, %v3336
    %v3394 = vunpack.c.l.b16 %v2325
    %v3395 = vunpack.c.l.b16 %v2326
    %v3396 = vunpack.c.l.b16 %v2327
    %v3397 = vunpack.c.l.b16 %v2328
    %v3398 = vpack.c.b16 %v3395, %v3394
    %v3399 = vpack.c.b16 %v3397, %v3396
    %v3403 = vsel %vm509, %v3389, 0
    %3405 = vmatprep.subr.bf16.mxu0 0
    %3406 = vmatpush1.bf16.msra.mxu0 %v3398
    %3407 = vmatprep.subr.bf16.mxu0 0
    %3408 = vmatpush1.bf16.msra.mxu0 %v3399
    %3409 = vmatprep.subr.bf16.mxu0 0
    %3410 = vmatpush1.bf16.msra.mxu0 0
    %3411 = vmatprep.subr.bf16.mxu0 0
    %3412 = vmatpush1.bf16.msra.mxu0 0
    %3413 = vmatprep.subr.bf16.mxu0 0
    %3414 = vmatpush1.bf16.msra.mxu0 0
    %3415 = vmatprep.subr.bf16.mxu0 0
    %3416 = vmatpush1.bf16.msra.mxu0 0
    %3417 = vmatprep.subr.bf16.mxu0 0
    %3418 = vmatpush1.bf16.msra.mxu0 0
    %3419 = vmatprep.subr.bf16.mxu0 0
    %3420 = vmatpush1.bf16.msra.mxu0 0
    %3421 = vmatprep.subr.bf16.mxu0 0
    %3422 = vmatpush1.bf16.msra.mxu0 0
    %3423 = vmatprep.subr.bf16.mxu0 0
    %3424 = vmatpush1.bf16.msra.mxu0 0
    %3425 = vmatprep.subr.bf16.mxu0 0
    %3426 = vmatpush1.bf16.msra.mxu0 0
    %3427 = vmatprep.subr.bf16.mxu0 0
    %3428 = vmatpush1.bf16.msra.mxu0 0
    %3429 = vmatprep.subr.bf16.mxu0 0
    %3430 = vmatpush1.bf16.msra.mxu0 0
    %3431 = vmatprep.subr.bf16.mxu0 0
    %3432 = vmatpush1.bf16.msra.mxu0 0
    %3433 = vmatprep.subr.bf16.mxu0 0
    %3434 = vmatpush1.bf16.msra.mxu0 0
    %3435 = vmatprep.subr.bf16.mxu0 0
    %3436 = vmatpush1.bf16.msra.mxu0 0
    %3437 = vmatprep.mubr.bf16.mxu0 0
    %3438 = vmatmul.mubr.bf16.gmra.mrb[0].mxu0 %v3403
    %v3439 = vpop.f32.mrb[0].mxu0
    %v3440 = vadd.f32 0.0, %v3439
    %v3441 = vpop.f32.mrb[0].mxu0
    %v3442 = vpop.f32.mrb[0].mxu0
    %v3443 = vadd.f32 0.0, %v3442
    %v3444 = vpop.f32.mrb[0].mxu0
    %3445 = vdwg.mxu0
    %v3446 = vadd.f32 %v3167, %v3440
    %v3447 = vadd.f32 %v3168, %v3443
    %v3448 = vadd.f32 %v2038, %v3446
    %v3449 = vadd.f32 %v2039, %v3447
    %s3450 = scalar_lea.vmem %s12, 1
    %v3451 = vld [vmem:[%s3450] sm:$0x1]
    %s3452 = scalar_lea.vmem %s13, 1
    %v3453 = vld [vmem:[%s3452] sm:$0x1]
    %3454 = vadd.xlane.f32.xlu0 %v3448
    %v3455 = vpop.xlane.xlu0 %3454
    %3456 = vadd.xlane.f32.xlu0 %v3449
    %v3457 = vpop.xlane.xlu0 %3456
    %v3458 = vmul.f32 %v3455, %v1629
    %v3459 = vmul.f32 %v3457, %v1629
    %v3460 = vsub.f32 %v3448, %v3458
    %v3461 = vsub.f32 %v3449, %v3459
    %v3462 = vmul.f32 %v3460, %v3460
    %v3463 = vmul.f32 %v3461, %v3461
    %3464 = vadd.xlane.f32.xlu0 %v3462
    %v3465 = vpop.xlane.xlu0 %3464
    %3466 = vadd.xlane.f32.xlu0 %v3463
    %v3467 = vpop.xlane.xlu0 %3466
    %v3468 = vmul.f32 %v3465, %v1629
    %v3469 = vmul.f32 %v3467, %v1629
    %v3470 = vadd.f32 %v3468, 1e-05
    %v3471 = vadd.f32 %v3469, 1e-05
    %v3472 = vrsqrt.pop %v3470
    %v3473 = vrsqrt.pop %v3471
    %v3474 = vmul.f32 %v3460, %v3472
    %v3475 = vmul.f32 %v3461, %v3473
    %v3477 = vlaneseq
    %v3478 = vshrl.u32 %v3477, 7
    %v3479 = vsub.s32 0, %v3478
    %v3480 = vrot.slane %v3451, %v3479
    %v3482 = vmul.f32 %v3474, %v3480
    %v3483 = vmul.f32 %v3475, %v3480
    %v3485 = vlaneseq
    %v3486 = vshrl.u32 %v3485, 7
    %v3487 = vsub.s32 0, %v3486
    %v3488 = vrot.slane %v3453, %v3487
    %v3490 = vadd.f32 %v3482, %v3488
    %v3491 = vadd.f32 %v3483, %v3488
    %v3492 = vpack.c.bf16 %v3491, %v3490
    %s3493 = scalar_lea.vmem [#allocation7], 128
    %v3494 = vld [vmem:[%s3493] sm:$0xff]
    %v3495 = vld [vmem:[%s3493 + $0x8] sm:$0xff]
    %v3496 = vld [vmem:[%s3493 + $0x10] sm:$0xff]
    %v3497 = vld [vmem:[%s3493 + $0x18] sm:$0xff]
    %v3498 = vld [vmem:[%s3493 + $0x20] sm:$0xff]
    %v3499 = vld [vmem:[%s3493 + $0x28] sm:$0xff]
    %v3500 = vld [vmem:[%s3493 + $0x30] sm:$0xff]
    %v3501 = vld [vmem:[%s3493 + $0x38] sm:$0xff]
    %v3502 = vld [vmem:[%s3493 + $0x40] sm:$0xff]
    %v3503 = vld [vmem:[%s3493 + $0x48] sm:$0xff]
    %v3504 = vld [vmem:[%s3493 + $0x50] sm:$0xff]
    %v3505 = vld [vmem:[%s3493 + $0x58] sm:$0xff]
    %v3506 = vld [vmem:[%s3493 + $0x60] sm:$0xff]
    %v3507 = vld [vmem:[%s3493 + $0x68] sm:$0xff]
    %v3508 = vld [vmem:[%s3493 + $0x70] sm:$0xff]
    %v3509 = vld [vmem:[%s3493 + $0x78] sm:$0xff]
    %s3510 = scalar_lea.vmem %s9, 2
    %v3511 = vld [vmem:[%s3510] sm:$0x3]
    %v3513 = vlaneseq
    %v3514 = vshrl.u32 %v3513, 7
    %v3515 = vsub.s32 0, %v3514
    %v3516 = vrot.slane %v3511, %v3515
    %v3517 = vlaneseq
    %v3518 = vshrl.u32 %v3517, 7
    %v3519 = vsub.s32 1, %v3518
    %v3520 = vrot.slane %v3511, %v3519
    %v3539 = vunpack.c.l.b16 %v3494
    %v3540 = vunpack.c.h.b16 %v3494
    %v3541 = vunpack.c.l.b16 %v3495
    %v3542 = vunpack.c.h.b16 %v3495
    %v3543 = vunpack.c.l.b16 %v3496
    %v3544 = vunpack.c.h.b16 %v3496
    %v3545 = vunpack.c.l.b16 %v3497
    %v3546 = vunpack.c.h.b16 %v3497
    %v3547 = vunpack.c.l.b16 %v3498
    %v3548 = vunpack.c.h.b16 %v3498
    %v3549 = vunpack.c.l.b16 %v3499
    %v3550 = vunpack.c.h.b16 %v3499
    %v3551 = vunpack.c.l.b16 %v3500
    %v3552 = vunpack.c.h.b16 %v3500
    %v3553 = vunpack.c.l.b16 %v3501
    %v3554 = vunpack.c.h.b16 %v3501
    %v3555 = vunpack.c.l.b16 %v3502
    %v3556 = vunpack.c.h.b16 %v3502
    %v3557 = vunpack.c.l.b16 %v3503
    %v3558 = vunpack.c.h.b16 %v3503
    %v3559 = vunpack.c.l.b16 %v3504
    %v3560 = vunpack.c.h.b16 %v3504
    %v3561 = vunpack.c.l.b16 %v3505
    %v3562 = vunpack.c.h.b16 %v3505
    %v3563 = vunpack.c.l.b16 %v3506
    %v3564 = vunpack.c.h.b16 %v3506
    %v3565 = vunpack.c.l.b16 %v3507
    %v3566 = vunpack.c.h.b16 %v3507
    %v3567 = vunpack.c.l.b16 %v3508
    %v3568 = vunpack.c.h.b16 %v3508
    %v3569 = vunpack.c.l.b16 %v3509
    %v3570 = vunpack.c.h.b16 %v3509
    %v3571 = vpack.c.b16 %v3541, %v3539
    %v3572 = vpack.c.b16 %v3542, %v3540
    %v3573 = vpack.c.b16 %v3545, %v3543
    %v3574 = vpack.c.b16 %v3546, %v3544
    %v3575 = vpack.c.b16 %v3549, %v3547
    %v3576 = vpack.c.b16 %v3550, %v3548
    %v3577 = vpack.c.b16 %v3553, %v3551
    %v3578 = vpack.c.b16 %v3554, %v3552
    %v3579 = vpack.c.b16 %v3557, %v3555
    %v3580 = vpack.c.b16 %v3558, %v3556
    %v3581 = vpack.c.b16 %v3561, %v3559
    %v3582 = vpack.c.b16 %v3562, %v3560
    %v3583 = vpack.c.b16 %v3565, %v3563
    %v3584 = vpack.c.b16 %v3566, %v3564
    %v3585 = vpack.c.b16 %v3569, %v3567
    %v3586 = vpack.c.b16 %v3570, %v3568
    %3603 = vmatprep.subr.bf16.mxu0 %v3572
    %3604 = vmatpush1.bf16.msra.mxu0 %v3571
    %3605 = vmatprep.subr.bf16.mxu0 %v3574
    %3606 = vmatpush1.bf16.msra.mxu0 %v3573
    %3607 = vmatprep.subr.bf16.mxu0 %v3576
    %3608 = vmatpush1.bf16.msra.mxu0 %v3575
    %3609 = vmatprep.subr.bf16.mxu0 %v3578
    %3610 = vmatpush1.bf16.msra.mxu0 %v3577
    %3611 = vmatprep.subr.bf16.mxu0 %v3580
    %3612 = vmatpush1.bf16.msra.mxu0 %v3579
    %3613 = vmatprep.subr.bf16.mxu0 %v3582
    %3614 = vmatpush1.bf16.msra.mxu0 %v3581
    %3615 = vmatprep.subr.bf16.mxu0 %v3584
    %3616 = vmatpush1.bf16.msra.mxu0 %v3583
    %3617 = vmatprep.subr.bf16.mxu0 %v3586
    %3618 = vmatpush1.bf16.msra.mxu0 %v3585
    %3619 = vmatprep.subr.bf16.mxu0 0
    %3620 = vmatpush1.bf16.msra.mxu0 0
    %3621 = vmatprep.subr.bf16.mxu0 0
    %3622 = vmatpush1.bf16.msra.mxu0 0
    %3623 = vmatprep.subr.bf16.mxu0 0
    %3624 = vmatpush1.bf16.msra.mxu0 0
    %3625 = vmatprep.subr.bf16.mxu0 0
    %3626 = vmatpush1.bf16.msra.mxu0 0
    %3627 = vmatprep.subr.bf16.mxu0 0
    %3628 = vmatpush1.bf16.msra.mxu0 0
    %3629 = vmatprep.subr.bf16.mxu0 0
    %3630 = vmatpush1.bf16.msra.mxu0 0
    %3631 = vmatprep.subr.bf16.mxu0 0
    %3632 = vmatpush1.bf16.msra.mxu0 0
    %3633 = vmatprep.subr.bf16.mxu0 0
    %3634 = vmatpush1.bf16.msra.mxu0 0
    %3635 = vmatprep.mubr.bf16.mxu0 0
    %3636 = vmatmul.mubr.bf16.gmra.mrb[0].mxu0 %v3492
    %v3637 = vpop.f32.mrb[0].mxu0
    %v3638 = vadd.f32 %v3516, %v3637
    %v3639 = vpop.f32.mrb[0].mxu0
    %v3640 = vadd.f32 %v3520, %v3639
    %v3641 = vpop.f32.mrb[0].mxu0
    %v3642 = vadd.f32 %v3516, %v3641
    %v3643 = vpop.f32.mrb[0].mxu0
    %v3644 = vadd.f32 %v3520, %v3643
    %3645 = vdwg.mxu0
    %v3646 = vmax.f32 %v3638, 0.0
    %v3647 = vmax.f32 %v3640, 0.0
    %v3648 = vmax.f32 %v3642, 0.0
    %v3649 = vmax.f32 %v3644, 0.0
    %v3650 = vpack.c.bf16 %v3648, %v3646
    %v3651 = vpack.c.bf16 %v3649, %v3647
    %s3652 = scalar_lea.vmem [#allocation8], 128
    %v3653 = vld [vmem:[%s3652] sm:$0xf]
    %v3654 = vld [vmem:[%s3652 + $0x4] sm:$0xf]
    %v3655 = vld [vmem:[%s3652 + $0x8] sm:$0xf]
    %v3656 = vld [vmem:[%s3652 + $0xc] sm:$0xf]
    %v3657 = vld [vmem:[%s3652 + $0x10] sm:$0xf]
    %v3658 = vld [vmem:[%s3652 + $0x14] sm:$0xf]
    %v3659 = vld [vmem:[%s3652 + $0x18] sm:$0xf]
    %v3660 = vld [vmem:[%s3652 + $0x1c] sm:$0xf]
    %v3661 = vld [vmem:[%s3652 + $0x20] sm:$0xf]
    %v3662 = vld [vmem:[%s3652 + $0x24] sm:$0xf]
    %v3663 = vld [vmem:[%s3652 + $0x28] sm:$0xf]
    %v3664 = vld [vmem:[%s3652 + $0x2c] sm:$0xf]
    %v3665 = vld [vmem:[%s3652 + $0x30] sm:$0xf]
    %v3666 = vld [vmem:[%s3652 + $0x34] sm:$0xf]
    %v3667 = vld [vmem:[%s3652 + $0x38] sm:$0xf]
    %v3668 = vld [vmem:[%s3652 + $0x3c] sm:$0xf]
    %v3669 = vld [vmem:[%s3652 + $0x40] sm:$0xf]
    %v3670 = vld [vmem:[%s3652 + $0x44] sm:$0xf]
    %v3671 = vld [vmem:[%s3652 + $0x48] sm:$0xf]
    %v3672 = vld [vmem:[%s3652 + $0x4c] sm:$0xf]
    %v3673 = vld [vmem:[%s3652 + $0x50] sm:$0xf]
    %v3674 = vld [vmem:[%s3652 + $0x54] sm:$0xf]
    %v3675 = vld [vmem:[%s3652 + $0x58] sm:$0xf]
    %v3676 = vld [vmem:[%s3652 + $0x5c] sm:$0xf]
    %v3677 = vld [vmem:[%s3652 + $0x60] sm:$0xf]
    %v3678 = vld [vmem:[%s3652 + $0x64] sm:$0xf]
    %v3679 = vld [vmem:[%s3652 + $0x68] sm:$0xf]
    %v3680 = vld [vmem:[%s3652 + $0x6c] sm:$0xf]
    %v3681 = vld [vmem:[%s3652 + $0x70] sm:$0xf]
    %v3682 = vld [vmem:[%s3652 + $0x74] sm:$0xf]
    %v3683 = vld [vmem:[%s3652 + $0x78] sm:$0xf]
    %v3684 = vld [vmem:[%s3652 + $0x7c] sm:$0xf]
    %s3685 = scalar_lea.vmem %s11, 1
    %v3686 = vld [vmem:[%s3685] sm:$0x1]
    %v3688 = vlaneseq
    %v3689 = vshrl.u32 %v3688, 7
    %v3690 = vsub.s32 0, %v3689
    %v3691 = vrot.slane %v3686, %v3690
    %v3725 = vunpack.c.l.b16 %v3653
    %v3726 = vunpack.c.l.b16 %v3654
    %v3727 = vunpack.c.l.b16 %v3655
    %v3728 = vunpack.c.l.b16 %v3656
    %v3729 = vunpack.c.l.b16 %v3657
    %v3730 = vunpack.c.l.b16 %v3658
    %v3731 = vunpack.c.l.b16 %v3659
    %v3732 = vunpack.c.l.b16 %v3660
    %v3733 = vunpack.c.l.b16 %v3661
    %v3734 = vunpack.c.l.b16 %v3662
    %v3735 = vunpack.c.l.b16 %v3663
    %v3736 = vunpack.c.l.b16 %v3664
    %v3737 = vunpack.c.l.b16 %v3665
    %v3738 = vunpack.c.l.b16 %v3666
    %v3739 = vunpack.c.l.b16 %v3667
    %v3740 = vunpack.c.l.b16 %v3668
    %v3741 = vunpack.c.l.b16 %v3669
    %v3742 = vunpack.c.l.b16 %v3670
    %v3743 = vunpack.c.l.b16 %v3671
    %v3744 = vunpack.c.l.b16 %v3672
    %v3745 = vunpack.c.l.b16 %v3673
    %v3746 = vunpack.c.l.b16 %v3674
    %v3747 = vunpack.c.l.b16 %v3675
    %v3748 = vunpack.c.l.b16 %v3676
    %v3749 = vunpack.c.l.b16 %v3677
    %v3750 = vunpack.c.l.b16 %v3678
    %v3751 = vunpack.c.l.b16 %v3679
    %v3752 = vunpack.c.l.b16 %v3680
    %v3753 = vunpack.c.l.b16 %v3681
    %v3754 = vunpack.c.l.b16 %v3682
    %v3755 = vunpack.c.l.b16 %v3683
    %v3756 = vunpack.c.l.b16 %v3684
    %v3757 = vpack.c.b16 %v3726, %v3725
    %v3758 = vpack.c.b16 %v3728, %v3727
    %v3759 = vpack.c.b16 %v3730, %v3729
    %v3760 = vpack.c.b16 %v3732, %v3731
    %v3761 = vpack.c.b16 %v3734, %v3733
    %v3762 = vpack.c.b16 %v3736, %v3735
    %v3763 = vpack.c.b16 %v3738, %v3737
    %v3764 = vpack.c.b16 %v3740, %v3739
    %v3765 = vpack.c.b16 %v3742, %v3741
    %v3766 = vpack.c.b16 %v3744, %v3743
    %v3767 = vpack.c.b16 %v3746, %v3745
    %v3768 = vpack.c.b16 %v3748, %v3747
    %v3769 = vpack.c.b16 %v3750, %v3749
    %v3770 = vpack.c.b16 %v3752, %v3751
    %v3771 = vpack.c.b16 %v3754, %v3753
    %v3772 = vpack.c.b16 %v3756, %v3755
    %3789 = vmatprep.subr.bf16.mxu0 0
    %3790 = vmatpush1.bf16.msra.mxu0 %v3757
    %3791 = vmatprep.subr.bf16.mxu0 0
    %3792 = vmatpush1.bf16.msra.mxu0 %v3758
    %3793 = vmatprep.subr.bf16.mxu0 0
    %3794 = vmatpush1.bf16.msra.mxu0 %v3759
    %3795 = vmatprep.subr.bf16.mxu0 0
    %3796 = vmatpush1.bf16.msra.mxu0 %v3760
    %3797 = vmatprep.subr.bf16.mxu0 0
    %3798 = vmatpush1.bf16.msra.mxu0 %v3761
    %3799 = vmatprep.subr.bf16.mxu0 0
    %3800 = vmatpush1.bf16.msra.mxu0 %v3762
    %3801 = vmatprep.subr.bf16.mxu0 0
    %3802 = vmatpush1.bf16.msra.mxu0 %v3763
    %3803 = vmatprep.subr.bf16.mxu0 0
    %3804 = vmatpush1.bf16.msra.mxu0 %v3764
    %3805 = vmatprep.subr.bf16.mxu0 0
    %3806 = vmatpush1.bf16.msra.mxu0 %v3765
    %3807 = vmatprep.subr.bf16.mxu0 0
    %3808 = vmatpush1.bf16.msra.mxu0 %v3766
    %3809 = vmatprep.subr.bf16.mxu0 0
    %3810 = vmatpush1.bf16.msra.mxu0 %v3767
    %3811 = vmatprep.subr.bf16.mxu0 0
    %3812 = vmatpush1.bf16.msra.mxu0 %v3768
    %3813 = vmatprep.subr.bf16.mxu0 0
    %3814 = vmatpush1.bf16.msra.mxu0 %v3769
    %3815 = vmatprep.subr.bf16.mxu0 0
    %3816 = vmatpush1.bf16.msra.mxu0 %v3770
    %3817 = vmatprep.subr.bf16.mxu0 0
    %3818 = vmatpush1.bf16.msra.mxu0 %v3771
    %3819 = vmatprep.subr.bf16.mxu0 0
    %3820 = vmatpush1.bf16.msra.mxu0 %v3772
    %3821 = vmatprep.mubr.bf16.mxu0 %v3651
    %3822 = vmatmul.mubr.bf16.gmra.mrb[0].mxu0 %v3650
    %v3823 = vpop.f32.mrb[0].mxu0
    %v3824 = vadd.f32 %v3691, %v3823
    %v3825 = vpop.f32.mrb[0].mxu0
    %v3826 = vpop.f32.mrb[0].mxu0
    %v3827 = vadd.f32 %v3691, %v3826
    %v3828 = vpop.f32.mrb[0].mxu0
    %3829 = vdwg.mxu0
    %v3830 = vadd.f32 %v3490, %v3824
    %v3831 = vadd.f32 %v3491, %v3827
    %s3832 = scalar_lea.vmem %s14, 1
    %v3833 = vld [vmem:[%s3832] sm:$0x1]
    %s3834 = scalar_lea.vmem %s15, 1
    %v3835 = vld [vmem:[%s3834] sm:$0x1]
    %3836 = vadd.xlane.f32.xlu0 %v3830
    %v3837 = vpop.xlane.xlu0 %3836
    %3838 = vadd.xlane.f32.xlu0 %v3831
    %v3839 = vpop.xlane.xlu0 %3838
    %v3840 = vmul.f32 %v3837, %v1629
    %v3841 = vmul.f32 %v3839, %v1629
    %v3842 = vsub.f32 %v3830, %v3840
    %v3843 = vsub.f32 %v3831, %v3841
    %v3844 = vmul.f32 %v3842, %v3842
    %v3845 = vmul.f32 %v3843, %v3843
    %3846 = vadd.xlane.f32.xlu0 %v3844
    %v3847 = vpop.xlane.xlu0 %3846
    %3848 = vadd.xlane.f32.xlu0 %v3845
    %v3849 = vpop.xlane.xlu0 %3848
    %v3850 = vmul.f32 %v3847, %v1629
    %v3851 = vmul.f32 %v3849, %v1629
    %v3852 = vadd.f32 %v3850, 1e-05
    %v3853 = vadd.f32 %v3851, 1e-05
    %v3854 = vrsqrt.pop %v3852
    %v3855 = vrsqrt.pop %v3853
    %v3856 = vmul.f32 %v3842, %v3854
    %v3857 = vmul.f32 %v3843, %v3855
    %v3859 = vlaneseq
    %v3860 = vshrl.u32 %v3859, 7
    %v3861 = vsub.s32 0, %v3860
    %v3862 = vrot.slane %v3833, %v3861
    %v3864 = vmul.f32 %v3856, %v3862
    %v3865 = vmul.f32 %v3857, %v3862
    %v3867 = vlaneseq
    %v3868 = vshrl.u32 %v3867, 7
    %v3869 = vsub.s32 0, %v3868
    %v3870 = vrot.slane %v3835, %v3869
    %v3872 = vadd.f32 %v3864, %v3870
    %v3873 = vadd.f32 %v3865, %v3870
    %3874 = vst [vmem:[#allocation10] sm:$0xff] %v3872
    %3875 = vst [vmem:[#allocation10 + $0x8] sm:$0xff] %v3873
    // Predicated region
    $region82: #{tpu_custom_call.1} parent=1 // pred_check
      _
    $region83: #{tpu_custom_call.1} parent=1 // pred_check_branch
      %3877 = sbr.rel (0) target = $region85
    $region84: #{tpu_custom_call.1} parent=1 // pred_region
      %s3879 = ssub.s32 256, 256
      %3880 = vsyncadd [#allocation4], %s3879
      %s3881 = sshll.u32 [#allocation10], 4
      %s3882 = int_to_ptr.vmem [resolvable:$true] %s3881
      %3887 = dma.vmem_to_hbm [thread:$0]  %s3882, 256, %s16, [#allocation4], 128, 128, 8
    $region85: #{tpu_custom_call.1} parent=1 // pred_fallthru
      _
    // Predicated region
    $region86: #{tpu_custom_call.1} parent=1 // pred_check
      _
    $region87: #{tpu_custom_call.1} parent=1 // pred_check_branch
      %3889 = sbr.rel (0) target = $region89
    $region88: #{tpu_custom_call.1} parent=1 // pred_region
      %3890 = dma.done [#allocation4], 256
    $region89: #{tpu_custom_call.1} parent=1 // pred_fallthru
      _
    %3891 = vsyncpa [#allocation3], 1
    %3892 = vsyncpa [#allocation6], 1
    %3893 = vsyncpa [#allocation9], 1
    %3894 = vsyncpa [#allocation4], 1

</llo_original>
